<compile_context>
chip_gen: v6e
topology: v6e:2x2x1
jax: 0.10.0
libtpu: 0.0.40
codegen_flags: <defaults>
</compile_context>

<pallas_src>
import functools

import jax
import jax.numpy as jnp
from jax.experimental import pallas as pl
from jax.experimental.pallas import tpu as pltpu


def _round_up(x, m):
    return (x + m - 1) // m * m


# ---------------------------------------------------------------------------
# Pallas kernel: fused conv (sum of K shifted matmuls) + folded-BN bias + ReLU
# + MaxPool1d(kernel=2, stride=2, padding=1), channels-last layout.
# ---------------------------------------------------------------------------
def _conv_bn_relu_pool_kernel(xa_ref, xb_ref, w_ref, b_ref, o_ref,
                              xcat_ref, acc_ref, *, K, TLP, Lc):
    # xa_ref:   (1, TL, Cin)   bf16  conv-ext input rows [t*TL, (t+1)*TL)
    # xb_ref:   (1, 8, Cin)    bf16  halo rows [(t+1)*TL, (t+1)*TL + 8)
    # w_ref:    (K, Cin, Cout) bf16  conv taps (BN scale folded in)
    # b_ref:    (1, Cout)      f32   folded BN bias
    # o_ref:    (1, TLP, Cout) f32   pooled output rows [t*TLP, (t+1)*TLP)
    # xcat_ref: (TL + 8, Cin)  bf16  scratch: tile + halo
    # acc_ref:  (TL, Cout)     f32   scratch: masked ReLU(conv) rows
    TL = 2 * TLP
    t = pl.program_id(1)

    if K == 1:
        acc = jnp.dot(xa_ref[0], w_ref[0], preferred_element_type=jnp.float32)
    else:
        xcat_ref[0:TL, :] = xa_ref[0]
        xcat_ref[TL:TL + 8, :] = xb_ref[0]
        acc = jnp.dot(xcat_ref[0:TL, :], w_ref[0],
                      preferred_element_type=jnp.float32)
        for k in range(1, K):
            acc = acc + jnp.dot(xcat_ref[k:k + TL, :], w_ref[k],
                                preferred_element_type=jnp.float32)

    y = jnp.maximum(acc + b_ref[...], 0.0)               # bias + ReLU (f32)

    # Conv-ext row j corresponds to conv output row j-1; valid rows are
    # j in [1, Lc].  Row 0 is the MaxPool left padding, rows > Lc are the
    # right padding.  0 is a neutral padding value after ReLU.
    row = jax.lax.broadcasted_iota(jnp.int32, (TL, 1), 0) + t * TL
    y = jnp.where((row >= 1) & (row <= Lc), y, 0.0)

    # Fused MaxPool1d(kernel=2, stride=2, padding=1): 2:1 max over rows.
    acc_ref[...] = y
    o_ref[0] = jnp.maximum(acc_ref[pl.ds(0, TLP, 2), :],
                           acc_ref[pl.ds(1, TLP, 2), :])


def conv_bn_relu_pool(x_nlc, w_taps, bias, conv_pad):
    """Fused Conv1d(stride=1) + folded-BN + ReLU + MaxPool1d(2,2,1).

    x_nlc:  (N, Lin, Cin) activations, channels-last.
    w_taps: (K, Cin, Cout) conv weights with BN scale folded in.
    bias:   (1, Cout) folded BN bias.
    Returns (N, Lp, Cout) with Lp = (Lin + 2*conv_pad - K + 1)//2 + 1.
    """
    N, Lin, Cin = x_nlc.shape
    K, _, Cout = w_taps.shape
    Lc = Lin + 2 * conv_pad - K + 1            # conv output length
    Lp = Lc // 2 + 1                           # pooled output length
    TLP = min(256, _round_up(max(Lp, 8), 8))   # pool rows per tile (x8)
    TL = 2 * TLP                               # conv-ext rows per tile
    T = pl.cdiv(Lp, TLP)

    # x_ext[i] = x[i - (conv_pad + 1)]  (zeros outside), right-padded so every
    # tile plus its 8-row halo stays in range: total length (T + 1) * TL.
    Lext = (T + 1) * TL
    left = conv_pad + 1
    x_ext = jnp.pad(x_nlc.astype(jnp.bfloat16),
                    ((0, 0), (left, Lext - left - Lin), (0, 0)))
    w_bf = w_taps.astype(jnp.bfloat16)
    b_f32 = bias.astype(jnp.float32)

    kernel = functools.partial(_conv_bn_relu_pool_kernel, K=K, TLP=TLP, Lc=Lc)
    flops = 2 * N * T * TL * Cin * Cout * K
    bytes_accessed = (N * Lext * Cin * 2 + N * T * K * Cin * Cout * 2
                      + N * T * TLP * Cout * 4)

    out = pl.pallas_call(
        kernel,
        out_shape=jax.ShapeDtypeStruct((N, T * TLP, Cout), jnp.float32),
        grid_spec=pltpu.PrefetchScalarGridSpec(
            num_scalar_prefetch=0,
            grid=(N, T),
            in_specs=[
                pl.BlockSpec((1, TL, Cin), lambda n, t: (n, t, 0)),
                pl.BlockSpec((1, 8, Cin),
                             lambda n, t: (n, (t + 1) * (TL // 8), 0)),
                pl.BlockSpec((K, Cin, Cout), lambda n, t: (0, 0, 0)),
                pl.BlockSpec((1, Cout), lambda n, t: (0, 0)),
            ],
            out_specs=pl.BlockSpec((1, TLP, Cout), lambda n, t: (n, t, 0)),
            scratch_shapes=[
                pltpu.VMEM((TL + 8, Cin), jnp.bfloat16),
                pltpu.VMEM((TL, Cout), jnp.float32),
            ],
        ),
        compiler_params=pltpu.CompilerParams(
            dimension_semantics=("parallel", "parallel"),
            vmem_limit_bytes=32 * 1024 * 1024,
        ),
        cost_estimate=pl.CostEstimate(flops=flops, transcendentals=0,
                                      bytes_accessed=bytes_accessed),
    )(x_ext, x_ext, w_bf, b_f32)
    return out[:, :Lp, :]


# ---------------------------------------------------------------------------
# JAX glue: layer-1 im2col (Cin=1, stride 6) and parameter preparation
# ---------------------------------------------------------------------------
_CK1_PAD = 32     # layer-1 patch width  25 -> 32
_COUT1_PAD = 128  # layer-1 out channels 64 -> 128 (lane-dense stores)


def im2col1d(x_ncl, K, stride, pad, ck_pad):
    """x: (N, Cin, L) -> patches (N, Lout, ck_pad), channels-last."""
    N, Cin, L = x_ncl.shape
    xp = jnp.pad(x_ncl, ((0, 0), (0, 0), (pad, pad)))
    Lout = (L + 2 * pad - K) // stride + 1
    idx = jnp.arange(Lout)[:, None] * stride + jnp.arange(K)[None, :]
    patches = xp[:, :, idx]                                 # (N, Cin, Lout, K)
    patches = jnp.transpose(patches, (0, 2, 1, 3)).reshape(N, Lout, Cin * K)
    if ck_pad > Cin * K:
        patches = jnp.pad(patches, ((0, 0), (0, 0), (0, ck_pad - Cin * K)))
    return patches


def fold_bn(gamma, beta, running_mean, running_var, eps=1e-5):
    scale = gamma / jnp.sqrt(running_var + eps)
    bias = beta - running_mean * scale
    return scale.astype(jnp.float32), bias.astype(jnp.float32)


def make_params(key):
    mid, final, cin = 64, 128, 1
    ks = jax.random.split(key, 6)

    def conv_w(k, cout, cin_, ksz):
        fan_in = cin_ * ksz
        return jax.random.normal(k, (cout, cin_, ksz), jnp.float32) / jnp.sqrt(fan_in)

    def bn(k, c):
        k1, k2, k3, k4 = jax.random.split(k, 4)
        gamma = 1.0 + 0.1 * jax.random.normal(k1, (c,), jnp.float32)
        beta = 0.1 * jax.random.normal(k2, (c,), jnp.float32)
        mean = 0.1 * jax.random.normal(k3, (c,), jnp.float32)
        var = 1.0 + 0.1 * jax.random.uniform(k4, (c,), jnp.float32)
        return fold_bn(gamma, beta, mean, var)

    p = {}
    p["w1"] = conv_w(ks[0], mid, cin, 25)
    p["bn1_scale"], p["bn1_bias"] = bn(ks[1], mid)
    p["w2"] = conv_w(ks[2], mid * 2, mid, 8)
    p["bn2_scale"], p["bn2_bias"] = bn(ks[3], mid * 2)
    p["w3"] = conv_w(ks[4], final, mid * 2, 8)
    p["bn3_scale"], p["bn3_bias"] = bn(ks[5], final)
    return p


def prepare_params(p):
    """Fold BN scale into conv weights; lay them out as (K, Cin, Cout) taps."""
    q = {}
    # Layer 1: im2col matmul weight, padded 25 -> 32 rows / 64 -> 128 cols.
    w1 = p["w1"] * p["bn1_scale"][:, None, None]            # (64, 1, 25)
    cout1, cin1, k1 = w1.shape
    w1_mat = w1.reshape(cout1, cin1 * k1).T                 # (25, 64)
    w1_taps = jnp.zeros((1, _CK1_PAD, _COUT1_PAD), jnp.float32)
    w1_taps = w1_taps.at[0, :cin1 * k1, :cout1].set(w1_mat)
    b1 = jnp.zeros((1, _COUT1_PAD), jnp.float32).at[0, :cout1].set(p["bn1_bias"])
    q["w1_taps"], q["b1"] = w1_taps, b1
    # Layers 2/3: (Cout, Cin, K) -> (K, Cin, Cout), BN scale folded.
    for i in (2, 3):
        w = p[f"w{i}"] * p[f"bn{i}_scale"][:, None, None]
        q[f"w{i}_taps"] = jnp.transpose(w, (2, 1, 0))
        q[f"b{i}"] = p[f"bn{i}_bias"].reshape(1, -1)
    return q


def output_encoder_forward(x_ncl, q):
    """x_ncl: (N, 1, L) in PyTorch NCL layout.  Returns (N, 128) features."""
    # conv_block1: Conv1d(1->64, k=25, s=6, p=12) + BN + ReLU + MaxPool + Dropout(eval=id)
    patches = im2col1d(x_ncl, K=25, stride=6, pad=12, ck_pad=_CK1_PAD)
    h = conv_bn_relu_pool(patches, q["w1_taps"], q["b1"], conv_pad=0)
    h = h[:, :, :64]                                        # drop Cout padding
    # conv_block2: Conv1d(64->128, k=8, s=1, p=4) + BN + ReLU + MaxPool
    h = conv_bn_relu_pool(h, q["w2_taps"], q["b2"], conv_pad=4)
    # conv_block3: Conv1d(128->128, k=8, s=1, p=4) + BN + ReLU + MaxPool
    h = conv_bn_relu_pool(h, q["w3_taps"], q["b3"], conv_pad=4)
    # AdaptiveAvgPool1d(1) + flatten
    return jnp.mean(h, axis=1)                              # (N, 128)


if __name__ == "__main__":
    key = jax.random.PRNGKey(0)
    k_x, k_p = jax.random.split(key)

    # Small synthetic input consistent with the module: (batch=2, channels=1, length=128)
    x = jax.random.normal(k_x, (2, 1, 128), jnp.float32)
    params = prepare_params(make_params(k_p))

    out = jax.jit(output_encoder_forward)(x, params)
    out = jax.block_until_ready(out)

    assert out.shape == (2, 128), out.shape
    assert bool(jnp.all(jnp.isfinite(out)))
    print("KERNEL_OK")
</pallas_src>

<mosaic_0001>
module attributes {stable_mosaic.version = 11 : i64} {
  func.func @_conv_bn_relu_pool_kernel(%arg0: i32, %arg1: i32, %arg2: memref<1x32x32xbf16, #tpu.memory_space<vmem>>, %arg3: memref<1x8x32xbf16, #tpu.memory_space<vmem>>, %arg4: memref<1x32x128xbf16, #tpu.memory_space<vmem>>, %arg5: memref<1x128xf32, #tpu.memory_space<vmem>>, %arg6: memref<1x16x128xf32, #tpu.memory_space<vmem>>, %arg7: memref<40x32xbf16, #tpu.memory_space<vmem>>, %arg8: memref<32x128xf32, #tpu.memory_space<vmem>>) attributes {dimension_semantics = [#tpu.dimension_semantics<parallel>, #tpu.dimension_semantics<parallel>], iteration_bounds = array<i64: 2, 1>, scalar_prefetch = 0 : i64, scratch_operands = 2 : i64, tpu.core_type = #tpu.core_type<tc>, window_params = [{transform_indices = @transform_0, window_bounds = array<i64: 1, 32, 32>}, {transform_indices = @transform_1, window_bounds = array<i64: 1, 8, 32>}, {pipeline_mode = #tpu.pipeline_mode<synchronous>, transform_indices = @transform_2, window_bounds = array<i64: 1, 32, 128>}, {pipeline_mode = #tpu.pipeline_mode<synchronous>, transform_indices = @transform_3, window_bounds = array<i64: 1, 128>}, {transform_indices = @transform_4, window_bounds = array<i64: 1, 16, 128>}]} {
    %c0 = arith.constant 0 : index
    %c0_0 = arith.constant 0 : index
    %c0_1 = arith.constant 0 : index
    %0 = vector.load %arg2[%c0, %c0_0, %c0_1] : memref<1x32x32xbf16, #tpu.memory_space<vmem>>, vector<1x32x32xbf16>
    %1 = vector.shape_cast %0 : vector<1x32x32xbf16> to vector<32x32xbf16>
    %c0_2 = arith.constant 0 : index
    %c0_3 = arith.constant 0 : index
    %c0_4 = arith.constant 0 : index
    %2 = vector.load %arg4[%c0_2, %c0_3, %c0_4] : memref<1x32x128xbf16, #tpu.memory_space<vmem>>, vector<1x32x128xbf16>
    %3 = vector.shape_cast %2 : vector<1x32x128xbf16> to vector<32x128xbf16>
    %cst = arith.constant dense<0.000000e+00> : vector<32x128xf32>
    %4 = tpu.matmul %1, %3, %cst {dimension_numbers = #tpu.dot_dimension_numbers<[1], [0], [0], [1], [0, 0, 1, 1], [], []>} : vector<32x32xbf16>, vector<32x128xbf16>, vector<32x128xf32> -> vector<32x128xf32>
    %c0_5 = arith.constant 0 : index
    %c0_6 = arith.constant 0 : index
    %5 = vector.load %arg5[%c0_5, %c0_6] : memref<1x128xf32, #tpu.memory_space<vmem>>, vector<1x128xf32>
    %6 = vector.broadcast %5 : vector<1x128xf32> to vector<32x128xf32>
    %7 = arith.addf %4, %6 : vector<32x128xf32>
    %cst_7 = arith.constant 0.000000e+00 : f32
    %8 = vector.broadcast %cst_7 : f32 to vector<32x128xf32>
    %9 = arith.maximumf %7, %8 : vector<32x128xf32>
    %10 = tpu.iota {dimensions = array<i32: 0>} : vector<32x1xi32>
    %c32_i32 = arith.constant 32 : i32
    %11 = arith.muli %arg1, %c32_i32 : i32
    %12 = vector.broadcast %11 : i32 to vector<32x1xi32>
    %13 = arith.addi %10, %12 : vector<32x1xi32>
    %c1_i32 = arith.constant 1 : i32
    %14 = vector.broadcast %c1_i32 : i32 to vector<32x1xi32>
    %15 = arith.cmpi sge, %13, %14 : vector<32x1xi32>
    %c22_i32 = arith.constant 22 : i32
    %16 = vector.broadcast %c22_i32 : i32 to vector<32x1xi32>
    %17 = arith.cmpi sle, %13, %16 : vector<32x1xi32>
    %18 = arith.andi %15, %17 : vector<32x1xi1>
    %cst_8 = arith.constant 0.000000e+00 : f32
    %19 = vector.shape_cast %18 : vector<32x1xi1> to vector<32x1xi1>
    %20 = vector.broadcast %19 : vector<32x1xi1> to vector<32x128xi1>
    %21 = vector.broadcast %cst_8 : f32 to vector<32x128xf32>
    %22 = arith.select %20, %9, %21 : vector<32x128xi1>, vector<32x128xf32>
    %c0_9 = arith.constant 0 : index
    %c0_10 = arith.constant 0 : index
    %23 = vector.load %arg8[%c0_9, %c0_10] : memref<32x128xf32, #tpu.memory_space<vmem>>, vector<32x128xf32>
    tpu.vector_store %arg8[%c0_9, %c0_10], %22 {strides = array<i32>} : memref<32x128xf32, #tpu.memory_space<vmem>>, vector<32x128xf32>,
    %c0_11 = arith.constant 0 : index
    %c0_12 = arith.constant 0 : index
    %24 = tpu.strided_load %arg8[%c0_11, %c0_12] {strides = array<i32: 2, 1>} : memref<32x128xf32, #tpu.memory_space<vmem>>, vector<16x128xf32>
    %c1 = arith.constant 1 : index
    %c0_13 = arith.constant 0 : index
    %25 = tpu.strided_load %arg8[%c1, %c0_13] {strides = array<i32: 2, 1>} : memref<32x128xf32, #tpu.memory_space<vmem>>, vector<16x128xf32>
    %26 = arith.maximumf %24, %25 : vector<16x128xf32>
    %c0_14 = arith.constant 0 : index
    %c0_15 = arith.constant 0 : index
    %c0_16 = arith.constant 0 : index
    %27 = vector.load %arg6[%c0_14, %c0_15, %c0_16] : memref<1x16x128xf32, #tpu.memory_space<vmem>>, vector<1x16x128xf32>
    %28 = vector.shape_cast %27 : vector<1x16x128xf32> to vector<16x128xf32>
    %29 = vector.shape_cast %26 : vector<16x128xf32> to vector<1x16x128xf32>
    tpu.vector_store %arg6[%c0_14, %c0_15, %c0_16], %29 {strides = array<i32>} : memref<1x16x128xf32, #tpu.memory_space<vmem>>, vector<1x16x128xf32>,
    return
  }
  func.func @transform_0(%arg0: i32, %arg1: i32) -> (i32, i32, i32) {
    %c0_i32 = arith.constant 0 : i32
    %c0_i32_0 = arith.constant 0 : i32
    return %arg0, %arg1, %c0_i32 : i32, i32, i32
  }
  func.func @transform_1(%arg0: i32, %arg1: i32) -> (i32, i32, i32) {
    %c1_i32 = arith.constant 1 : i32
    %0 = arith.addi %arg1, %c1_i32 : i32
    %c4_i32 = arith.constant 4 : i32
    %1 = arith.muli %0, %c4_i32 : i32
    %c0_i32 = arith.constant 0 : i32
    %c0_i32_0 = arith.constant 0 : i32
    return %arg0, %1, %c0_i32 : i32, i32, i32
  }
  func.func @transform_2(%arg0: i32, %arg1: i32) -> (i32, i32, i32) {
    %c0_i32 = arith.constant 0 : i32
    %c0_i32_0 = arith.constant 0 : i32
    %c0_i32_1 = arith.constant 0 : i32
    %c0_i32_2 = arith.constant 0 : i32
    return %c0_i32, %c0_i32_0, %c0_i32_1 : i32, i32, i32
  }
  func.func @transform_3(%arg0: i32, %arg1: i32) -> (i32, i32) {
    %c0_i32 = arith.constant 0 : i32
    %c0_i32_0 = arith.constant 0 : i32
    %c0_i32_1 = arith.constant 0 : i32
    return %c0_i32, %c0_i32_0 : i32, i32
  }
  func.func @transform_4(%arg0: i32, %arg1: i32) -> (i32, i32, i32) {
    %c0_i32 = arith.constant 0 : i32
    %c0_i32_0 = arith.constant 0 : i32
    return %arg0, %arg1, %c0_i32 : i32, i32, i32
  }
}

module attributes {stable_mosaic.version = 11 : i64} {
  func.func @_conv_bn_relu_pool_kernel(%arg0: i32, %arg1: i32, %arg2: memref<1x16x64xbf16, #tpu.memory_space<vmem>>, %arg3: memref<1x8x64xbf16, #tpu.memory_space<vmem>>, %arg4: memref<8x64x128xbf16, #tpu.memory_space<vmem>>, %arg5: memref<1x128xf32, #tpu.memory_space<vmem>>, %arg6: memref<1x8x128xf32, #tpu.memory_space<vmem>>, %arg7: memref<24x64xbf16, #tpu.memory_space<vmem>>, %arg8: memref<16x128xf32, #tpu.memory_space<vmem>>) attributes {dimension_semantics = [#tpu.dimension_semantics<parallel>, #tpu.dimension_semantics<parallel>], iteration_bounds = array<i64: 2, 1>, scalar_prefetch = 0 : i64, scratch_operands = 2 : i64, tpu.core_type = #tpu.core_type<tc>, window_params = [{transform_indices = @transform_0, window_bounds = array<i64: 1, 16, 64>}, {transform_indices = @transform_1, window_bounds = array<i64: 1, 8, 64>}, {pipeline_mode = #tpu.pipeline_mode<synchronous>, transform_indices = @transform_2, window_bounds = array<i64: 8, 64, 128>}, {pipeline_mode = #tpu.pipeline_mode<synchronous>, transform_indices = @transform_3, window_bounds = array<i64: 1, 128>}, {transform_indices = @transform_4, window_bounds = array<i64: 1, 8, 128>}]} {
    %c0 = arith.constant 0 : index
    %c0_0 = arith.constant 0 : index
    %c0_1 = arith.constant 0 : index
    %0 = vector.load %arg2[%c0, %c0_0, %c0_1] : memref<1x16x64xbf16, #tpu.memory_space<vmem>>, vector<1x16x64xbf16>
    %1 = vector.shape_cast %0 : vector<1x16x64xbf16> to vector<16x64xbf16>
    %c0_2 = arith.constant 0 : index
    %c0_3 = arith.constant 0 : index
    %2 = vector.load %arg7[%c0_2, %c0_3] : memref<24x64xbf16, #tpu.memory_space<vmem>>, vector<16x64xbf16>
    tpu.vector_store %arg7[%c0_2, %c0_3], %1 {strides = array<i32>} : memref<24x64xbf16, #tpu.memory_space<vmem>>, vector<16x64xbf16>,
    %c0_4 = arith.constant 0 : index
    %c0_5 = arith.constant 0 : index
    %c0_6 = arith.constant 0 : index
    %3 = vector.load %arg3[%c0_4, %c0_5, %c0_6] : memref<1x8x64xbf16, #tpu.memory_space<vmem>>, vector<1x8x64xbf16>
    %4 = vector.shape_cast %3 : vector<1x8x64xbf16> to vector<8x64xbf16>
    %c16 = arith.constant 16 : index
    %c0_7 = arith.constant 0 : index
    %5 = vector.load %arg7[%c16, %c0_7] : memref<24x64xbf16, #tpu.memory_space<vmem>>, vector<8x64xbf16>
    tpu.vector_store %arg7[%c16, %c0_7], %4 {strides = array<i32>} : memref<24x64xbf16, #tpu.memory_space<vmem>>, vector<8x64xbf16>,
    %c0_8 = arith.constant 0 : index
    %c0_9 = arith.constant 0 : index
    %6 = vector.load %arg7[%c0_8, %c0_9] : memref<24x64xbf16, #tpu.memory_space<vmem>>, vector<16x64xbf16>
    %c0_10 = arith.constant 0 : index
    %c0_11 = arith.constant 0 : index
    %c0_12 = arith.constant 0 : index
    %7 = vector.load %arg4[%c0_10, %c0_11, %c0_12] : memref<8x64x128xbf16, #tpu.memory_space<vmem>>, vector<1x64x128xbf16>
    %8 = vector.shape_cast %7 : vector<1x64x128xbf16> to vector<64x128xbf16>
    %cst = arith.constant dense<0.000000e+00> : vector<16x128xf32>
    %9 = tpu.matmul %6, %8, %cst {dimension_numbers = #tpu.dot_dimension_numbers<[1], [0], [0], [1], [0, 0, 1, 1], [], []>} : vector<16x64xbf16>, vector<64x128xbf16>, vector<16x128xf32> -> vector<16x128xf32>
    %c1 = arith.constant 1 : index
    %c0_13 = arith.constant 0 : index
    %10 = vector.load %arg7[%c1, %c0_13] : memref<24x64xbf16, #tpu.memory_space<vmem>>, vector<16x64xbf16>
    %c1_14 = arith.constant 1 : index
    %c0_15 = arith.constant 0 : index
    %c0_16 = arith.constant 0 : index
    %11 = vector.load %arg4[%c1_14, %c0_15, %c0_16] : memref<8x64x128xbf16, #tpu.memory_space<vmem>>, vector<1x64x128xbf16>
    %12 = vector.shape_cast %11 : vector<1x64x128xbf16> to vector<64x128xbf16>
    %cst_17 = arith.constant dense<0.000000e+00> : vector<16x128xf32>
    %13 = tpu.matmul %10, %12, %cst_17 {dimension_numbers = #tpu.dot_dimension_numbers<[1], [0], [0], [1], [0, 0, 1, 1], [], []>} : vector<16x64xbf16>, vector<64x128xbf16>, vector<16x128xf32> -> vector<16x128xf32>
    %14 = arith.addf %9, %13 : vector<16x128xf32>
    %c2 = arith.constant 2 : index
    %c0_18 = arith.constant 0 : index
    %15 = vector.load %arg7[%c2, %c0_18] : memref<24x64xbf16, #tpu.memory_space<vmem>>, vector<16x64xbf16>
    %c2_19 = arith.constant 2 : index
    %c0_20 = arith.constant 0 : index
    %c0_21 = arith.constant 0 : index
    %16 = vector.load %arg4[%c2_19, %c0_20, %c0_21] : memref<8x64x128xbf16, #tpu.memory_space<vmem>>, vector<1x64x128xbf16>
    %17 = vector.shape_cast %16 : vector<1x64x128xbf16> to vector<64x128xbf16>
    %cst_22 = arith.constant dense<0.000000e+00> : vector<16x128xf32>
    %18 = tpu.matmul %15, %17, %cst_22 {dimension_numbers = #tpu.dot_dimension_numbers<[1], [0], [0], [1], [0, 0, 1, 1], [], []>} : vector<16x64xbf16>, vector<64x128xbf16>, vector<16x128xf32> -> vector<16x128xf32>
    %19 = arith.addf %14, %18 : vector<16x128xf32>
    %c3 = arith.constant 3 : index
    %c0_23 = arith.constant 0 : index
    %20 = vector.load %arg7[%c3, %c0_23] : memref<24x64xbf16, #tpu.memory_space<vmem>>, vector<16x64xbf16>
    %c3_24 = arith.constant 3 : index
    %c0_25 = arith.constant 0 : index
    %c0_26 = arith.constant 0 : index
    %21 = vector.load %arg4[%c3_24, %c0_25, %c0_26] : memref<8x64x128xbf16, #tpu.memory_space<vmem>>, vector<1x64x128xbf16>
    %22 = vector.shape_cast %21 : vector<1x64x128xbf16> to vector<64x128xbf16>
    %cst_27 = arith.constant dense<0.000000e+00> : vector<16x128xf32>
    %23 = tpu.matmul %20, %22, %cst_27 {dimension_numbers = #tpu.dot_dimension_numbers<[1], [0], [0], [1], [0, 0, 1, 1], [], []>} : vector<16x64xbf16>, vector<64x128xbf16>, vector<16x128xf32> -> vector<16x128xf32>
    %24 = arith.addf %19, %23 : vector<16x128xf32>
    %c4 = arith.constant 4 : index
    %c0_28 = arith.constant 0 : index
    %25 = vector.load %arg7[%c4, %c0_28] : memref<24x64xbf16, #tpu.memory_space<vmem>>, vector<16x64xbf16>
    %c4_29 = arith.constant 4 : index
    %c0_30 = arith.constant 0 : index
    %c0_31 = arith.constant 0 : index
    %26 = vector.load %arg4[%c4_29, %c0_30, %c0_31] : memref<8x64x128xbf16, #tpu.memory_space<vmem>>, vector<1x64x128xbf16>
    %27 = vector.shape_cast %26 : vector<1x64x128xbf16> to vector<64x128xbf16>
    %cst_32 = arith.constant dense<0.000000e+00> : vector<16x128xf32>
    %28 = tpu.matmul %25, %27, %cst_32 {dimension_numbers = #tpu.dot_dimension_numbers<[1], [0], [0], [1], [0, 0, 1, 1], [], []>} : vector<16x64xbf16>, vector<64x128xbf16>, vector<16x128xf32> -> vector<16x128xf32>
    %29 = arith.addf %24, %28 : vector<16x128xf32>
    %c5 = arith.constant 5 : index
    %c0_33 = arith.constant 0 : index
    %30 = vector.load %arg7[%c5, %c0_33] : memref<24x64xbf16, #tpu.memory_space<vmem>>, vector<16x64xbf16>
    %c5_34 = arith.constant 5 : index
    %c0_35 = arith.constant 0 : index
    %c0_36 = arith.constant 0 : index
    %31 = vector.load %arg4[%c5_34, %c0_35, %c0_36] : memref<8x64x128xbf16, #tpu.memory_space<vmem>>, vector<1x64x128xbf16>
    %32 = vector.shape_cast %31 : vector<1x64x128xbf16> to vector<64x128xbf16>
    %cst_37 = arith.constant dense<0.000000e+00> : vector<16x128xf32>
    %33 = tpu.matmul %30, %32, %cst_37 {dimension_numbers = #tpu.dot_dimension_numbers<[1], [0], [0], [1], [0, 0, 1, 1], [], []>} : vector<16x64xbf16>, vector<64x128xbf16>, vector<16x128xf32> -> vector<16x128xf32>
    %34 = arith.addf %29, %33 : vector<16x128xf32>
    %c6 = arith.constant 6 : index
    %c0_38 = arith.constant 0 : index
    %35 = vector.load %arg7[%c6, %c0_38] : memref<24x64xbf16, #tpu.memory_space<vmem>>, vector<16x64xbf16>
    %c6_39 = arith.constant 6 : index
    %c0_40 = arith.constant 0 : index
    %c0_41 = arith.constant 0 : index
    %36 = vector.load %arg4[%c6_39, %c0_40, %c0_41] : memref<8x64x128xbf16, #tpu.memory_space<vmem>>, vector<1x64x128xbf16>
    %37 = vector.shape_cast %36 : vector<1x64x128xbf16> to vector<64x128xbf16>
    %cst_42 = arith.constant dense<0.000000e+00> : vector<16x128xf32>
    %38 = tpu.matmul %35, %37, %cst_42 {dimension_numbers = #tpu.dot_dimension_numbers<[1], [0], [0], [1], [0, 0, 1, 1], [], []>} : vector<16x64xbf16>, vector<64x128xbf16>, vector<16x128xf32> -> vector<16x128xf32>
    %39 = arith.addf %34, %38 : vector<16x128xf32>
    %c7 = arith.constant 7 : index
    %c0_43 = arith.constant 0 : index
    %40 = vector.load %arg7[%c7, %c0_43] : memref<24x64xbf16, #tpu.memory_space<vmem>>, vector<16x64xbf16>
    %c7_44 = arith.constant 7 : index
    %c0_45 = arith.constant 0 : index
    %c0_46 = arith.constant 0 : index
    %41 = vector.load %arg4[%c7_44, %c0_45, %c0_46] : memref<8x64x128xbf16, #tpu.memory_space<vmem>>, vector<1x64x128xbf16>
    %42 = vector.shape_cast %41 : vector<1x64x128xbf16> to vector<64x128xbf16>
    %cst_47 = arith.constant dense<0.000000e+00> : vector<16x128xf32>
    %43 = tpu.matmul %40, %42, %cst_47 {dimension_numbers = #tpu.dot_dimension_numbers<[1], [0], [0], [1], [0, 0, 1, 1], [], []>} : vector<16x64xbf16>, vector<64x128xbf16>, vector<16x128xf32> -> vector<16x128xf32>
    %44 = arith.addf %39, %43 : vector<16x128xf32>
    %c0_48 = arith.constant 0 : index
    %c0_49 = arith.constant 0 : index
    %45 = vector.load %arg5[%c0_48, %c0_49] : memref<1x128xf32, #tpu.memory_space<vmem>>, vector<1x128xf32>
    %46 = vector.broadcast %45 : vector<1x128xf32> to vector<16x128xf32>
    %47 = arith.addf %44, %46 : vector<16x128xf32>
    %cst_50 = arith.constant 0.000000e+00 : f32
    %48 = vector.broadcast %cst_50 : f32 to vector<16x128xf32>
    %49 = arith.maximumf %47, %48 : vector<16x128xf32>
    %50 = tpu.iota {dimensions = array<i32: 0>} : vector<16x1xi32>
    %c16_i32 = arith.constant 16 : i32
    %51 = arith.muli %arg1, %c16_i32 : i32
    %52 = vector.broadcast %51 : i32 to vector<16x1xi32>
    %53 = arith.addi %50, %52 : vector<16x1xi32>
    %c1_i32 = arith.constant 1 : i32
    %54 = vector.broadcast %c1_i32 : i32 to vector<16x1xi32>
    %55 = arith.cmpi sge, %53, %54 : vector<16x1xi32>
    %c13_i32 = arith.constant 13 : i32
    %56 = vector.broadcast %c13_i32 : i32 to vector<16x1xi32>
    %57 = arith.cmpi sle, %53, %56 : vector<16x1xi32>
    %58 = arith.andi %55, %57 : vector<16x1xi1>
    %cst_51 = arith.constant 0.000000e+00 : f32
    %59 = vector.shape_cast %58 : vector<16x1xi1> to vector<16x1xi1>
    %60 = vector.broadcast %59 : vector<16x1xi1> to vector<16x128xi1>
    %61 = vector.broadcast %cst_51 : f32 to vector<16x128xf32>
    %62 = arith.select %60, %49, %61 : vector<16x128xi1>, vector<16x128xf32>
    %c0_52 = arith.constant 0 : index
    %c0_53 = arith.constant 0 : index
    %63 = vector.load %arg8[%c0_52, %c0_53] : memref<16x128xf32, #tpu.memory_space<vmem>>, vector<16x128xf32>
    tpu.vector_store %arg8[%c0_52, %c0_53], %62 {strides = array<i32>} : memref<16x128xf32, #tpu.memory_space<vmem>>, vector<16x128xf32>,
    %c0_54 = arith.constant 0 : index
    %c0_55 = arith.constant 0 : index
    %64 = tpu.strided_load %arg8[%c0_54, %c0_55] {strides = array<i32: 2, 1>} : memref<16x128xf32, #tpu.memory_space<vmem>>, vector<8x128xf32>
    %c1_56 = arith.constant 1 : index
    %c0_57 = arith.constant 0 : index
    %65 = tpu.strided_load %arg8[%c1_56, %c0_57] {strides = array<i32: 2, 1>} : memref<16x128xf32, #tpu.memory_space<vmem>>, vector<8x128xf32>
    %66 = arith.maximumf %64, %65 : vector<8x128xf32>
    %c0_58 = arith.constant 0 : index
    %c0_59 = arith.constant 0 : index
    %c0_60 = arith.constant 0 : index
    %67 = vector.load %arg6[%c0_58, %c0_59, %c0_60] : memref<1x8x128xf32, #tpu.memory_space<vmem>>, vector<1x8x128xf32>
    %68 = vector.shape_cast %67 : vector<1x8x128xf32> to vector<8x128xf32>
    %69 = vector.shape_cast %66 : vector<8x128xf32> to vector<1x8x128xf32>
    tpu.vector_store %arg6[%c0_58, %c0_59, %c0_60], %69 {strides = array<i32>} : memref<1x8x128xf32, #tpu.memory_space<vmem>>, vector<1x8x128xf32>,
    return
  }
  func.func @transform_0(%arg0: i32, %arg1: i32) -> (i32, i32, i32) {
    %c0_i32 = arith.constant 0 : i32
    %c0_i32_0 = arith.constant 0 : i32
    return %arg0, %arg1, %c0_i32 : i32, i32, i32
  }
  func.func @transform_1(%arg0: i32, %arg1: i32) -> (i32, i32, i32) {
    %c1_i32 = arith.constant 1 : i32
    %0 = arith.addi %arg1, %c1_i32 : i32
    %c2_i32 = arith.constant 2 : i32
    %1 = arith.muli %0, %c2_i32 : i32
    %c0_i32 = arith.constant 0 : i32
    %c0_i32_0 = arith.constant 0 : i32
    return %arg0, %1, %c0_i32 : i32, i32, i32
  }
  func.func @transform_2(%arg0: i32, %arg1: i32) -> (i32, i32, i32) {
    %c0_i32 = arith.constant 0 : i32
    %c0_i32_0 = arith.constant 0 : i32
    %c0_i32_1 = arith.constant 0 : i32
    %c0_i32_2 = arith.constant 0 : i32
    return %c0_i32, %c0_i32_0, %c0_i32_1 : i32, i32, i32
  }
  func.func @transform_3(%arg0: i32, %arg1: i32) -> (i32, i32) {
    %c0_i32 = arith.constant 0 : i32
    %c0_i32_0 = arith.constant 0 : i32
    %c0_i32_1 = arith.constant 0 : i32
    return %c0_i32, %c0_i32_0 : i32, i32
  }
  func.func @transform_4(%arg0: i32, %arg1: i32) -> (i32, i32, i32) {
    %c0_i32 = arith.constant 0 : i32
    %c0_i32_0 = arith.constant 0 : i32
    return %arg0, %arg1, %c0_i32 : i32, i32, i32
  }
}

module attributes {stable_mosaic.version = 11 : i64} {
  func.func @_conv_bn_relu_pool_kernel(%arg0: i32, %arg1: i32, %arg2: memref<1x16x128xbf16, #tpu.memory_space<vmem>>, %arg3: memref<1x8x128xbf16, #tpu.memory_space<vmem>>, %arg4: memref<8x128x128xbf16, #tpu.memory_space<vmem>>, %arg5: memref<1x128xf32, #tpu.memory_space<vmem>>, %arg6: memref<1x8x128xf32, #tpu.memory_space<vmem>>, %arg7: memref<24x128xbf16, #tpu.memory_space<vmem>>, %arg8: memref<16x128xf32, #tpu.memory_space<vmem>>) attributes {dimension_semantics = [#tpu.dimension_semantics<parallel>, #tpu.dimension_semantics<parallel>], iteration_bounds = array<i64: 2, 1>, scalar_prefetch = 0 : i64, scratch_operands = 2 : i64, tpu.core_type = #tpu.core_type<tc>, window_params = [{transform_indices = @transform_0, window_bounds = array<i64: 1, 16, 128>}, {transform_indices = @transform_1, window_bounds = array<i64: 1, 8, 128>}, {pipeline_mode = #tpu.pipeline_mode<synchronous>, transform_indices = @transform_2, window_bounds = array<i64: 8, 128, 128>}, {pipeline_mode = #tpu.pipeline_mode<synchronous>, transform_indices = @transform_3, window_bounds = array<i64: 1, 128>}, {transform_indices = @transform_4, window_bounds = array<i64: 1, 8, 128>}]} {
    %c0 = arith.constant 0 : index
    %c0_0 = arith.constant 0 : index
    %c0_1 = arith.constant 0 : index
    %0 = vector.load %arg2[%c0, %c0_0, %c0_1] : memref<1x16x128xbf16, #tpu.memory_space<vmem>>, vector<1x16x128xbf16>
    %1 = vector.shape_cast %0 : vector<1x16x128xbf16> to vector<16x128xbf16>
    %c0_2 = arith.constant 0 : index
    %c0_3 = arith.constant 0 : index
    %2 = vector.load %arg7[%c0_2, %c0_3] : memref<24x128xbf16, #tpu.memory_space<vmem>>, vector<16x128xbf16>
    tpu.vector_store %arg7[%c0_2, %c0_3], %1 {strides = array<i32>} : memref<24x128xbf16, #tpu.memory_space<vmem>>, vector<16x128xbf16>,
    %c0_4 = arith.constant 0 : index
    %c0_5 = arith.constant 0 : index
    %c0_6 = arith.constant 0 : index
    %3 = vector.load %arg3[%c0_4, %c0_5, %c0_6] : memref<1x8x128xbf16, #tpu.memory_space<vmem>>, vector<1x8x128xbf16>
    %4 = vector.shape_cast %3 : vector<1x8x128xbf16> to vector<8x128xbf16>
    %c16 = arith.constant 16 : index
    %c0_7 = arith.constant 0 : index
    %5 = vector.load %arg7[%c16, %c0_7] : memref<24x128xbf16, #tpu.memory_space<vmem>>, vector<8x128xbf16>
    tpu.vector_store %arg7[%c16, %c0_7], %4 {strides = array<i32>} : memref<24x128xbf16, #tpu.memory_space<vmem>>, vector<8x128xbf16>,
    %c0_8 = arith.constant 0 : index
    %c0_9 = arith.constant 0 : index
    %6 = vector.load %arg7[%c0_8, %c0_9] : memref<24x128xbf16, #tpu.memory_space<vmem>>, vector<16x128xbf16>
    %c0_10 = arith.constant 0 : index
    %c0_11 = arith.constant 0 : index
    %c0_12 = arith.constant 0 : index
    %7 = vector.load %arg4[%c0_10, %c0_11, %c0_12] : memref<8x128x128xbf16, #tpu.memory_space<vmem>>, vector<1x128x128xbf16>
    %8 = vector.shape_cast %7 : vector<1x128x128xbf16> to vector<128x128xbf16>
    %cst = arith.constant dense<0.000000e+00> : vector<16x128xf32>
    %9 = tpu.matmul %6, %8, %cst {dimension_numbers = #tpu.dot_dimension_numbers<[1], [0], [0], [1], [0, 0, 1, 1], [], []>} : vector<16x128xbf16>, vector<128x128xbf16>, vector<16x128xf32> -> vector<16x128xf32>
    %c1 = arith.constant 1 : index
    %c0_13 = arith.constant 0 : index
    %10 = vector.load %arg7[%c1, %c0_13] : memref<24x128xbf16, #tpu.memory_space<vmem>>, vector<16x128xbf16>
    %c1_14 = arith.constant 1 : index
    %c0_15 = arith.constant 0 : index
    %c0_16 = arith.constant 0 : index
    %11 = vector.load %arg4[%c1_14, %c0_15, %c0_16] : memref<8x128x128xbf16, #tpu.memory_space<vmem>>, vector<1x128x128xbf16>
    %12 = vector.shape_cast %11 : vector<1x128x128xbf16> to vector<128x128xbf16>
    %cst_17 = arith.constant dense<0.000000e+00> : vector<16x128xf32>
    %13 = tpu.matmul %10, %12, %cst_17 {dimension_numbers = #tpu.dot_dimension_numbers<[1], [0], [0], [1], [0, 0, 1, 1], [], []>} : vector<16x128xbf16>, vector<128x128xbf16>, vector<16x128xf32> -> vector<16x128xf32>
    %14 = arith.addf %9, %13 : vector<16x128xf32>
    %c2 = arith.constant 2 : index
    %c0_18 = arith.constant 0 : index
    %15 = vector.load %arg7[%c2, %c0_18] : memref<24x128xbf16, #tpu.memory_space<vmem>>, vector<16x128xbf16>
    %c2_19 = arith.constant 2 : index
    %c0_20 = arith.constant 0 : index
    %c0_21 = arith.constant 0 : index
    %16 = vector.load %arg4[%c2_19, %c0_20, %c0_21] : memref<8x128x128xbf16, #tpu.memory_space<vmem>>, vector<1x128x128xbf16>
    %17 = vector.shape_cast %16 : vector<1x128x128xbf16> to vector<128x128xbf16>
    %cst_22 = arith.constant dense<0.000000e+00> : vector<16x128xf32>
    %18 = tpu.matmul %15, %17, %cst_22 {dimension_numbers = #tpu.dot_dimension_numbers<[1], [0], [0], [1], [0, 0, 1, 1], [], []>} : vector<16x128xbf16>, vector<128x128xbf16>, vector<16x128xf32> -> vector<16x128xf32>
    %19 = arith.addf %14, %18 : vector<16x128xf32>
    %c3 = arith.constant 3 : index
    %c0_23 = arith.constant 0 : index
    %20 = vector.load %arg7[%c3, %c0_23] : memref<24x128xbf16, #tpu.memory_space<vmem>>, vector<16x128xbf16>
    %c3_24 = arith.constant 3 : index
    %c0_25 = arith.constant 0 : index
    %c0_26 = arith.constant 0 : index
    %21 = vector.load %arg4[%c3_24, %c0_25, %c0_26] : memref<8x128x128xbf16, #tpu.memory_space<vmem>>, vector<1x128x128xbf16>
    %22 = vector.shape_cast %21 : vector<1x128x128xbf16> to vector<128x128xbf16>
    %cst_27 = arith.constant dense<0.000000e+00> : vector<16x128xf32>
    %23 = tpu.matmul %20, %22, %cst_27 {dimension_numbers = #tpu.dot_dimension_numbers<[1], [0], [0], [1], [0, 0, 1, 1], [], []>} : vector<16x128xbf16>, vector<128x128xbf16>, vector<16x128xf32> -> vector<16x128xf32>
    %24 = arith.addf %19, %23 : vector<16x128xf32>
    %c4 = arith.constant 4 : index
    %c0_28 = arith.constant 0 : index
    %25 = vector.load %arg7[%c4, %c0_28] : memref<24x128xbf16, #tpu.memory_space<vmem>>, vector<16x128xbf16>
    %c4_29 = arith.constant 4 : index
    %c0_30 = arith.constant 0 : index
    %c0_31 = arith.constant 0 : index
    %26 = vector.load %arg4[%c4_29, %c0_30, %c0_31] : memref<8x128x128xbf16, #tpu.memory_space<vmem>>, vector<1x128x128xbf16>
    %27 = vector.shape_cast %26 : vector<1x128x128xbf16> to vector<128x128xbf16>
    %cst_32 = arith.constant dense<0.000000e+00> : vector<16x128xf32>
    %28 = tpu.matmul %25, %27, %cst_32 {dimension_numbers = #tpu.dot_dimension_numbers<[1], [0], [0], [1], [0, 0, 1, 1], [], []>} : vector<16x128xbf16>, vector<128x128xbf16>, vector<16x128xf32> -> vector<16x128xf32>
    %29 = arith.addf %24, %28 : vector<16x128xf32>
    %c5 = arith.constant 5 : index
    %c0_33 = arith.constant 0 : index
    %30 = vector.load %arg7[%c5, %c0_33] : memref<24x128xbf16, #tpu.memory_space<vmem>>, vector<16x128xbf16>
    %c5_34 = arith.constant 5 : index
    %c0_35 = arith.constant 0 : index
    %c0_36 = arith.constant 0 : index
    %31 = vector.load %arg4[%c5_34, %c0_35, %c0_36] : memref<8x128x128xbf16, #tpu.memory_space<vmem>>, vector<1x128x128xbf16>
    %32 = vector.shape_cast %31 : vector<1x128x128xbf16> to vector<128x128xbf16>
    %cst_37 = arith.constant dense<0.000000e+00> : vector<16x128xf32>
    %33 = tpu.matmul %30, %32, %cst_37 {dimension_numbers = #tpu.dot_dimension_numbers<[1], [0], [0], [1], [0, 0, 1, 1], [], []>} : vector<16x128xbf16>, vector<128x128xbf16>, vector<16x128xf32> -> vector<16x128xf32>
    %34 = arith.addf %29, %33 : vector<16x128xf32>
    %c6 = arith.constant 6 : index
    %c0_38 = arith.constant 0 : index
    %35 = vector.load %arg7[%c6, %c0_38] : memref<24x128xbf16, #tpu.memory_space<vmem>>, vector<16x128xbf16>
    %c6_39 = arith.constant 6 : index
    %c0_40 = arith.constant 0 : index
    %c0_41 = arith.constant 0 : index
    %36 = vector.load %arg4[%c6_39, %c0_40, %c0_41] : memref<8x128x128xbf16, #tpu.memory_space<vmem>>, vector<1x128x128xbf16>
    %37 = vector.shape_cast %36 : vector<1x128x128xbf16> to vector<128x128xbf16>
    %cst_42 = arith.constant dense<0.000000e+00> : vector<16x128xf32>
    %38 = tpu.matmul %35, %37, %cst_42 {dimension_numbers = #tpu.dot_dimension_numbers<[1], [0], [0], [1], [0, 0, 1, 1], [], []>} : vector<16x128xbf16>, vector<128x128xbf16>, vector<16x128xf32> -> vector<16x128xf32>
    %39 = arith.addf %34, %38 : vector<16x128xf32>
    %c7 = arith.constant 7 : index
    %c0_43 = arith.constant 0 : index
    %40 = vector.load %arg7[%c7, %c0_43] : memref<24x128xbf16, #tpu.memory_space<vmem>>, vector<16x128xbf16>
    %c7_44 = arith.constant 7 : index
    %c0_45 = arith.constant 0 : index
    %c0_46 = arith.constant 0 : index
    %41 = vector.load %arg4[%c7_44, %c0_45, %c0_46] : memref<8x128x128xbf16, #tpu.memory_space<vmem>>, vector<1x128x128xbf16>
    %42 = vector.shape_cast %41 : vector<1x128x128xbf16> to vector<128x128xbf16>
    %cst_47 = arith.constant dense<0.000000e+00> : vector<16x128xf32>
    %43 = tpu.matmul %40, %42, %cst_47 {dimension_numbers = #tpu.dot_dimension_numbers<[1], [0], [0], [1], [0, 0, 1, 1], [], []>} : vector<16x128xbf16>, vector<128x128xbf16>, vector<16x128xf32> -> vector<16x128xf32>
    %44 = arith.addf %39, %43 : vector<16x128xf32>
    %c0_48 = arith.constant 0 : index
    %c0_49 = arith.constant 0 : index
    %45 = vector.load %arg5[%c0_48, %c0_49] : memref<1x128xf32, #tpu.memory_space<vmem>>, vector<1x128xf32>
    %46 = vector.broadcast %45 : vector<1x128xf32> to vector<16x128xf32>
    %47 = arith.addf %44, %46 : vector<16x128xf32>
    %cst_50 = arith.constant 0.000000e+00 : f32
    %48 = vector.broadcast %cst_50 : f32 to vector<16x128xf32>
    %49 = arith.maximumf %47, %48 : vector<16x128xf32>
    %50 = tpu.iota {dimensions = array<i32: 0>} : vector<16x1xi32>
    %c16_i32 = arith.constant 16 : i32
    %51 = arith.muli %arg1, %c16_i32 : i32
    %52 = vector.broadcast %51 : i32 to vector<16x1xi32>
    %53 = arith.addi %50, %52 : vector<16x1xi32>
    %c1_i32 = arith.constant 1 : i32
    %54 = vector.broadcast %c1_i32 : i32 to vector<16x1xi32>
    %55 = arith.cmpi sge, %53, %54 : vector<16x1xi32>
    %c8_i32 = arith.constant 8 : i32
    %56 = vector.broadcast %c8_i32 : i32 to vector<16x1xi32>
    %57 = arith.cmpi sle, %53, %56 : vector<16x1xi32>
    %58 = arith.andi %55, %57 : vector<16x1xi1>
    %cst_51 = arith.constant 0.000000e+00 : f32
    %59 = vector.shape_cast %58 : vector<16x1xi1> to vector<16x1xi1>
    %60 = vector.broadcast %59 : vector<16x1xi1> to vector<16x128xi1>
    %61 = vector.broadcast %cst_51 : f32 to vector<16x128xf32>
    %62 = arith.select %60, %49, %61 : vector<16x128xi1>, vector<16x128xf32>
    %c0_52 = arith.constant 0 : index
    %c0_53 = arith.constant 0 : index
    %63 = vector.load %arg8[%c0_52, %c0_53] : memref<16x128xf32, #tpu.memory_space<vmem>>, vector<16x128xf32>
    tpu.vector_store %arg8[%c0_52, %c0_53], %62 {strides = array<i32>} : memref<16x128xf32, #tpu.memory_space<vmem>>, vector<16x128xf32>,
    %c0_54 = arith.constant 0 : index
    %c0_55 = arith.constant 0 : index
    %64 = tpu.strided_load %arg8[%c0_54, %c0_55] {strides = array<i32: 2, 1>} : memref<16x128xf32, #tpu.memory_space<vmem>>, vector<8x128xf32>
    %c1_56 = arith.constant 1 : index
    %c0_57 = arith.constant 0 : index
    %65 = tpu.strided_load %arg8[%c1_56, %c0_57] {strides = array<i32: 2, 1>} : memref<16x128xf32, #tpu.memory_space<vmem>>, vector<8x128xf32>
    %66 = arith.maximumf %64, %65 : vector<8x128xf32>
    %c0_58 = arith.constant 0 : index
    %c0_59 = arith.constant 0 : index
    %c0_60 = arith.constant 0 : index
    %67 = vector.load %arg6[%c0_58, %c0_59, %c0_60] : memref<1x8x128xf32, #tpu.memory_space<vmem>>, vector<1x8x128xf32>
    %68 = vector.shape_cast %67 : vector<1x8x128xf32> to vector<8x128xf32>
    %69 = vector.shape_cast %66 : vector<8x128xf32> to vector<1x8x128xf32>
    tpu.vector_store %arg6[%c0_58, %c0_59, %c0_60], %69 {strides = array<i32>} : memref<1x8x128xf32, #tpu.memory_space<vmem>>, vector<1x8x128xf32>,
    return
  }
  func.func @transform_0(%arg0: i32, %arg1: i32) -> (i32, i32, i32) {
    %c0_i32 = arith.constant 0 : i32
    %c0_i32_0 = arith.constant 0 : i32
    return %arg0, %arg1, %c0_i32 : i32, i32, i32
  }
  func.func @transform_1(%arg0: i32, %arg1: i32) -> (i32, i32, i32) {
    %c1_i32 = arith.constant 1 : i32
    %0 = arith.addi %arg1, %c1_i32 : i32
    %c2_i32 = arith.constant 2 : i32
    %1 = arith.muli %0, %c2_i32 : i32
    %c0_i32 = arith.constant 0 : i32
    %c0_i32_0 = arith.constant 0 : i32
    return %arg0, %1, %c0_i32 : i32, i32, i32
  }
  func.func @transform_2(%arg0: i32, %arg1: i32) -> (i32, i32, i32) {
    %c0_i32 = arith.constant 0 : i32
    %c0_i32_0 = arith.constant 0 : i32
    %c0_i32_1 = arith.constant 0 : i32
    %c0_i32_2 = arith.constant 0 : i32
    return %c0_i32, %c0_i32_0, %c0_i32_1 : i32, i32, i32
  }
  func.func @transform_3(%arg0: i32, %arg1: i32) -> (i32, i32) {
    %c0_i32 = arith.constant 0 : i32
    %c0_i32_0 = arith.constant 0 : i32
    %c0_i32_1 = arith.constant 0 : i32
    return %c0_i32, %c0_i32_0 : i32, i32
  }
  func.func @transform_4(%arg0: i32, %arg1: i32) -> (i32, i32, i32) {
    %c0_i32 = arith.constant 0 : i32
    %c0_i32_0 = arith.constant 0 : i32
    return %arg0, %arg1, %c0_i32 : i32, i32, i32
  }
}

</mosaic_0001>

<llo_original>
// kernel: output_encoder_forward.3
$region0: #{output_encoder_forward.3}
  #allocation0 [shape = 'u32[]', space=smem, size = 0x4, offset = 0x4, fixed_abs, tag = 'smem constant byte address 0x4 - core index']
  #allocation1 [shape = 'u32[144,128]{1,0:T(1,128)}', space=vmem, size = 0x12000, scoped, tag = 'internal scratch']
  #allocation2 [shape = 'bf16[40,32]{1,0:T(8,128)(2,1)}', space=vmem, size = 0x2800, scoped, tag = 'scratch operand']
  #allocation3 [shape = 'f32[32,128]{1,0:T(8,128)}', space=vmem, size = 0x4000, scoped, tag = 'scratch operand']
  %s0 = inlined_call_operand.vmem [shape: bf16[2,64,32], index: 0, kind: input, shape index: {}, may-alias: {0,1}]
  %s1 = inlined_call_operand.vmem [shape: bf16[2,64,32], index: 1, kind: input, shape index: {}, may-alias: {0,1}]
  %s2 = inlined_call_operand.vmem [shape: bf16[1,32,128], index: 2, kind: input, shape index: {}]
  %s3 = inlined_call_operand.vmem [shape: f32[1,128], index: 3, kind: input, shape index: {}]
  %s4 = inlined_call_operand.vmem [shape: f32[2,16,128], index: 4, kind: output, shape index: {}]
  %s5 = sld [smem:[#allocation0]]
  $region49: #{output_encoder_forward.3} parent=0
    _
  %s7 = ssub.s32 1, %s5
  %s8 = scalar_select 0, %s7, %s5
  loop: start=0, step=1, limit=4
  $region2: #{output_encoder_forward.3} parent=0 // loop_pre_header
    _
  $region3: #{output_encoder_forward.3} parent=0 // loop_header
    %s10 = sphi 0, %s14
    %p11 = scmp.ge.s32.totalorder %s10, 4
    %s17 = sphi 0, %s29
    %s18 = sphi 0, %s25
    %s19 = sphi 0, %s17
    %s20 = sphi 0, %s18
    %s21 = sphi 0, %s19
    %s22 = sphi 0, %s20
    %s34 = sphi 0, %s36
    %s37 = sphi 0, %s34
    %s38 = sphi 0, %s37
    %s54 = sphi 0, %s38
    %s66 = sphi 0, %s68
    %s69 = sphi 0, %s66
    %s70 = sphi 0, %s69
    %s86 = sphi 0, %s70
    %s90 = sphi 0, %s90
    %s92 = sphi 0, %s90
    %s93 = sphi 0, %s92
    %s107 = sphi 0, %s93
    %s111 = sphi 0, %s111
    %s113 = sphi 0, %s111
    %s114 = sphi 0, %s113
    %s128 = sphi 0, %s114
    %s136 = sphi 0, %s138
    %s139 = sphi 0, %s136
    %s140 = sphi 0, %s139
    %s156 = sphi 0, %s140
  $region4: #{output_encoder_forward.3} parent=0 // loop_header_branch
    %13 = sbr.rel (%p11) target = $region8
  $region5: #{output_encoder_forward.3} parent=0 // loop_body
    %s15 = ssub.s32 %s10, 1
    %s16 = ssub.s32 %s10, 2
    %s23 = sadd.s32 1, %s18
    %p24 = scmp.ge.s32.totalorder %s23, 1
    %s25 = scalar_select %p24, 0, %s23
    %s26 = sadd.s32 1, %s17
    %s27 = scalar_select %p24, %s26, %s17
    %p28 = scmp.ge.s32.totalorder %s27, 2
    %s29 = scalar_select %p28, 0, %s27
    %s30 = ssub.s32 %s17, %s29
    %s31 = ssub.s32 %s18, %s25
    %s32 = sor.u32 %s30, %s31
    %p33 = scmp.eq.s32.totalorder %s32, 0
    %s35 = sadd.s32 %s34, 1
    %s36 = scalar_select %p33, %s34, %s35
    %p39 = pneg %p33
    %p40 = scmp.eq.s32.totalorder %s10, 1
    %p41 = por %p39, %p40
    %p42 = scmp.ne.s32.totalorder %s34, %s37
    %p43 = scmp.eq.s32.totalorder %s10, 0
    %p44 = por %p42, %p43
    %p45 = scmp.ne.s32.totalorder %s34, %s37
    %p46 = scmp.eq.s32.totalorder %s15, 1
    %p47 = por %p45, %p46
    %p48 = scmp.ne.s32.totalorder %s37, %s38
    %p49 = scmp.eq.s32.totalorder %s15, 0
    %p50 = por %p48, %p49
    %p51 = scmp.ne.s32.totalorder %s37, %s38
    %p52 = scmp.eq.s32.totalorder %s16, 1
    %p53 = por %p51, %p52
    %p55 = scmp.ne.s32.totalorder %s38, %s54
    %p56 = scmp.eq.s32.totalorder %s16, 0
    %p57 = por %p55, %p56
    %s58 = sadd.s32 %s18, 1
    %s59 = smul.u32 %s58, 4
    %s60 = sadd.s32 %s25, 1
    %s61 = smul.u32 %s60, 4
    %s62 = ssub.s32 %s17, %s29
    %s63 = ssub.s32 %s59, %s61
    %s64 = sor.u32 %s62, %s63
    %p65 = scmp.eq.s32.totalorder %s64, 0
    %s67 = sadd.s32 %s66, 1
    %s68 = scalar_select %p65, %s66, %s67
    %p71 = pneg %p65
    %p72 = scmp.eq.s32.totalorder %s10, 1
    %p73 = por %p71, %p72
    %p74 = scmp.ne.s32.totalorder %s66, %s69
    %p75 = scmp.eq.s32.totalorder %s10, 0
    %p76 = por %p74, %p75
    %p77 = scmp.ne.s32.totalorder %s66, %s69
    %p78 = scmp.eq.s32.totalorder %s15, 1
    %p79 = por %p77, %p78
    %p80 = scmp.ne.s32.totalorder %s69, %s70
    %p81 = scmp.eq.s32.totalorder %s15, 0
    %p82 = por %p80, %p81
    %p83 = scmp.ne.s32.totalorder %s69, %s70
    %p84 = scmp.eq.s32.totalorder %s16, 1
    %p85 = por %p83, %p84
    %p87 = scmp.ne.s32.totalorder %s70, %s86
    %p88 = scmp.eq.s32.totalorder %s16, 0
    %p89 = por %p87, %p88
    %s91 = sadd.s32 %s90, 1
    %p94 = scmp.eq.s32.totalorder %s10, 1
    %p95 = scmp.ne.s32.totalorder %s90, %s92
    %p96 = scmp.eq.s32.totalorder %s10, 0
    %p97 = por %p95, %p96
    %p98 = scmp.ne.s32.totalorder %s90, %s92
    %p99 = scmp.eq.s32.totalorder %s15, 1
    %p100 = por %p98, %p99
    %p101 = scmp.ne.s32.totalorder %s92, %s93
    %p102 = scmp.eq.s32.totalorder %s15, 0
    %p103 = por %p101, %p102
    %p104 = scmp.ne.s32.totalorder %s92, %s93
    %p105 = scmp.eq.s32.totalorder %s16, 1
    %p106 = por %p104, %p105
    %p108 = scmp.ne.s32.totalorder %s93, %s107
    %p109 = scmp.eq.s32.totalorder %s16, 0
    %p110 = por %p108, %p109
    %s112 = sadd.s32 %s111, 1
    %p115 = scmp.eq.s32.totalorder %s10, 1
    %p116 = scmp.ne.s32.totalorder %s111, %s113
    %p117 = scmp.eq.s32.totalorder %s10, 0
    %p118 = por %p116, %p117
    %p119 = scmp.ne.s32.totalorder %s111, %s113
    %p120 = scmp.eq.s32.totalorder %s15, 1
    %p121 = por %p119, %p120
    %p122 = scmp.ne.s32.totalorder %s113, %s114
    %p123 = scmp.eq.s32.totalorder %s15, 0
    %p124 = por %p122, %p123
    %p125 = scmp.ne.s32.totalorder %s113, %s114
    %p126 = scmp.eq.s32.totalorder %s16, 1
    %p127 = por %p125, %p126
    %p129 = scmp.ne.s32.totalorder %s114, %s128
    %p130 = scmp.eq.s32.totalorder %s16, 0
    %p131 = por %p129, %p130
    %s132 = ssub.s32 %s17, %s29
    %s133 = ssub.s32 %s18, %s25
    %s134 = sor.u32 %s132, %s133
    %p135 = scmp.eq.s32.totalorder %s134, 0
    %s137 = sadd.s32 %s136, 1
    %s138 = scalar_select %p135, %s136, %s137
    %p141 = pneg %p135
    %p142 = scmp.eq.s32.totalorder %s10, 1
    %p143 = por %p141, %p142
    %p144 = scmp.ne.s32.totalorder %s136, %s139
    %p145 = scmp.eq.s32.totalorder %s10, 0
    %p146 = por %p144, %p145
    %p147 = scmp.ne.s32.totalorder %s136, %s139
    %p148 = scmp.eq.s32.totalorder %s15, 1
    %p149 = por %p147, %p148
    %p150 = scmp.ne.s32.totalorder %s139, %s140
    %p151 = scmp.eq.s32.totalorder %s15, 0
    %p152 = por %p150, %p151
    %p153 = scmp.ne.s32.totalorder %s139, %s140
    %p154 = scmp.eq.s32.totalorder %s16, 1
    %p155 = por %p153, %p154
    %p157 = scmp.ne.s32.totalorder %s140, %s156
    %p158 = scmp.eq.s32.totalorder %s16, 0
    %p159 = por %p157, %p158
    %p160 = scmp.le.s32.totalorder 1, %s10
    %p161 = scmp.lt.s32.totalorder %s10, 3
    %p162 = pnand %p160, %p161
    %p163 = pneg %p162
    // Predicated region
    $region9: #{output_encoder_forward.3} parent=5 // pred_check
      _
    $region10: #{output_encoder_forward.3} parent=5 // pred_check_branch
      %165 = sbr.rel (%p162) target = $region12
    $region11: #{output_encoder_forward.3} parent=5 // pred_region
      %s166 = ssub.s32 %s10, 1
      // Predicated region
      $region13: #{output_encoder_forward.3} parent=11 // pred_check
        %p167 = pneg %p103
      $region14: #{output_encoder_forward.3} parent=11 // pred_check_branch
        %169 = sbr.rel (%p167) target = $region16
      $region15: #{output_encoder_forward.3} parent=11 // pred_region
        _
      $region16: #{output_encoder_forward.3} parent=11 // pred_fallthru
        _
      // Predicated region
      $region17: #{output_encoder_forward.3} parent=11 // pred_check
        %p170 = pneg %p124
      $region18: #{output_encoder_forward.3} parent=11 // pred_check_branch
        %172 = sbr.rel (%p170) target = $region20
      $region19: #{output_encoder_forward.3} parent=11 // pred_region
        _
      $region20: #{output_encoder_forward.3} parent=11 // pred_fallthru
        _
    $region12: #{output_encoder_forward.3} parent=5 // pred_fallthru
      _
    %p173 = scmp.lt.s32.totalorder %s10, 2
    // Predicated region
    $region21: #{output_encoder_forward.3} parent=5 // pred_check
      %p174 = pneg %p173
    $region22: #{output_encoder_forward.3} parent=5 // pred_check_branch
      %176 = sbr.rel (%p174) target = $region24
    $region23: #{output_encoder_forward.3} parent=5 // pred_region
      // Predicated region
      $region25: #{output_encoder_forward.3} parent=23 // pred_check
        %p177 = pneg %p44
      $region26: #{output_encoder_forward.3} parent=23 // pred_check_branch
        %179 = sbr.rel (%p177) target = $region28
      $region27: #{output_encoder_forward.3} parent=23 // pred_region
        %s180 = smul.u32 4, %s18
        %p181 = scmp.lt.s32.totalorder %s17, 1
        %s182 = scalar_select %p181, %s17, 1
        %p183 = scmp.lt.s32.totalorder %s180, 7
        %s184 = scalar_select %p183, %s180, 7
        %s185 = smul.addr %s182, 8
        %s186 = sadd.s32 %s184, %s185
        %s187 = smul.addr %s186, 4
        %s188 = scalar_lea.vmem %s0, %s187
        %s189 = smul.u32 4, %s18
      $region28: #{output_encoder_forward.3} parent=23 // pred_fallthru
        _
      // Predicated region
      $region29: #{output_encoder_forward.3} parent=23 // pred_check
        %p190 = pneg %p76
      $region30: #{output_encoder_forward.3} parent=23 // pred_check_branch
        %192 = sbr.rel (%p190) target = $region32
      $region31: #{output_encoder_forward.3} parent=23 // pred_region
        %s193 = sadd.s32 %s18, 1
        %s194 = smul.u32 %s193, 4
        %p195 = scmp.lt.s32.totalorder %s17, 1
        %s196 = scalar_select %p195, %s17, 1
        %p197 = scmp.lt.s32.totalorder %s194, 7
        %s198 = scalar_select %p197, %s194, 7
        %s199 = smul.addr %s196, 8
        %s200 = sadd.s32 %s198, %s199
        %s201 = smul.addr %s200, 4
        %s202 = scalar_lea.vmem %s1, %s201
        %s203 = sadd.s32 %s18, 1
        %s204 = smul.u32 %s203, 4
      $region32: #{output_encoder_forward.3} parent=23 // pred_fallthru
        _
    $region24: #{output_encoder_forward.3} parent=5 // pred_fallthru
      _
    %p205 = scmp.le.s32.totalorder 1, %s10
    %p206 = scmp.lt.s32.totalorder %s10, 3
    %p207 = pnand %p205, %p206
    %p208 = pneg %p207
    // Predicated region
    $region33: #{output_encoder_forward.3} parent=5 // pred_check
      _
    $region34: #{output_encoder_forward.3} parent=5 // pred_check_branch
      %210 = sbr.rel (%p207) target = $region36
    $region35: #{output_encoder_forward.3} parent=5 // pred_region
      %s211 = ssub.s32 %s10, 1
      %s212 = smul.u32 4, %s20
      %p213 = scmp.lt.s32.totalorder %s19, 1
      %s214 = scalar_select %p213, %s19, 1
      %p215 = scmp.lt.s32.totalorder %s212, 7
      %s216 = scalar_select %p215, %s212, 7
      %s217 = smul.addr %s214, 8
      %s218 = sadd.s32 %s216, %s217
      %s219 = smul.addr %s218, 4
      %s220 = scalar_lea.vmem %s0, %s219
      %p221 = pneg %p50
      %p222 = pneg %p47
      %s223 = sadd.s32 %s20, 1
      %s224 = smul.u32 %s223, 4
      %p225 = scmp.lt.s32.totalorder %s19, 1
      %s226 = scalar_select %p225, %s19, 1
      %p227 = scmp.lt.s32.totalorder %s224, 7
      %s228 = scalar_select %p227, %s224, 7
      %s229 = smul.addr %s226, 8
      %s230 = sadd.s32 %s228, %s229
      %s231 = smul.addr %s230, 4
      %s232 = scalar_lea.vmem %s1, %s231
      %p233 = pneg %p82
      %p234 = pneg %p79
      %p235 = pneg %p103
      %p236 = pneg %p100
      %p237 = pneg %p124
      %p238 = pneg %p121
      %p239 = pneg %p152
      %p240 = pneg %p149
      %s241 = smul.u32 2, %s20
      %p242 = scmp.lt.s32.totalorder %s19, 1
      %s243 = scalar_select %p242, %s19, 1
      %p244 = scmp.lt.s32.totalorder %s241, 1
      %s245 = scalar_select %p244, %s241, 1
      %s246 = smul.addr %s243, 2
      %s247 = sadd.s32 %s245, %s246
      %s248 = smul.addr %s247, 8
      %s249 = scalar_lea.vmem %s4, %s248
      %s250 = smul.u32 4, %s20
      %p251 = scmp.lt.s32.totalorder %s19, 1
      %s252 = scalar_select %p251, %s19, 1
      %p253 = scmp.lt.s32.totalorder %s250, 7
      %s254 = scalar_select %p253, %s250, 7
      %s255 = smul.addr %s252, 8
      %s256 = sadd.s32 %s254, %s255
      %s257 = smul.addr %s256, 4
      %s258 = scalar_lea.vmem %s0, %s257
      %s259 = smul.u32 4, %s20
      %s260 = sadd.s32 %s20, 1
      %s261 = smul.u32 %s260, 4
      %p262 = scmp.lt.s32.totalorder %s19, 1
      %s263 = scalar_select %p262, %s19, 1
      %p264 = scmp.lt.s32.totalorder %s261, 7
      %s265 = scalar_select %p264, %s261, 7
      %s266 = smul.addr %s263, 8
      %s267 = sadd.s32 %s265, %s266
      %s268 = smul.addr %s267, 4
      %s269 = scalar_lea.vmem %s1, %s268
      %s270 = sadd.s32 %s20, 1
      %s271 = smul.u32 %s270, 4
      %s272 = smul.u32 2, %s20
      %p273 = scmp.lt.s32.totalorder %s19, 1
      %s274 = scalar_select %p273, %s19, 1
      %p275 = scmp.lt.s32.totalorder %s272, 1
      %s276 = scalar_select %p275, %s272, 1
      %s277 = smul.addr %s274, 2
      %s278 = sadd.s32 %s276, %s277
      %s279 = smul.addr %s278, 8
      %s280 = scalar_lea.vmem %s4, %s279
      %s281 = smul.u32 2, %s20
      %v283 = vld [vmem:[%s258] sm:$0xf]
      %v284 = vld [vmem:[%s258 + $0x4] sm:$0xf]
      %v285 = vld [vmem:[%s258 + $0x8] sm:$0xf]
      %v286 = vld [vmem:[%s258 + $0xc] sm:$0xf]
      %v287 = vld [vmem:[%s2] sm:$0xf]
      %v288 = vld [vmem:[%s2 + $0x4] sm:$0xf]
      %v289 = vld [vmem:[%s2 + $0x8] sm:$0xf]
      %v290 = vld [vmem:[%s2 + $0xc] sm:$0xf]
      %v291 = vld [vmem:[%s3] sm:$0x1]
      %v293 = vlaneseq
      %v294 = vshrl.u32 %v293, 7
      %v295 = vsub.s32 0, %v294
      %v296 = vrot.slane %v291, %v295
      %v302 = vunpack.c.l.b16 %v283
      %v303 = vunpack.c.l.b16 %v284
      %v304 = vunpack.c.l.b16 %v285
      %v305 = vunpack.c.l.b16 %v286
      %v306 = vpack.c.b16 %v303, %v302
      %v307 = vpack.c.b16 %v305, %v304
      %v312 = vunpack.c.l.b16 %v287
      %v313 = vunpack.c.l.b16 %v288
      %v314 = vunpack.c.l.b16 %v289
      %v315 = vunpack.c.l.b16 %v290
      %v316 = vpack.c.b16 %v313, %v312
      %v317 = vpack.c.b16 %v315, %v314
      %vm320 = vcmask 261120
      %v322 = vsel %vm320, %v306, 0
      %v325 = vsel %vm320, %v307, 0
      %327 = vmatprep.subr.bf16.mxu0 0
      %328 = vmatpush1.bf16.msra.mxu0 0
      %329 = vmatprep.subr.bf16.mxu0 0
      %330 = vmatpush1.bf16.msra.mxu0 0
      %331 = vmatprep.subr.bf16.mxu0 0
      %332 = vmatpush1.bf16.msra.mxu0 0
      %333 = vmatprep.subr.bf16.mxu0 0
      %334 = vmatpush1.bf16.msra.mxu0 0
      %335 = vmatprep.subr.bf16.mxu0 0
      %336 = vmatpush1.bf16.msra.mxu0 0
      %337 = vmatprep.subr.bf16.mxu0 0
      %338 = vmatpush1.bf16.msra.mxu0 0
      %339 = vmatprep.subr.bf16.mxu0 0
      %340 = vmatpush1.bf16.msra.mxu0 %v317
      %341 = vmatprep.subr.bf16.mxu0 0
      %342 = vmatpush1.bf16.msra.mxu0 %v316
      %343 = vmatprep.subr.bf16.mxu0 0
      %344 = vmatpush2.bf16.msra.mxu0 0
      %345 = vmatprep.subr.bf16.mxu0 0
      %346 = vmatpush2.bf16.msra.mxu0 0
      %347 = vmatprep.subr.bf16.mxu0 0
      %348 = vmatpush2.bf16.msra.mxu0 0
      %349 = vmatprep.subr.bf16.mxu0 0
      %350 = vmatpush2.bf16.msra.mxu0 0
      %351 = vmatprep.subr.bf16.mxu0 0
      %352 = vmatpush2.bf16.msra.mxu0 0
      %353 = vmatprep.subr.bf16.mxu0 0
      %354 = vmatpush2.bf16.msra.mxu0 0
      %355 = vmatprep.subr.bf16.mxu0 0
      %356 = vmatpush2.bf16.msra.mxu0 0
      %357 = vmatprep.subr.bf16.mxu0 0
      %358 = vmatpush2.bf16.msra.mxu0 0
      %359 = vmatprep.mubr.bf16.mxu0 0
      %360 = vmatmul.mubr.bf16.gmra.mxu0 %v322
      %v361 = vpop.f32.mrf.mxu0
      %v362 = vadd.f32 %v296, %v361
      %v363 = vpop.f32.mrf.mxu0
      %v364 = vpop.f32.mrf.mxu0
      %v365 = vadd.f32 %v296, %v364
      %v366 = vpop.f32.mrf.mxu0
      %367 = vmatprep.mubr.bf16.mxu0 0
      %368 = vmatmul.mubr.bf16.gmra.mxu0 %v325
      %v369 = vpop.f32.mrf.mxu0
      %v370 = vadd.f32 %v296, %v369
      %v371 = vpop.f32.mrf.mxu0
      %v372 = vpop.f32.mrf.mxu0
      %v373 = vadd.f32 %v296, %v372
      %v374 = vpop.f32.mrf.mxu0
      %375 = vdwg.mxu0
      %v376 = vmax.f32 %v362, 0.0
      %v377 = vmax.f32 %v365, 0.0
      %v378 = vmax.f32 %v370, 0.0
      %v379 = vmax.f32 %v373, 0.0
      %v380 = vlaneseq
      %v381 = vshrl.u32 %v380, 7
      %v382 = vadd.s32 %v381, 8
      %v383 = vadd.s32 %v381, 16
      %v384 = vadd.s32 %v381, 24
      %s385 = smul.u32 %s20, 32
      %v386 = vstv %s385
      %v387 = vadd.s32 %v381, %v386
      %v388 = vadd.s32 %v382, %v386
      %v389 = vadd.s32 %v383, %v386
      %v390 = vadd.s32 %v384, %v386
      %vm391 = vcmp.ge.s32.totalorder %v387, 1
      %vm392 = vcmp.ge.s32.totalorder %v388, 1
      %vm393 = vcmp.ge.s32.totalorder %v389, 1
      %vm394 = vcmp.ge.s32.totalorder %v390, 1
      %vm395 = vcmp.le.s32.totalorder %v387, 22
      %vm396 = vcmp.le.s32.totalorder %v388, 22
      %vm397 = vcmp.le.s32.totalorder %v389, 22
      %vm398 = vcmp.le.s32.totalorder %v390, 22
      %vm399 = vmand %vm391, %vm395
      %vm400 = vmand %vm392, %vm396
      %vm401 = vmand %vm393, %vm397
      %vm402 = vmand %vm394, %vm398
      %v403 = vsel %vm399, 1, 0
      %v404 = vsel %vm400, 1, 0
      %v405 = vsel %vm401, 1, 0
      %v406 = vsel %vm402, 1, 0
      %vm407 = vcmp.eq.s32.totalorder %v403, 1
      %vm408 = vcmp.eq.s32.totalorder %v404, 1
      %vm409 = vcmp.eq.s32.totalorder %v405, 1
      %vm410 = vcmp.eq.s32.totalorder %v406, 1
      %v411 = vsel %vm407, %v376, 0.0
      %v412 = vsel %vm408, %v377, 0.0
      %v413 = vsel %vm409, %v378, 0.0
      %v414 = vsel %vm410, %v379, 0.0
      %415 = vst [vmem:[#allocation3] sm:$0xff] %v411
      %416 = vst [vmem:[#allocation3 + $0x8] sm:$0xff] %v412
      %417 = vst [vmem:[#allocation3 + $0x10] sm:$0xff] %v413
      %418 = vst [vmem:[#allocation3 + $0x18] sm:$0xff] %v414
      %v419 = vld [vmem:[#allocation3] ss:$2 sm:$0xff]
      %s420 = scalar_lea.vmem [#allocation3], 16
      %v421 = vld [vmem:[%s420] ss:$2 sm:$0xff]
      %s422 = scalar_lea.vmem [#allocation3], 1
      %v423 = vld [vmem:[%s422] ss:$2 sm:$0xff]
      %s424 = scalar_lea.vmem [#allocation3], 17
      %v425 = vld [vmem:[%s424] ss:$2 sm:$0xff]
      %v426 = vmax.f32 %v419, %v423
      %v427 = vmax.f32 %v421, %v425
      %428 = vst [vmem:[%s280] sm:$0xff] %v426
      %429 = vst [vmem:[%s280 + $0x8] sm:$0xff] %v427
      %s430 = smul.u32 2, %s20
      %p431 = scmp.lt.s32.totalorder %s19, 1
      %s432 = scalar_select %p431, %s19, 1
      %p433 = scmp.lt.s32.totalorder %s430, 1
      %s434 = scalar_select %p433, %s430, 1
      %s435 = smul.addr %s432, 2
      %s436 = sadd.s32 %s434, %s435
      %s437 = smul.addr %s436, 8
      %s438 = scalar_lea.vmem %s4, %s437
      // Predicated region
      $region37: #{output_encoder_forward.3} parent=35 // pred_check
        %p439 = pneg %p149
      $region38: #{output_encoder_forward.3} parent=35 // pred_check_branch
        %441 = sbr.rel (%p439) target = $region40
      $region39: #{output_encoder_forward.3} parent=35 // pred_region
        %s442 = smul.u32 2, %s20
      $region40: #{output_encoder_forward.3} parent=35 // pred_fallthru
        _
    $region36: #{output_encoder_forward.3} parent=5 // pred_fallthru
      _
    %p443 = scmp.le.s32.totalorder 2, %s10
    // Predicated region
    $region41: #{output_encoder_forward.3} parent=5 // pred_check
      %p444 = pneg %p443
    $region42: #{output_encoder_forward.3} parent=5 // pred_check_branch
      %446 = sbr.rel (%p444) target = $region44
    $region43: #{output_encoder_forward.3} parent=5 // pred_region
      %s447 = ssub.s32 %s10, 2
      // Predicated region
      $region45: #{output_encoder_forward.3} parent=43 // pred_check
        %p448 = pneg %p155
      $region46: #{output_encoder_forward.3} parent=43 // pred_check_branch
        %450 = sbr.rel (%p448) target = $region48
      $region47: #{output_encoder_forward.3} parent=43 // pred_region
        %s451 = smul.u32 2, %s22
        %p452 = scmp.lt.s32.totalorder %s21, 1
        %s453 = scalar_select %p452, %s21, 1
        %p454 = scmp.lt.s32.totalorder %s451, 1
        %s455 = scalar_select %p454, %s451, 1
        %s456 = smul.addr %s453, 2
        %s457 = sadd.s32 %s455, %s456
        %s458 = smul.addr %s457, 8
        %s459 = scalar_lea.vmem %s4, %s458
      $region48: #{output_encoder_forward.3} parent=43 // pred_fallthru
        _
    $region44: #{output_encoder_forward.3} parent=5 // pred_fallthru
      _
  $region6: #{output_encoder_forward.3} parent=0 // loop_footer
    %s14 = sadd.s32 1, %s10
  $region7: #{output_encoder_forward.3} parent=0 // loop_footer_branch
    %9 = sbr.rel target = $region3
  $region8: #{output_encoder_forward.3} parent=0 // loop_exit
    _

// kernel: output_encoder_forward.4
$region0: #{output_encoder_forward.4}
  #allocation0 [shape = 'u32[]', space=smem, size = 0x4, offset = 0x4, fixed_abs, tag = 'smem constant byte address 0x4 - core index']
  #allocation1 [shape = 'u32[144,128]{1,0:T(1,128)}', space=vmem, size = 0x12000, scoped, tag = 'internal scratch']
  #allocation2 [shape = 'bf16[24,64]{1,0:T(8,128)(2,1)}', space=vmem, size = 0x1800, scoped, tag = 'scratch operand']
  #allocation3 [shape = 'f32[16,128]{1,0:T(8,128)}', space=vmem, size = 0x2000, scoped, tag = 'scratch operand']
  %s0 = inlined_call_operand.vmem [shape: bf16[2,32,64], index: 0, kind: input, shape index: {}, may-alias: {0,1}]
  %s1 = inlined_call_operand.vmem [shape: bf16[2,32,64], index: 1, kind: input, shape index: {}, may-alias: {0,1}]
  %s2 = inlined_call_operand.vmem [shape: bf16[8,64,128], index: 2, kind: input, shape index: {}]
  %s3 = inlined_call_operand.vmem [shape: f32[1,128], index: 3, kind: input, shape index: {}]
  %s4 = inlined_call_operand.vmem [shape: f32[2,8,128], index: 4, kind: output, shape index: {}]
  %s5 = sld [smem:[#allocation0]]
  $region49: #{output_encoder_forward.4} parent=0
    _
  %s7 = ssub.s32 1, %s5
  %s8 = scalar_select 0, %s7, %s5
  loop: start=0, step=1, limit=4
  $region2: #{output_encoder_forward.4} parent=0 // loop_pre_header
    _
  $region3: #{output_encoder_forward.4} parent=0 // loop_header
    %s10 = sphi 0, %s14
    %p11 = scmp.ge.s32.totalorder %s10, 4
    %s17 = sphi 0, %s29
    %s18 = sphi 0, %s25
    %s19 = sphi 0, %s17
    %s20 = sphi 0, %s18
    %s21 = sphi 0, %s19
    %s22 = sphi 0, %s20
    %s34 = sphi 0, %s36
    %s37 = sphi 0, %s34
    %s38 = sphi 0, %s37
    %s54 = sphi 0, %s38
    %s66 = sphi 0, %s68
    %s69 = sphi 0, %s66
    %s70 = sphi 0, %s69
    %s86 = sphi 0, %s70
    %s90 = sphi 0, %s90
    %s92 = sphi 0, %s90
    %s93 = sphi 0, %s92
    %s107 = sphi 0, %s93
    %s111 = sphi 0, %s111
    %s113 = sphi 0, %s111
    %s114 = sphi 0, %s113
    %s128 = sphi 0, %s114
    %s136 = sphi 0, %s138
    %s139 = sphi 0, %s136
    %s140 = sphi 0, %s139
    %s156 = sphi 0, %s140
  $region4: #{output_encoder_forward.4} parent=0 // loop_header_branch
    %13 = sbr.rel (%p11) target = $region8
  $region5: #{output_encoder_forward.4} parent=0 // loop_body
    %s15 = ssub.s32 %s10, 1
    %s16 = ssub.s32 %s10, 2
    %s23 = sadd.s32 1, %s18
    %p24 = scmp.ge.s32.totalorder %s23, 1
    %s25 = scalar_select %p24, 0, %s23
    %s26 = sadd.s32 1, %s17
    %s27 = scalar_select %p24, %s26, %s17
    %p28 = scmp.ge.s32.totalorder %s27, 2
    %s29 = scalar_select %p28, 0, %s27
    %s30 = ssub.s32 %s17, %s29
    %s31 = ssub.s32 %s18, %s25
    %s32 = sor.u32 %s30, %s31
    %p33 = scmp.eq.s32.totalorder %s32, 0
    %s35 = sadd.s32 %s34, 1
    %s36 = scalar_select %p33, %s34, %s35
    %p39 = pneg %p33
    %p40 = scmp.eq.s32.totalorder %s10, 1
    %p41 = por %p39, %p40
    %p42 = scmp.ne.s32.totalorder %s34, %s37
    %p43 = scmp.eq.s32.totalorder %s10, 0
    %p44 = por %p42, %p43
    %p45 = scmp.ne.s32.totalorder %s34, %s37
    %p46 = scmp.eq.s32.totalorder %s15, 1
    %p47 = por %p45, %p46
    %p48 = scmp.ne.s32.totalorder %s37, %s38
    %p49 = scmp.eq.s32.totalorder %s15, 0
    %p50 = por %p48, %p49
    %p51 = scmp.ne.s32.totalorder %s37, %s38
    %p52 = scmp.eq.s32.totalorder %s16, 1
    %p53 = por %p51, %p52
    %p55 = scmp.ne.s32.totalorder %s38, %s54
    %p56 = scmp.eq.s32.totalorder %s16, 0
    %p57 = por %p55, %p56
    %s58 = sadd.s32 %s18, 1
    %s59 = smul.u32 %s58, 2
    %s60 = sadd.s32 %s25, 1
    %s61 = smul.u32 %s60, 2
    %s62 = ssub.s32 %s17, %s29
    %s63 = ssub.s32 %s59, %s61
    %s64 = sor.u32 %s62, %s63
    %p65 = scmp.eq.s32.totalorder %s64, 0
    %s67 = sadd.s32 %s66, 1
    %s68 = scalar_select %p65, %s66, %s67
    %p71 = pneg %p65
    %p72 = scmp.eq.s32.totalorder %s10, 1
    %p73 = por %p71, %p72
    %p74 = scmp.ne.s32.totalorder %s66, %s69
    %p75 = scmp.eq.s32.totalorder %s10, 0
    %p76 = por %p74, %p75
    %p77 = scmp.ne.s32.totalorder %s66, %s69
    %p78 = scmp.eq.s32.totalorder %s15, 1
    %p79 = por %p77, %p78
    %p80 = scmp.ne.s32.totalorder %s69, %s70
    %p81 = scmp.eq.s32.totalorder %s15, 0
    %p82 = por %p80, %p81
    %p83 = scmp.ne.s32.totalorder %s69, %s70
    %p84 = scmp.eq.s32.totalorder %s16, 1
    %p85 = por %p83, %p84
    %p87 = scmp.ne.s32.totalorder %s70, %s86
    %p88 = scmp.eq.s32.totalorder %s16, 0
    %p89 = por %p87, %p88
    %s91 = sadd.s32 %s90, 1
    %p94 = scmp.eq.s32.totalorder %s10, 1
    %p95 = scmp.ne.s32.totalorder %s90, %s92
    %p96 = scmp.eq.s32.totalorder %s10, 0
    %p97 = por %p95, %p96
    %p98 = scmp.ne.s32.totalorder %s90, %s92
    %p99 = scmp.eq.s32.totalorder %s15, 1
    %p100 = por %p98, %p99
    %p101 = scmp.ne.s32.totalorder %s92, %s93
    %p102 = scmp.eq.s32.totalorder %s15, 0
    %p103 = por %p101, %p102
    %p104 = scmp.ne.s32.totalorder %s92, %s93
    %p105 = scmp.eq.s32.totalorder %s16, 1
    %p106 = por %p104, %p105
    %p108 = scmp.ne.s32.totalorder %s93, %s107
    %p109 = scmp.eq.s32.totalorder %s16, 0
    %p110 = por %p108, %p109
    %s112 = sadd.s32 %s111, 1
    %p115 = scmp.eq.s32.totalorder %s10, 1
    %p116 = scmp.ne.s32.totalorder %s111, %s113
    %p117 = scmp.eq.s32.totalorder %s10, 0
    %p118 = por %p116, %p117
    %p119 = scmp.ne.s32.totalorder %s111, %s113
    %p120 = scmp.eq.s32.totalorder %s15, 1
    %p121 = por %p119, %p120
    %p122 = scmp.ne.s32.totalorder %s113, %s114
    %p123 = scmp.eq.s32.totalorder %s15, 0
    %p124 = por %p122, %p123
    %p125 = scmp.ne.s32.totalorder %s113, %s114
    %p126 = scmp.eq.s32.totalorder %s16, 1
    %p127 = por %p125, %p126
    %p129 = scmp.ne.s32.totalorder %s114, %s128
    %p130 = scmp.eq.s32.totalorder %s16, 0
    %p131 = por %p129, %p130
    %s132 = ssub.s32 %s17, %s29
    %s133 = ssub.s32 %s18, %s25
    %s134 = sor.u32 %s132, %s133
    %p135 = scmp.eq.s32.totalorder %s134, 0
    %s137 = sadd.s32 %s136, 1
    %s138 = scalar_select %p135, %s136, %s137
    %p141 = pneg %p135
    %p142 = scmp.eq.s32.totalorder %s10, 1
    %p143 = por %p141, %p142
    %p144 = scmp.ne.s32.totalorder %s136, %s139
    %p145 = scmp.eq.s32.totalorder %s10, 0
    %p146 = por %p144, %p145
    %p147 = scmp.ne.s32.totalorder %s136, %s139
    %p148 = scmp.eq.s32.totalorder %s15, 1
    %p149 = por %p147, %p148
    %p150 = scmp.ne.s32.totalorder %s139, %s140
    %p151 = scmp.eq.s32.totalorder %s15, 0
    %p152 = por %p150, %p151
    %p153 = scmp.ne.s32.totalorder %s139, %s140
    %p154 = scmp.eq.s32.totalorder %s16, 1
    %p155 = por %p153, %p154
    %p157 = scmp.ne.s32.totalorder %s140, %s156
    %p158 = scmp.eq.s32.totalorder %s16, 0
    %p159 = por %p157, %p158
    %p160 = scmp.le.s32.totalorder 1, %s10
    %p161 = scmp.lt.s32.totalorder %s10, 3
    %p162 = pnand %p160, %p161
    %p163 = pneg %p162
    // Predicated region
    $region9: #{output_encoder_forward.4} parent=5 // pred_check
      _
    $region10: #{output_encoder_forward.4} parent=5 // pred_check_branch
      %165 = sbr.rel (%p162) target = $region12
    $region11: #{output_encoder_forward.4} parent=5 // pred_region
      %s166 = ssub.s32 %s10, 1
      // Predicated region
      $region13: #{output_encoder_forward.4} parent=11 // pred_check
        %p167 = pneg %p103
      $region14: #{output_encoder_forward.4} parent=11 // pred_check_branch
        %169 = sbr.rel (%p167) target = $region16
      $region15: #{output_encoder_forward.4} parent=11 // pred_region
        _
      $region16: #{output_encoder_forward.4} parent=11 // pred_fallthru
        _
      // Predicated region
      $region17: #{output_encoder_forward.4} parent=11 // pred_check
        %p170 = pneg %p124
      $region18: #{output_encoder_forward.4} parent=11 // pred_check_branch
        %172 = sbr.rel (%p170) target = $region20
      $region19: #{output_encoder_forward.4} parent=11 // pred_region
        _
      $region20: #{output_encoder_forward.4} parent=11 // pred_fallthru
        _
    $region12: #{output_encoder_forward.4} parent=5 // pred_fallthru
      _
    %p173 = scmp.lt.s32.totalorder %s10, 2
    // Predicated region
    $region21: #{output_encoder_forward.4} parent=5 // pred_check
      %p174 = pneg %p173
    $region22: #{output_encoder_forward.4} parent=5 // pred_check_branch
      %176 = sbr.rel (%p174) target = $region24
    $region23: #{output_encoder_forward.4} parent=5 // pred_region
      // Predicated region
      $region25: #{output_encoder_forward.4} parent=23 // pred_check
        %p177 = pneg %p44
      $region26: #{output_encoder_forward.4} parent=23 // pred_check_branch
        %179 = sbr.rel (%p177) target = $region28
      $region27: #{output_encoder_forward.4} parent=23 // pred_region
        %s180 = smul.u32 2, %s18
        %p181 = scmp.lt.s32.totalorder %s17, 1
        %s182 = scalar_select %p181, %s17, 1
        %p183 = scmp.lt.s32.totalorder %s180, 3
        %s184 = scalar_select %p183, %s180, 3
        %s185 = smul.addr %s182, 4
        %s186 = sadd.s32 %s184, %s185
        %s187 = smul.addr %s186, 4
        %s188 = scalar_lea.vmem %s0, %s187
        %s189 = smul.u32 2, %s18
      $region28: #{output_encoder_forward.4} parent=23 // pred_fallthru
        _
      // Predicated region
      $region29: #{output_encoder_forward.4} parent=23 // pred_check
        %p190 = pneg %p76
      $region30: #{output_encoder_forward.4} parent=23 // pred_check_branch
        %192 = sbr.rel (%p190) target = $region32
      $region31: #{output_encoder_forward.4} parent=23 // pred_region
        %s193 = sadd.s32 %s18, 1
        %s194 = smul.u32 %s193, 2
        %p195 = scmp.lt.s32.totalorder %s17, 1
        %s196 = scalar_select %p195, %s17, 1
        %p197 = scmp.lt.s32.totalorder %s194, 3
        %s198 = scalar_select %p197, %s194, 3
        %s199 = smul.addr %s196, 4
        %s200 = sadd.s32 %s198, %s199
        %s201 = smul.addr %s200, 4
        %s202 = scalar_lea.vmem %s1, %s201
        %s203 = sadd.s32 %s18, 1
        %s204 = smul.u32 %s203, 2
      $region32: #{output_encoder_forward.4} parent=23 // pred_fallthru
        _
    $region24: #{output_encoder_forward.4} parent=5 // pred_fallthru
      _
    %p205 = scmp.le.s32.totalorder 1, %s10
    %p206 = scmp.lt.s32.totalorder %s10, 3
    %p207 = pnand %p205, %p206
    %p208 = pneg %p207
    // Predicated region
    $region33: #{output_encoder_forward.4} parent=5 // pred_check
      _
    $region34: #{output_encoder_forward.4} parent=5 // pred_check_branch
      %210 = sbr.rel (%p207) target = $region36
    $region35: #{output_encoder_forward.4} parent=5 // pred_region
      %s211 = ssub.s32 %s10, 1
      %s212 = smul.u32 2, %s20
      %p213 = scmp.lt.s32.totalorder %s19, 1
      %s214 = scalar_select %p213, %s19, 1
      %p215 = scmp.lt.s32.totalorder %s212, 3
      %s216 = scalar_select %p215, %s212, 3
      %s217 = smul.addr %s214, 4
      %s218 = sadd.s32 %s216, %s217
      %s219 = smul.addr %s218, 4
      %s220 = scalar_lea.vmem %s0, %s219
      %p221 = pneg %p50
      %p222 = pneg %p47
      %s223 = sadd.s32 %s20, 1
      %s224 = smul.u32 %s223, 2
      %p225 = scmp.lt.s32.totalorder %s19, 1
      %s226 = scalar_select %p225, %s19, 1
      %p227 = scmp.lt.s32.totalorder %s224, 3
      %s228 = scalar_select %p227, %s224, 3
      %s229 = smul.addr %s226, 4
      %s230 = sadd.s32 %s228, %s229
      %s231 = smul.addr %s230, 4
      %s232 = scalar_lea.vmem %s1, %s231
      %p233 = pneg %p82
      %p234 = pneg %p79
      %p235 = pneg %p103
      %p236 = pneg %p100
      %p237 = pneg %p124
      %p238 = pneg %p121
      %p239 = pneg %p152
      %p240 = pneg %p149
      %p241 = scmp.lt.s32.totalorder %s19, 1
      %s242 = scalar_select %p241, %s19, 1
      %p243 = scmp.lt.s32.totalorder %s20, 0
      %s244 = scalar_select %p243, %s20, 0
      %s245 = sadd.s32 %s244, %s242
      %s246 = smul.addr %s245, 8
      %s247 = scalar_lea.vmem %s4, %s246
      %s248 = smul.u32 2, %s20
      %p249 = scmp.lt.s32.totalorder %s19, 1
      %s250 = scalar_select %p249, %s19, 1
      %p251 = scmp.lt.s32.totalorder %s248, 3
      %s252 = scalar_select %p251, %s248, 3
      %s253 = smul.addr %s250, 4
      %s254 = sadd.s32 %s252, %s253
      %s255 = smul.addr %s254, 4
      %s256 = scalar_lea.vmem %s0, %s255
      %s257 = smul.u32 2, %s20
      %s258 = sadd.s32 %s20, 1
      %s259 = smul.u32 %s258, 2
      %p260 = scmp.lt.s32.totalorder %s19, 1
      %s261 = scalar_select %p260, %s19, 1
      %p262 = scmp.lt.s32.totalorder %s259, 3
      %s263 = scalar_select %p262, %s259, 3
      %s264 = smul.addr %s261, 4
      %s265 = sadd.s32 %s263, %s264
      %s266 = smul.addr %s265, 4
      %s267 = scalar_lea.vmem %s1, %s266
      %s268 = sadd.s32 %s20, 1
      %s269 = smul.u32 %s268, 2
      %p270 = scmp.lt.s32.totalorder %s19, 1
      %s271 = scalar_select %p270, %s19, 1
      %p272 = scmp.lt.s32.totalorder %s20, 0
      %s273 = scalar_select %p272, %s20, 0
      %s274 = sadd.s32 %s273, %s271
      %s275 = smul.addr %s274, 8
      %s276 = scalar_lea.vmem %s4, %s275
      %v278 = vld [vmem:[%s256] sm:$0xf]
      %v279 = vld [vmem:[%s256 + $0x4] sm:$0xf]
      %vm280 = vcmask 519168
      %281 = vst.msk [vmem:[#allocation2] sm:$0xf] %vm280, %v278
      %282 = vst.msk [vmem:[#allocation2 + $0x4] sm:$0xf] %vm280, %v279
      %v283 = vld [vmem:[%s267] sm:$0xf]
      %284 = vst.msk [vmem:[#allocation2 + $0x8] sm:$0xf] %vm280, %v283
      %v285 = vld [vmem:[#allocation2] sm:$0xf]
      %v286 = vld [vmem:[#allocation2 + $0x4] sm:$0xf]
      %v287 = vld [vmem:[%s2] sm:$0xf]
      %v288 = vld [vmem:[%s2 + $0x4] sm:$0xf]
      %v289 = vld [vmem:[%s2 + $0x8] sm:$0xf]
      %v290 = vld [vmem:[%s2 + $0xc] sm:$0xf]
      %v291 = vld [vmem:[%s2 + $0x10] sm:$0xf]
      %v292 = vld [vmem:[%s2 + $0x14] sm:$0xf]
      %v293 = vld [vmem:[%s2 + $0x18] sm:$0xf]
      %v294 = vld [vmem:[%s2 + $0x1c] sm:$0xf]
      %v295 = vld [vmem:[#allocation2 + $0x8] sm:$0x1]
      %s296 = scalar_lea.vmem %s2, 32
      %v297 = vld [vmem:[%s296] sm:$0xf]
      %v298 = vld [vmem:[%s296 + $0x4] sm:$0xf]
      %v299 = vld [vmem:[%s296 + $0x8] sm:$0xf]
      %v300 = vld [vmem:[%s296 + $0xc] sm:$0xf]
      %v301 = vld [vmem:[%s296 + $0x10] sm:$0xf]
      %v302 = vld [vmem:[%s296 + $0x14] sm:$0xf]
      %v303 = vld [vmem:[%s296 + $0x18] sm:$0xf]
      %v304 = vld [vmem:[%s296 + $0x1c] sm:$0xf]
      %v308 = vunpack.c.l.b16 %v285
      %v309 = vunpack.c.l.b16 %v286
      %v310 = vunpack.c.l.b16 %v295
      %v311 = vpack.c.b16 %v309, %v308
      %v312 = vpack.c.b16 %v310, %v310
      %vm313 = vsmask.f32 7424
      %v315 = vshrl.u32 %v311, 16
      %v317 = vshll.u32 %v311, 16
      %v319 = vrot.slane %v317, 1
      %v320 = vor.u32 %v315, %v319
      %v322 = vshll.u32 %v312, 16
      %v324 = vrot.slane %v322, 1
      %v325 = vsel %vm313, %v320, %v324
      %v334 = vunpack.c.l.b16 %v297
      %v335 = vunpack.c.l.b16 %v298
      %v336 = vunpack.c.l.b16 %v299
      %v337 = vunpack.c.l.b16 %v300
      %v338 = vunpack.c.l.b16 %v301
      %v339 = vunpack.c.l.b16 %v302
      %v340 = vunpack.c.l.b16 %v303
      %v341 = vunpack.c.l.b16 %v304
      %v342 = vpack.c.b16 %v335, %v334
      %v343 = vpack.c.b16 %v337, %v336
      %v344 = vpack.c.b16 %v339, %v338
      %v345 = vpack.c.b16 %v341, %v340
      %vm350 = vcmask 523264
      %v352 = vsel %vm350, %v325, 0
      %354 = vmatprep.subr.bf16.mxu0 0
      %355 = vmatpush1.bf16.msra.mxu0 0
      %356 = vmatprep.subr.bf16.mxu0 0
      %357 = vmatpush1.bf16.msra.mxu0 0
      %358 = vmatprep.subr.bf16.mxu0 0
      %359 = vmatpush1.bf16.msra.mxu0 0
      %360 = vmatprep.subr.bf16.mxu0 0
      %361 = vmatpush1.bf16.msra.mxu0 0
      %362 = vmatprep.subr.bf16.mxu0 0
      %363 = vmatpush1.bf16.msra.mxu0 %v345
      %364 = vmatprep.subr.bf16.mxu0 0
      %365 = vmatpush1.bf16.msra.mxu0 %v344
      %366 = vmatprep.subr.bf16.mxu0 0
      %367 = vmatpush1.bf16.msra.mxu0 %v343
      %368 = vmatprep.subr.bf16.mxu0 0
      %369 = vmatpush1.bf16.msra.mxu0 %v342
      %370 = vmatprep.subr.bf16.mxu0 0
      %371 = vmatpush2.bf16.msra.mxu0 0
      %372 = vmatprep.subr.bf16.mxu0 0
      %373 = vmatpush2.bf16.msra.mxu0 0
      %374 = vmatprep.subr.bf16.mxu0 0
      %375 = vmatpush2.bf16.msra.mxu0 0
      %376 = vmatprep.subr.bf16.mxu0 0
      %377 = vmatpush2.bf16.msra.mxu0 0
      %378 = vmatprep.subr.bf16.mxu0 0
      %379 = vmatpush2.bf16.msra.mxu0 0
      %380 = vmatprep.subr.bf16.mxu0 0
      %381 = vmatpush2.bf16.msra.mxu0 0
      %382 = vmatprep.subr.bf16.mxu0 0
      %383 = vmatpush2.bf16.msra.mxu0 0
      %384 = vmatprep.subr.bf16.mxu0 0
      %385 = vmatpush2.bf16.msra.mxu0 0
      %386 = vmatprep.mubr.bf16.mxu0 0
      %387 = vmatmul.mubr.bf16.gmra.mxu0 %v352
      %v388 = vpop.f32.mrf.mxu0
      %v389 = vadd.f32 0.0, %v388
      %v390 = vpop.f32.mrf.mxu0
      %v391 = vpop.f32.mrf.mxu0
      %v392 = vadd.f32 0.0, %v391
      %v393 = vpop.f32.mrf.mxu0
      %394 = vdwg.mxu0
      %v403 = vunpack.c.l.b16 %v287
      %v404 = vunpack.c.l.b16 %v288
      %v405 = vunpack.c.l.b16 %v289
      %v406 = vunpack.c.l.b16 %v290
      %v407 = vunpack.c.l.b16 %v291
      %v408 = vunpack.c.l.b16 %v292
      %v409 = vunpack.c.l.b16 %v293
      %v410 = vunpack.c.l.b16 %v294
      %v411 = vpack.c.b16 %v404, %v403
      %v412 = vpack.c.b16 %v406, %v405
      %v413 = vpack.c.b16 %v408, %v407
      %v414 = vpack.c.b16 %v410, %v409
      %v419 = vsel %vm350, %v311, 0
      %421 = vmatprep.subr.bf16.mxu0 0
      %422 = vmatpush1.bf16.msra.mxu0 0
      %423 = vmatprep.subr.bf16.mxu0 0
      %424 = vmatpush1.bf16.msra.mxu0 0
      %425 = vmatprep.subr.bf16.mxu0 0
      %426 = vmatpush1.bf16.msra.mxu0 0
      %427 = vmatprep.subr.bf16.mxu0 0
      %428 = vmatpush1.bf16.msra.mxu0 0
      %429 = vmatprep.subr.bf16.mxu0 0
      %430 = vmatpush1.bf16.msra.mxu0 %v414
      %431 = vmatprep.subr.bf16.mxu0 0
      %432 = vmatpush1.bf16.msra.mxu0 %v413
      %433 = vmatprep.subr.bf16.mxu0 0
      %434 = vmatpush1.bf16.msra.mxu0 %v412
      %435 = vmatprep.subr.bf16.mxu0 0
      %436 = vmatpush1.bf16.msra.mxu0 %v411
      %437 = vmatprep.subr.bf16.mxu0 0
      %438 = vmatpush2.bf16.msra.mxu0 0
      %439 = vmatprep.subr.bf16.mxu0 0
      %440 = vmatpush2.bf16.msra.mxu0 0
      %441 = vmatprep.subr.bf16.mxu0 0
      %442 = vmatpush2.bf16.msra.mxu0 0
      %443 = vmatprep.subr.bf16.mxu0 0
      %444 = vmatpush2.bf16.msra.mxu0 0
      %445 = vmatprep.subr.bf16.mxu0 0
      %446 = vmatpush2.bf16.msra.mxu0 0
      %447 = vmatprep.subr.bf16.mxu0 0
      %448 = vmatpush2.bf16.msra.mxu0 0
      %449 = vmatprep.subr.bf16.mxu0 0
      %450 = vmatpush2.bf16.msra.mxu0 0
      %451 = vmatprep.subr.bf16.mxu0 0
      %452 = vmatpush2.bf16.msra.mxu0 0
      %453 = vmatprep.mubr.bf16.mxu0 0
      %454 = vmatmul.mubr.bf16.gmra.mxu0 %v419
      %v455 = vpop.f32.mrf.mxu0
      %v456 = vadd.f32 %v389, %v455
      %v457 = vpop.f32.mrf.mxu0
      %v458 = vpop.f32.mrf.mxu0
      %v459 = vadd.f32 %v392, %v458
      %v460 = vpop.f32.mrf.mxu0
      %461 = vdwg.mxu0
      %v462 = vld [vmem:[#allocation2] sm:$0xe]
      %s463 = scalar_lea.vmem %s2, 64
      %v464 = vld [vmem:[%s463] sm:$0xf]
      %v465 = vld [vmem:[%s463 + $0x4] sm:$0xf]
      %v466 = vld [vmem:[%s463 + $0x8] sm:$0xf]
      %v467 = vld [vmem:[%s463 + $0xc] sm:$0xf]
      %v468 = vld [vmem:[%s463 + $0x10] sm:$0xf]
      %v469 = vld [vmem:[%s463 + $0x14] sm:$0xf]
      %v470 = vld [vmem:[%s463 + $0x18] sm:$0xf]
      %v471 = vld [vmem:[%s463 + $0x1c] sm:$0xf]
      %v473 = vunpack.c.l.b16 %v462
      %v474 = vpack.c.b16 %v309, %v473
      %vm475 = vcmask 1046528
      %v476 = vrot.slane %v474, 1
      %v477 = vrot.slane %v312, 1
      %v478 = vsel %vm475, %v476, %v477
      %v487 = vunpack.c.l.b16 %v464
      %v488 = vunpack.c.l.b16 %v465
      %v489 = vunpack.c.l.b16 %v466
      %v490 = vunpack.c.l.b16 %v467
      %v491 = vunpack.c.l.b16 %v468
      %v492 = vunpack.c.l.b16 %v469
      %v493 = vunpack.c.l.b16 %v470
      %v494 = vunpack.c.l.b16 %v471
      %v495 = vpack.c.b16 %v488, %v487
      %v496 = vpack.c.b16 %v490, %v489
      %v497 = vpack.c.b16 %v492, %v491
      %v498 = vpack.c.b16 %v494, %v493
      %v504 = vsel %vm350, %v478, 0
      %506 = vmatprep.subr.bf16.mxu0 0
      %507 = vmatpush1.bf16.msra.mxu0 0
      %508 = vmatprep.subr.bf16.mxu0 0
      %509 = vmatpush1.bf16.msra.mxu0 0
      %510 = vmatprep.subr.bf16.mxu0 0
      %511 = vmatpush1.bf16.msra.mxu0 0
      %512 = vmatprep.subr.bf16.mxu0 0
      %513 = vmatpush1.bf16.msra.mxu0 0
      %514 = vmatprep.subr.bf16.mxu0 0
      %515 = vmatpush1.bf16.msra.mxu0 %v498
      %516 = vmatprep.subr.bf16.mxu0 0
      %517 = vmatpush1.bf16.msra.mxu0 %v497
      %518 = vmatprep.subr.bf16.mxu0 0
      %519 = vmatpush1.bf16.msra.mxu0 %v496
      %520 = vmatprep.subr.bf16.mxu0 0
      %521 = vmatpush1.bf16.msra.mxu0 %v495
      %522 = vmatprep.subr.bf16.mxu0 0
      %523 = vmatpush2.bf16.msra.mxu0 0
      %524 = vmatprep.subr.bf16.mxu0 0
      %525 = vmatpush2.bf16.msra.mxu0 0
      %526 = vmatprep.subr.bf16.mxu0 0
      %527 = vmatpush2.bf16.msra.mxu0 0
      %528 = vmatprep.subr.bf16.mxu0 0
      %529 = vmatpush2.bf16.msra.mxu0 0
      %530 = vmatprep.subr.bf16.mxu0 0
      %531 = vmatpush2.bf16.msra.mxu0 0
      %532 = vmatprep.subr.bf16.mxu0 0
      %533 = vmatpush2.bf16.msra.mxu0 0
      %534 = vmatprep.subr.bf16.mxu0 0
      %535 = vmatpush2.bf16.msra.mxu0 0
      %536 = vmatprep.subr.bf16.mxu0 0
      %537 = vmatpush2.bf16.msra.mxu0 0
      %538 = vmatprep.mubr.bf16.mxu0 0
      %539 = vmatmul.mubr.bf16.gmra.mxu0 %v504
      %v540 = vpop.f32.mrf.mxu0
      %v541 = vadd.f32 0.0, %v540
      %v542 = vpop.f32.mrf.mxu0
      %v543 = vpop.f32.mrf.mxu0
      %v544 = vadd.f32 0.0, %v543
      %v545 = vpop.f32.mrf.mxu0
      %546 = vdwg.mxu0
      %v547 = vadd.f32 %v456, %v541
      %v548 = vadd.f32 %v459, %v544
      %v549 = vld [vmem:[#allocation2 + $0x8] sm:$0x3]
      %s550 = scalar_lea.vmem %s2, 96
      %v551 = vld [vmem:[%s550] sm:$0xf]
      %v552 = vld [vmem:[%s550 + $0x4] sm:$0xf]
      %v553 = vld [vmem:[%s550 + $0x8] sm:$0xf]
      %v554 = vld [vmem:[%s550 + $0xc] sm:$0xf]
      %v555 = vld [vmem:[%s550 + $0x10] sm:$0xf]
      %v556 = vld [vmem:[%s550 + $0x14] sm:$0xf]
      %v557 = vld [vmem:[%s550 + $0x18] sm:$0xf]
      %v558 = vld [vmem:[%s550 + $0x1c] sm:$0xf]
      %v560 = vunpack.c.l.b16 %v549
      %v561 = vpack.c.b16 %v560, %v560
      %vm562 = vsmask.f32 6400
      %v564 = vshrl.u32 %v474, 16
      %v566 = vrot.slane %v564, 1
      %v567 = vshll.u32 %v474, 16
      %v569 = vrot.slane %v567, 2
      %v570 = vor.u32 %v566, %v569
      %v572 = vshrl.u32 %v561, 16
      %v574 = vrot.slane %v572, 1
      %v575 = vshll.u32 %v561, 16
      %v577 = vrot.slane %v575, 2
      %v578 = vor.u32 %v574, %v577
      %v579 = vsel %vm562, %v570, %v578
      %v588 = vunpack.c.l.b16 %v551
      %v589 = vunpack.c.l.b16 %v552
      %v590 = vunpack.c.l.b16 %v553
      %v591 = vunpack.c.l.b16 %v554
      %v592 = vunpack.c.l.b16 %v555
      %v593 = vunpack.c.l.b16 %v556
      %v594 = vunpack.c.l.b16 %v557
      %v595 = vunpack.c.l.b16 %v558
      %v596 = vpack.c.b16 %v589, %v588
      %v597 = vpack.c.b16 %v591, %v590
      %v598 = vpack.c.b16 %v593, %v592
      %v599 = vpack.c.b16 %v595, %v594
      %v605 = vsel %vm350, %v579, 0
      %607 = vmatprep.subr.bf16.mxu0 0
      %608 = vmatpush1.bf16.msra.mxu0 0
      %609 = vmatprep.subr.bf16.mxu0 0
      %610 = vmatpush1.bf16.msra.mxu0 0
      %611 = vmatprep.subr.bf16.mxu0 0
      %612 = vmatpush1.bf16.msra.mxu0 0
      %613 = vmatprep.subr.bf16.mxu0 0
      %614 = vmatpush1.bf16.msra.mxu0 0
      %615 = vmatprep.subr.bf16.mxu0 0
      %616 = vmatpush1.bf16.msra.mxu0 %v599
      %617 = vmatprep.subr.bf16.mxu0 0
      %618 = vmatpush1.bf16.msra.mxu0 %v598
      %619 = vmatprep.subr.bf16.mxu0 0
      %620 = vmatpush1.bf16.msra.mxu0 %v597
      %621 = vmatprep.subr.bf16.mxu0 0
      %622 = vmatpush1.bf16.msra.mxu0 %v596
      %623 = vmatprep.subr.bf16.mxu0 0
      %624 = vmatpush2.bf16.msra.mxu0 0
      %625 = vmatprep.subr.bf16.mxu0 0
      %626 = vmatpush2.bf16.msra.mxu0 0
      %627 = vmatprep.subr.bf16.mxu0 0
      %628 = vmatpush2.bf16.msra.mxu0 0
      %629 = vmatprep.subr.bf16.mxu0 0
      %630 = vmatpush2.bf16.msra.mxu0 0
      %631 = vmatprep.subr.bf16.mxu0 0
      %632 = vmatpush2.bf16.msra.mxu0 0
      %633 = vmatprep.subr.bf16.mxu0 0
      %634 = vmatpush2.bf16.msra.mxu0 0
      %635 = vmatprep.subr.bf16.mxu0 0
      %636 = vmatpush2.bf16.msra.mxu0 0
      %637 = vmatprep.subr.bf16.mxu0 0
      %638 = vmatpush2.bf16.msra.mxu0 0
      %639 = vmatprep.mubr.bf16.mxu0 0
      %640 = vmatmul.mubr.bf16.gmra.mxu0 %v605
      %v641 = vpop.f32.mrf.mxu0
      %v642 = vadd.f32 0.0, %v641
      %v643 = vpop.f32.mrf.mxu0
      %v644 = vpop.f32.mrf.mxu0
      %v645 = vadd.f32 0.0, %v644
      %v646 = vpop.f32.mrf.mxu0
      %647 = vdwg.mxu0
      %v648 = vadd.f32 %v547, %v642
      %v649 = vadd.f32 %v548, %v645
      %v650 = vld [vmem:[#allocation2] sm:$0xc]
      %s651 = scalar_lea.vmem %s2, 128
      %v652 = vld [vmem:[%s651] sm:$0xf]
      %v653 = vld [vmem:[%s651 + $0x4] sm:$0xf]
      %v654 = vld [vmem:[%s651 + $0x8] sm:$0xf]
      %v655 = vld [vmem:[%s651 + $0xc] sm:$0xf]
      %v656 = vld [vmem:[%s651 + $0x10] sm:$0xf]
      %v657 = vld [vmem:[%s651 + $0x14] sm:$0xf]
      %v658 = vld [vmem:[%s651 + $0x18] sm:$0xf]
      %v659 = vld [vmem:[%s651 + $0x1c] sm:$0xf]
      %v661 = vunpack.c.l.b16 %v650
      %v662 = vpack.c.b16 %v309, %v661
      %vm663 = vcmask 1045504
      %v664 = vrot.slane %v662, 2
      %v665 = vrot.slane %v561, 2
      %v666 = vsel %vm663, %v664, %v665
      %v675 = vunpack.c.l.b16 %v652
      %v676 = vunpack.c.l.b16 %v653
      %v677 = vunpack.c.l.b16 %v654
      %v678 = vunpack.c.l.b16 %v655
      %v679 = vunpack.c.l.b16 %v656
      %v680 = vunpack.c.l.b16 %v657
      %v681 = vunpack.c.l.b16 %v658
      %v682 = vunpack.c.l.b16 %v659
      %v683 = vpack.c.b16 %v676, %v675
      %v684 = vpack.c.b16 %v678, %v677
      %v685 = vpack.c.b16 %v680, %v679
      %v686 = vpack.c.b16 %v682, %v681
      %v692 = vsel %vm350, %v666, 0
      %694 = vmatprep.subr.bf16.mxu0 0
      %695 = vmatpush1.bf16.msra.mxu0 0
      %696 = vmatprep.subr.bf16.mxu0 0
      %697 = vmatpush1.bf16.msra.mxu0 0
      %698 = vmatprep.subr.bf16.mxu0 0
      %699 = vmatpush1.bf16.msra.mxu0 0
      %700 = vmatprep.subr.bf16.mxu0 0
      %701 = vmatpush1.bf16.msra.mxu0 0
      %702 = vmatprep.subr.bf16.mxu0 0
      %703 = vmatpush1.bf16.msra.mxu0 %v686
      %704 = vmatprep.subr.bf16.mxu0 0
      %705 = vmatpush1.bf16.msra.mxu0 %v685
      %706 = vmatprep.subr.bf16.mxu0 0
      %707 = vmatpush1.bf16.msra.mxu0 %v684
      %708 = vmatprep.subr.bf16.mxu0 0
      %709 = vmatpush1.bf16.msra.mxu0 %v683
      %710 = vmatprep.subr.bf16.mxu0 0
      %711 = vmatpush2.bf16.msra.mxu0 0
      %712 = vmatprep.subr.bf16.mxu0 0
      %713 = vmatpush2.bf16.msra.mxu0 0
      %714 = vmatprep.subr.bf16.mxu0 0
      %715 = vmatpush2.bf16.msra.mxu0 0
      %716 = vmatprep.subr.bf16.mxu0 0
      %717 = vmatpush2.bf16.msra.mxu0 0
      %718 = vmatprep.subr.bf16.mxu0 0
      %719 = vmatpush2.bf16.msra.mxu0 0
      %720 = vmatprep.subr.bf16.mxu0 0
      %721 = vmatpush2.bf16.msra.mxu0 0
      %722 = vmatprep.subr.bf16.mxu0 0
      %723 = vmatpush2.bf16.msra.mxu0 0
      %724 = vmatprep.subr.bf16.mxu0 0
      %725 = vmatpush2.bf16.msra.mxu0 0
      %726 = vmatprep.mubr.bf16.mxu0 0
      %727 = vmatmul.mubr.bf16.gmra.mxu0 %v692
      %v728 = vpop.f32.mrf.mxu0
      %v729 = vadd.f32 0.0, %v728
      %v730 = vpop.f32.mrf.mxu0
      %v731 = vpop.f32.mrf.mxu0
      %v732 = vadd.f32 0.0, %v731
      %v733 = vpop.f32.mrf.mxu0
      %734 = vdwg.mxu0
      %v735 = vadd.f32 %v648, %v729
      %v736 = vadd.f32 %v649, %v732
      %v737 = vld [vmem:[#allocation2 + $0x8] sm:$0x7]
      %s738 = scalar_lea.vmem %s2, 160
      %v739 = vld [vmem:[%s738] sm:$0xf]
      %v740 = vld [vmem:[%s738 + $0x4] sm:$0xf]
      %v741 = vld [vmem:[%s738 + $0x8] sm:$0xf]
      %v742 = vld [vmem:[%s738 + $0xc] sm:$0xf]
      %v743 = vld [vmem:[%s738 + $0x10] sm:$0xf]
      %v744 = vld [vmem:[%s738 + $0x14] sm:$0xf]
      %v745 = vld [vmem:[%s738 + $0x18] sm:$0xf]
      %v746 = vld [vmem:[%s738 + $0x1c] sm:$0xf]
      %v748 = vunpack.c.l.b16 %v737
      %v749 = vpack.c.b16 %v748, %v748
      %vm750 = vsmask.f32 5376
      %v752 = vshrl.u32 %v662, 16
      %v754 = vrot.slane %v752, 2
      %v755 = vshll.u32 %v662, 16
      %v757 = vrot.slane %v755, 3
      %v758 = vor.u32 %v754, %v757
      %v760 = vshrl.u32 %v749, 16
      %v762 = vrot.slane %v760, 2
      %v763 = vshll.u32 %v749, 16
      %v765 = vrot.slane %v763, 3
      %v766 = vor.u32 %v762, %v765
      %v767 = vsel %vm750, %v758, %v766
      %v776 = vunpack.c.l.b16 %v739
      %v777 = vunpack.c.l.b16 %v740
      %v778 = vunpack.c.l.b16 %v741
      %v779 = vunpack.c.l.b16 %v742
      %v780 = vunpack.c.l.b16 %v743
      %v781 = vunpack.c.l.b16 %v744
      %v782 = vunpack.c.l.b16 %v745
      %v783 = vunpack.c.l.b16 %v746
      %v784 = vpack.c.b16 %v777, %v776
      %v785 = vpack.c.b16 %v779, %v778
      %v786 = vpack.c.b16 %v781, %v780
      %v787 = vpack.c.b16 %v783, %v782
      %v793 = vsel %vm350, %v767, 0
      %795 = vmatprep.subr.bf16.mxu0 0
      %796 = vmatpush1.bf16.msra.mxu0 0
      %797 = vmatprep.subr.bf16.mxu0 0
      %798 = vmatpush1.bf16.msra.mxu0 0
      %799 = vmatprep.subr.bf16.mxu0 0
      %800 = vmatpush1.bf16.msra.mxu0 0
      %801 = vmatprep.subr.bf16.mxu0 0
      %802 = vmatpush1.bf16.msra.mxu0 0
      %803 = vmatprep.subr.bf16.mxu0 0
      %804 = vmatpush1.bf16.msra.mxu0 %v787
      %805 = vmatprep.subr.bf16.mxu0 0
      %806 = vmatpush1.bf16.msra.mxu0 %v786
      %807 = vmatprep.subr.bf16.mxu0 0
      %808 = vmatpush1.bf16.msra.mxu0 %v785
      %809 = vmatprep.subr.bf16.mxu0 0
      %810 = vmatpush1.bf16.msra.mxu0 %v784
      %811 = vmatprep.subr.bf16.mxu0 0
      %812 = vmatpush2.bf16.msra.mxu0 0
      %813 = vmatprep.subr.bf16.mxu0 0
      %814 = vmatpush2.bf16.msra.mxu0 0
      %815 = vmatprep.subr.bf16.mxu0 0
      %816 = vmatpush2.bf16.msra.mxu0 0
      %817 = vmatprep.subr.bf16.mxu0 0
      %818 = vmatpush2.bf16.msra.mxu0 0
      %819 = vmatprep.subr.bf16.mxu0 0
      %820 = vmatpush2.bf16.msra.mxu0 0
      %821 = vmatprep.subr.bf16.mxu0 0
      %822 = vmatpush2.bf16.msra.mxu0 0
      %823 = vmatprep.subr.bf16.mxu0 0
      %824 = vmatpush2.bf16.msra.mxu0 0
      %825 = vmatprep.subr.bf16.mxu0 0
      %826 = vmatpush2.bf16.msra.mxu0 0
      %827 = vmatprep.mubr.bf16.mxu0 0
      %828 = vmatmul.mubr.bf16.gmra.mxu0 %v793
      %v829 = vpop.f32.mrf.mxu0
      %v830 = vadd.f32 0.0, %v829
      %v831 = vpop.f32.mrf.mxu0
      %v832 = vpop.f32.mrf.mxu0
      %v833 = vadd.f32 0.0, %v832
      %v834 = vpop.f32.mrf.mxu0
      %835 = vdwg.mxu0
      %v836 = vadd.f32 %v735, %v830
      %v837 = vadd.f32 %v736, %v833
      %v838 = vld [vmem:[#allocation2] sm:$0x8]
      %s839 = scalar_lea.vmem %s2, 192
      %v840 = vld [vmem:[%s839] sm:$0xf]
      %v841 = vld [vmem:[%s839 + $0x4] sm:$0xf]
      %v842 = vld [vmem:[%s839 + $0x8] sm:$0xf]
      %v843 = vld [vmem:[%s839 + $0xc] sm:$0xf]
      %v844 = vld [vmem:[%s839 + $0x10] sm:$0xf]
      %v845 = vld [vmem:[%s839 + $0x14] sm:$0xf]
      %v846 = vld [vmem:[%s839 + $0x18] sm:$0xf]
      %v847 = vld [vmem:[%s839 + $0x1c] sm:$0xf]
      %v849 = vunpack.c.l.b16 %v838
      %v850 = vpack.c.b16 %v309, %v849
      %vm851 = vcmask 1044480
      %v852 = vrot.slane %v850, 3
      %v853 = vrot.slane %v749, 3
      %v854 = vsel %vm851, %v852, %v853
      %v863 = vunpack.c.l.b16 %v840
      %v864 = vunpack.c.l.b16 %v841
      %v865 = vunpack.c.l.b16 %v842
      %v866 = vunpack.c.l.b16 %v843
      %v867 = vunpack.c.l.b16 %v844
      %v868 = vunpack.c.l.b16 %v845
      %v869 = vunpack.c.l.b16 %v846
      %v870 = vunpack.c.l.b16 %v847
      %v871 = vpack.c.b16 %v864, %v863
      %v872 = vpack.c.b16 %v866, %v865
      %v873 = vpack.c.b16 %v868, %v867
      %v874 = vpack.c.b16 %v870, %v869
      %v880 = vsel %vm350, %v854, 0
      %882 = vmatprep.subr.bf16.mxu0 0
      %883 = vmatpush1.bf16.msra.mxu0 0
      %884 = vmatprep.subr.bf16.mxu0 0
      %885 = vmatpush1.bf16.msra.mxu0 0
      %886 = vmatprep.subr.bf16.mxu0 0
      %887 = vmatpush1.bf16.msra.mxu0 0
      %888 = vmatprep.subr.bf16.mxu0 0
      %889 = vmatpush1.bf16.msra.mxu0 0
      %890 = vmatprep.subr.bf16.mxu0 0
      %891 = vmatpush1.bf16.msra.mxu0 %v874
      %892 = vmatprep.subr.bf16.mxu0 0
      %893 = vmatpush1.bf16.msra.mxu0 %v873
      %894 = vmatprep.subr.bf16.mxu0 0
      %895 = vmatpush1.bf16.msra.mxu0 %v872
      %896 = vmatprep.subr.bf16.mxu0 0
      %897 = vmatpush1.bf16.msra.mxu0 %v871
      %898 = vmatprep.subr.bf16.mxu0 0
      %899 = vmatpush2.bf16.msra.mxu0 0
      %900 = vmatprep.subr.bf16.mxu0 0
      %901 = vmatpush2.bf16.msra.mxu0 0
      %902 = vmatprep.subr.bf16.mxu0 0
      %903 = vmatpush2.bf16.msra.mxu0 0
      %904 = vmatprep.subr.bf16.mxu0 0
      %905 = vmatpush2.bf16.msra.mxu0 0
      %906 = vmatprep.subr.bf16.mxu0 0
      %907 = vmatpush2.bf16.msra.mxu0 0
      %908 = vmatprep.subr.bf16.mxu0 0
      %909 = vmatpush2.bf16.msra.mxu0 0
      %910 = vmatprep.subr.bf16.mxu0 0
      %911 = vmatpush2.bf16.msra.mxu0 0
      %912 = vmatprep.subr.bf16.mxu0 0
      %913 = vmatpush2.bf16.msra.mxu0 0
      %914 = vmatprep.mubr.bf16.mxu0 0
      %915 = vmatmul.mubr.bf16.gmra.mxu0 %v880
      %v916 = vpop.f32.mrf.mxu0
      %v917 = vadd.f32 0.0, %v916
      %v918 = vpop.f32.mrf.mxu0
      %v919 = vpop.f32.mrf.mxu0
      %v920 = vadd.f32 0.0, %v919
      %v921 = vpop.f32.mrf.mxu0
      %922 = vdwg.mxu0
      %v923 = vadd.f32 %v836, %v917
      %v924 = vadd.f32 %v837, %v920
      %v925 = vld [vmem:[#allocation2 + $0x8] sm:$0xf]
      %s926 = scalar_lea.vmem %s2, 224
      %v927 = vld [vmem:[%s926] sm:$0xf]
      %v928 = vld [vmem:[%s926 + $0x4] sm:$0xf]
      %v929 = vld [vmem:[%s926 + $0x8] sm:$0xf]
      %v930 = vld [vmem:[%s926 + $0xc] sm:$0xf]
      %v931 = vld [vmem:[%s926 + $0x10] sm:$0xf]
      %v932 = vld [vmem:[%s926 + $0x14] sm:$0xf]
      %v933 = vld [vmem:[%s926 + $0x18] sm:$0xf]
      %v934 = vld [vmem:[%s926 + $0x1c] sm:$0xf]
      %v936 = vunpack.c.l.b16 %v925
      %v937 = vpack.c.b16 %v936, %v936
      %vm938 = vsmask.f32 4352
      %v940 = vshrl.u32 %v850, 16
      %v942 = vrot.slane %v940, 3
      %v943 = vshll.u32 %v850, 16
      %v945 = vrot.slane %v943, 4
      %v946 = vor.u32 %v942, %v945
      %v948 = vshrl.u32 %v937, 16
      %v950 = vrot.slane %v948, 3
      %v951 = vshll.u32 %v937, 16
      %v953 = vrot.slane %v951, 4
      %v954 = vor.u32 %v950, %v953
      %v955 = vsel %vm938, %v946, %v954
      %v964 = vunpack.c.l.b16 %v927
      %v965 = vunpack.c.l.b16 %v928
      %v966 = vunpack.c.l.b16 %v929
      %v967 = vunpack.c.l.b16 %v930
      %v968 = vunpack.c.l.b16 %v931
      %v969 = vunpack.c.l.b16 %v932
      %v970 = vunpack.c.l.b16 %v933
      %v971 = vunpack.c.l.b16 %v934
      %v972 = vpack.c.b16 %v965, %v964
      %v973 = vpack.c.b16 %v967, %v966
      %v974 = vpack.c.b16 %v969, %v968
      %v975 = vpack.c.b16 %v971, %v970
      %v981 = vsel %vm350, %v955, 0
      %983 = vmatprep.subr.bf16.mxu0 0
      %984 = vmatpush1.bf16.msra.mxu0 0
      %985 = vmatprep.subr.bf16.mxu0 0
      %986 = vmatpush1.bf16.msra.mxu0 0
      %987 = vmatprep.subr.bf16.mxu0 0
      %988 = vmatpush1.bf16.msra.mxu0 0
      %989 = vmatprep.subr.bf16.mxu0 0
      %990 = vmatpush1.bf16.msra.mxu0 0
      %991 = vmatprep.subr.bf16.mxu0 0
      %992 = vmatpush1.bf16.msra.mxu0 %v975
      %993 = vmatprep.subr.bf16.mxu0 0
      %994 = vmatpush1.bf16.msra.mxu0 %v974
      %995 = vmatprep.subr.bf16.mxu0 0
      %996 = vmatpush1.bf16.msra.mxu0 %v973
      %997 = vmatprep.subr.bf16.mxu0 0
      %998 = vmatpush1.bf16.msra.mxu0 %v972
      %999 = vmatprep.subr.bf16.mxu0 0
      %1000 = vmatpush2.bf16.msra.mxu0 0
      %1001 = vmatprep.subr.bf16.mxu0 0
      %1002 = vmatpush2.bf16.msra.mxu0 0
      %1003 = vmatprep.subr.bf16.mxu0 0
      %1004 = vmatpush2.bf16.msra.mxu0 0
      %1005 = vmatprep.subr.bf16.mxu0 0
      %1006 = vmatpush2.bf16.msra.mxu0 0
      %1007 = vmatprep.subr.bf16.mxu0 0
      %1008 = vmatpush2.bf16.msra.mxu0 0
      %1009 = vmatprep.subr.bf16.mxu0 0
      %1010 = vmatpush2.bf16.msra.mxu0 0
      %1011 = vmatprep.subr.bf16.mxu0 0
      %1012 = vmatpush2.bf16.msra.mxu0 0
      %1013 = vmatprep.subr.bf16.mxu0 0
      %1014 = vmatpush2.bf16.msra.mxu0 0
      %1015 = vmatprep.mubr.bf16.mxu0 0
      %1016 = vmatmul.mubr.bf16.gmra.mxu0 %v981
      %v1017 = vpop.f32.mrf.mxu0
      %v1018 = vadd.f32 0.0, %v1017
      %v1019 = vpop.f32.mrf.mxu0
      %v1020 = vpop.f32.mrf.mxu0
      %v1021 = vadd.f32 0.0, %v1020
      %v1022 = vpop.f32.mrf.mxu0
      %1023 = vdwg.mxu0
      %v1024 = vadd.f32 %v923, %v1018
      %v1025 = vadd.f32 %v924, %v1021
      %v1026 = vld [vmem:[%s3] sm:$0x1]
      %v1028 = vlaneseq
      %v1029 = vshrl.u32 %v1028, 7
      %v1030 = vsub.s32 0, %v1029
      %v1031 = vrot.slane %v1026, %v1030
      %v1033 = vadd.f32 %v1024, %v1031
      %v1034 = vadd.f32 %v1025, %v1031
      %v1035 = vmax.f32 %v1033, 0.0
      %v1036 = vmax.f32 %v1034, 0.0
      %v1037 = vlaneseq
      %v1038 = vshrl.u32 %v1037, 7
      %v1039 = vadd.s32 %v1038, 8
      %s1040 = smul.u32 %s20, 16
      %v1041 = vstv %s1040
      %v1042 = vadd.s32 %v1038, %v1041
      %v1043 = vadd.s32 %v1039, %v1041
      %vm1044 = vcmp.ge.s32.totalorder %v1042, 1
      %vm1045 = vcmp.ge.s32.totalorder %v1043, 1
      %vm1046 = vcmp.le.s32.totalorder %v1042, 13
      %vm1047 = vcmp.le.s32.totalorder %v1043, 13
      %vm1048 = vmand %vm1044, %vm1046
      %vm1049 = vmand %vm1045, %vm1047
      %v1050 = vsel %vm1048, 1, 0
      %v1051 = vsel %vm1049, 1, 0
      %vm1052 = vcmp.eq.s32.totalorder %v1050, 1
      %vm1053 = vcmp.eq.s32.totalorder %v1051, 1
      %v1054 = vsel %vm1052, %v1035, 0.0
      %v1055 = vsel %vm1053, %v1036, 0.0
      %1056 = vst [vmem:[#allocation3] sm:$0xff] %v1054
      %1057 = vst [vmem:[#allocation3 + $0x8] sm:$0xff] %v1055
      %v1058 = vld [vmem:[#allocation3] ss:$2 sm:$0xff]
      %s1059 = scalar_lea.vmem [#allocation3], 1
      %v1060 = vld [vmem:[%s1059] ss:$2 sm:$0xff]
      %v1061 = vmax.f32 %v1058, %v1060
      %1062 = vst [vmem:[%s276] sm:$0xff] %v1061
      %p1063 = scmp.lt.s32.totalorder %s19, 1
      %s1064 = scalar_select %p1063, %s19, 1
      %p1065 = scmp.lt.s32.totalorder %s20, 0
      %s1066 = scalar_select %p1065, %s20, 0
      %s1067 = sadd.s32 %s1066, %s1064
      %s1068 = smul.addr %s1067, 8
      %s1069 = scalar_lea.vmem %s4, %s1068
      // Predicated region
      $region37: #{output_encoder_forward.4} parent=35 // pred_check
        %p1070 = pneg %p149
      $region38: #{output_encoder_forward.4} parent=35 // pred_check_branch
        %1072 = sbr.rel (%p1070) target = $region40
      $region39: #{output_encoder_forward.4} parent=35 // pred_region
        _
      $region40: #{output_encoder_forward.4} parent=35 // pred_fallthru
        _
    $region36: #{output_encoder_forward.4} parent=5 // pred_fallthru
      _
    %p1073 = scmp.le.s32.totalorder 2, %s10
    // Predicated region
    $region41: #{output_encoder_forward.4} parent=5 // pred_check
      %p1074 = pneg %p1073
    $region42: #{output_encoder_forward.4} parent=5 // pred_check_branch
      %1076 = sbr.rel (%p1074) target = $region44
    $region43: #{output_encoder_forward.4} parent=5 // pred_region
      %s1077 = ssub.s32 %s10, 2
      // Predicated region
      $region45: #{output_encoder_forward.4} parent=43 // pred_check
        %p1078 = pneg %p155
      $region46: #{output_encoder_forward.4} parent=43 // pred_check_branch
        %1080 = sbr.rel (%p1078) target = $region48
      $region47: #{output_encoder_forward.4} parent=43 // pred_region
        %p1081 = scmp.lt.s32.totalorder %s21, 1
        %s1082 = scalar_select %p1081, %s21, 1
        %p1083 = scmp.lt.s32.totalorder %s22, 0
        %s1084 = scalar_select %p1083, %s22, 0
        %s1085 = sadd.s32 %s1084, %s1082
        %s1086 = smul.addr %s1085, 8
        %s1087 = scalar_lea.vmem %s4, %s1086
      $region48: #{output_encoder_forward.4} parent=43 // pred_fallthru
        _
    $region44: #{output_encoder_forward.4} parent=5 // pred_fallthru
      _
  $region6: #{output_encoder_forward.4} parent=0 // loop_footer
    %s14 = sadd.s32 1, %s10
  $region7: #{output_encoder_forward.4} parent=0 // loop_footer_branch
    %9 = sbr.rel target = $region3
  $region8: #{output_encoder_forward.4} parent=0 // loop_exit
    _

// kernel: output_encoder_forward.5
$region0: #{output_encoder_forward.5}
  #allocation0 [shape = 'u32[]', space=smem, size = 0x4, offset = 0x4, fixed_abs, tag = 'smem constant byte address 0x4 - core index']
  #allocation1 [shape = 'u32[144,128]{1,0:T(1,128)}', space=vmem, size = 0x12000, scoped, tag = 'internal scratch']
  #allocation2 [shape = 'bf16[24,128]{1,0:T(8,128)(2,1)}', space=vmem, size = 0x1800, scoped, tag = 'scratch operand']
  #allocation3 [shape = 'f32[16,128]{1,0:T(8,128)}', space=vmem, size = 0x2000, scoped, tag = 'scratch operand']
  %s0 = inlined_call_operand.vmem [shape: bf16[2,32,128], index: 0, kind: input, shape index: {}, may-alias: {0,1}]
  %s1 = inlined_call_operand.vmem [shape: bf16[2,32,128], index: 1, kind: input, shape index: {}, may-alias: {0,1}]
  %s2 = inlined_call_operand.vmem [shape: bf16[8,128,128], index: 2, kind: input, shape index: {}]
  %s3 = inlined_call_operand.vmem [shape: f32[1,128], index: 3, kind: input, shape index: {}]
  %s4 = inlined_call_operand.vmem [shape: f32[2,8,128], index: 4, kind: output, shape index: {}]
  %s5 = sld [smem:[#allocation0]]
  $region49: #{output_encoder_forward.5} parent=0
    _
  %s7 = ssub.s32 1, %s5
  %s8 = scalar_select 0, %s7, %s5
  loop: start=0, step=1, limit=4
  $region2: #{output_encoder_forward.5} parent=0 // loop_pre_header
    _
  $region3: #{output_encoder_forward.5} parent=0 // loop_header
    %s10 = sphi 0, %s14
    %p11 = scmp.ge.s32.totalorder %s10, 4
    %s17 = sphi 0, %s29
    %s18 = sphi 0, %s25
    %s19 = sphi 0, %s17
    %s20 = sphi 0, %s18
    %s21 = sphi 0, %s19
    %s22 = sphi 0, %s20
    %s34 = sphi 0, %s36
    %s37 = sphi 0, %s34
    %s38 = sphi 0, %s37
    %s54 = sphi 0, %s38
    %s66 = sphi 0, %s68
    %s69 = sphi 0, %s66
    %s70 = sphi 0, %s69
    %s86 = sphi 0, %s70
    %s90 = sphi 0, %s90
    %s92 = sphi 0, %s90
    %s93 = sphi 0, %s92
    %s107 = sphi 0, %s93
    %s111 = sphi 0, %s111
    %s113 = sphi 0, %s111
    %s114 = sphi 0, %s113
    %s128 = sphi 0, %s114
    %s136 = sphi 0, %s138
    %s139 = sphi 0, %s136
    %s140 = sphi 0, %s139
    %s156 = sphi 0, %s140
  $region4: #{output_encoder_forward.5} parent=0 // loop_header_branch
    %13 = sbr.rel (%p11) target = $region8
  $region5: #{output_encoder_forward.5} parent=0 // loop_body
    %s15 = ssub.s32 %s10, 1
    %s16 = ssub.s32 %s10, 2
    %s23 = sadd.s32 1, %s18
    %p24 = scmp.ge.s32.totalorder %s23, 1
    %s25 = scalar_select %p24, 0, %s23
    %s26 = sadd.s32 1, %s17
    %s27 = scalar_select %p24, %s26, %s17
    %p28 = scmp.ge.s32.totalorder %s27, 2
    %s29 = scalar_select %p28, 0, %s27
    %s30 = ssub.s32 %s17, %s29
    %s31 = ssub.s32 %s18, %s25
    %s32 = sor.u32 %s30, %s31
    %p33 = scmp.eq.s32.totalorder %s32, 0
    %s35 = sadd.s32 %s34, 1
    %s36 = scalar_select %p33, %s34, %s35
    %p39 = pneg %p33
    %p40 = scmp.eq.s32.totalorder %s10, 1
    %p41 = por %p39, %p40
    %p42 = scmp.ne.s32.totalorder %s34, %s37
    %p43 = scmp.eq.s32.totalorder %s10, 0
    %p44 = por %p42, %p43
    %p45 = scmp.ne.s32.totalorder %s34, %s37
    %p46 = scmp.eq.s32.totalorder %s15, 1
    %p47 = por %p45, %p46
    %p48 = scmp.ne.s32.totalorder %s37, %s38
    %p49 = scmp.eq.s32.totalorder %s15, 0
    %p50 = por %p48, %p49
    %p51 = scmp.ne.s32.totalorder %s37, %s38
    %p52 = scmp.eq.s32.totalorder %s16, 1
    %p53 = por %p51, %p52
    %p55 = scmp.ne.s32.totalorder %s38, %s54
    %p56 = scmp.eq.s32.totalorder %s16, 0
    %p57 = por %p55, %p56
    %s58 = sadd.s32 %s18, 1
    %s59 = smul.u32 %s58, 2
    %s60 = sadd.s32 %s25, 1
    %s61 = smul.u32 %s60, 2
    %s62 = ssub.s32 %s17, %s29
    %s63 = ssub.s32 %s59, %s61
    %s64 = sor.u32 %s62, %s63
    %p65 = scmp.eq.s32.totalorder %s64, 0
    %s67 = sadd.s32 %s66, 1
    %s68 = scalar_select %p65, %s66, %s67
    %p71 = pneg %p65
    %p72 = scmp.eq.s32.totalorder %s10, 1
    %p73 = por %p71, %p72
    %p74 = scmp.ne.s32.totalorder %s66, %s69
    %p75 = scmp.eq.s32.totalorder %s10, 0
    %p76 = por %p74, %p75
    %p77 = scmp.ne.s32.totalorder %s66, %s69
    %p78 = scmp.eq.s32.totalorder %s15, 1
    %p79 = por %p77, %p78
    %p80 = scmp.ne.s32.totalorder %s69, %s70
    %p81 = scmp.eq.s32.totalorder %s15, 0
    %p82 = por %p80, %p81
    %p83 = scmp.ne.s32.totalorder %s69, %s70
    %p84 = scmp.eq.s32.totalorder %s16, 1
    %p85 = por %p83, %p84
    %p87 = scmp.ne.s32.totalorder %s70, %s86
    %p88 = scmp.eq.s32.totalorder %s16, 0
    %p89 = por %p87, %p88
    %s91 = sadd.s32 %s90, 1
    %p94 = scmp.eq.s32.totalorder %s10, 1
    %p95 = scmp.ne.s32.totalorder %s90, %s92
    %p96 = scmp.eq.s32.totalorder %s10, 0
    %p97 = por %p95, %p96
    %p98 = scmp.ne.s32.totalorder %s90, %s92
    %p99 = scmp.eq.s32.totalorder %s15, 1
    %p100 = por %p98, %p99
    %p101 = scmp.ne.s32.totalorder %s92, %s93
    %p102 = scmp.eq.s32.totalorder %s15, 0
    %p103 = por %p101, %p102
    %p104 = scmp.ne.s32.totalorder %s92, %s93
    %p105 = scmp.eq.s32.totalorder %s16, 1
    %p106 = por %p104, %p105
    %p108 = scmp.ne.s32.totalorder %s93, %s107
    %p109 = scmp.eq.s32.totalorder %s16, 0
    %p110 = por %p108, %p109
    %s112 = sadd.s32 %s111, 1
    %p115 = scmp.eq.s32.totalorder %s10, 1
    %p116 = scmp.ne.s32.totalorder %s111, %s113
    %p117 = scmp.eq.s32.totalorder %s10, 0
    %p118 = por %p116, %p117
    %p119 = scmp.ne.s32.totalorder %s111, %s113
    %p120 = scmp.eq.s32.totalorder %s15, 1
    %p121 = por %p119, %p120
    %p122 = scmp.ne.s32.totalorder %s113, %s114
    %p123 = scmp.eq.s32.totalorder %s15, 0
    %p124 = por %p122, %p123
    %p125 = scmp.ne.s32.totalorder %s113, %s114
    %p126 = scmp.eq.s32.totalorder %s16, 1
    %p127 = por %p125, %p126
    %p129 = scmp.ne.s32.totalorder %s114, %s128
    %p130 = scmp.eq.s32.totalorder %s16, 0
    %p131 = por %p129, %p130
    %s132 = ssub.s32 %s17, %s29
    %s133 = ssub.s32 %s18, %s25
    %s134 = sor.u32 %s132, %s133
    %p135 = scmp.eq.s32.totalorder %s134, 0
    %s137 = sadd.s32 %s136, 1
    %s138 = scalar_select %p135, %s136, %s137
    %p141 = pneg %p135
    %p142 = scmp.eq.s32.totalorder %s10, 1
    %p143 = por %p141, %p142
    %p144 = scmp.ne.s32.totalorder %s136, %s139
    %p145 = scmp.eq.s32.totalorder %s10, 0
    %p146 = por %p144, %p145
    %p147 = scmp.ne.s32.totalorder %s136, %s139
    %p148 = scmp.eq.s32.totalorder %s15, 1
    %p149 = por %p147, %p148
    %p150 = scmp.ne.s32.totalorder %s139, %s140
    %p151 = scmp.eq.s32.totalorder %s15, 0
    %p152 = por %p150, %p151
    %p153 = scmp.ne.s32.totalorder %s139, %s140
    %p154 = scmp.eq.s32.totalorder %s16, 1
    %p155 = por %p153, %p154
    %p157 = scmp.ne.s32.totalorder %s140, %s156
    %p158 = scmp.eq.s32.totalorder %s16, 0
    %p159 = por %p157, %p158
    %p160 = scmp.le.s32.totalorder 1, %s10
    %p161 = scmp.lt.s32.totalorder %s10, 3
    %p162 = pnand %p160, %p161
    %p163 = pneg %p162
    // Predicated region
    $region9: #{output_encoder_forward.5} parent=5 // pred_check
      _
    $region10: #{output_encoder_forward.5} parent=5 // pred_check_branch
      %165 = sbr.rel (%p162) target = $region12
    $region11: #{output_encoder_forward.5} parent=5 // pred_region
      %s166 = ssub.s32 %s10, 1
      // Predicated region
      $region13: #{output_encoder_forward.5} parent=11 // pred_check
        %p167 = pneg %p103
      $region14: #{output_encoder_forward.5} parent=11 // pred_check_branch
        %169 = sbr.rel (%p167) target = $region16
      $region15: #{output_encoder_forward.5} parent=11 // pred_region
        _
      $region16: #{output_encoder_forward.5} parent=11 // pred_fallthru
        _
      // Predicated region
      $region17: #{output_encoder_forward.5} parent=11 // pred_check
        %p170 = pneg %p124
      $region18: #{output_encoder_forward.5} parent=11 // pred_check_branch
        %172 = sbr.rel (%p170) target = $region20
      $region19: #{output_encoder_forward.5} parent=11 // pred_region
        _
      $region20: #{output_encoder_forward.5} parent=11 // pred_fallthru
        _
    $region12: #{output_encoder_forward.5} parent=5 // pred_fallthru
      _
    %p173 = scmp.lt.s32.totalorder %s10, 2
    // Predicated region
    $region21: #{output_encoder_forward.5} parent=5 // pred_check
      %p174 = pneg %p173
    $region22: #{output_encoder_forward.5} parent=5 // pred_check_branch
      %176 = sbr.rel (%p174) target = $region24
    $region23: #{output_encoder_forward.5} parent=5 // pred_region
      // Predicated region
      $region25: #{output_encoder_forward.5} parent=23 // pred_check
        %p177 = pneg %p44
      $region26: #{output_encoder_forward.5} parent=23 // pred_check_branch
        %179 = sbr.rel (%p177) target = $region28
      $region27: #{output_encoder_forward.5} parent=23 // pred_region
        %s180 = smul.u32 2, %s18
        %p181 = scmp.lt.s32.totalorder %s17, 1
        %s182 = scalar_select %p181, %s17, 1
        %p183 = scmp.lt.s32.totalorder %s180, 3
        %s184 = scalar_select %p183, %s180, 3
        %s185 = smul.addr %s182, 4
        %s186 = sadd.s32 %s184, %s185
        %s187 = smul.addr %s186, 4
        %s188 = scalar_lea.vmem %s0, %s187
        %s189 = smul.u32 2, %s18
      $region28: #{output_encoder_forward.5} parent=23 // pred_fallthru
        _
      // Predicated region
      $region29: #{output_encoder_forward.5} parent=23 // pred_check
        %p190 = pneg %p76
      $region30: #{output_encoder_forward.5} parent=23 // pred_check_branch
        %192 = sbr.rel (%p190) target = $region32
      $region31: #{output_encoder_forward.5} parent=23 // pred_region
        %s193 = sadd.s32 %s18, 1
        %s194 = smul.u32 %s193, 2
        %p195 = scmp.lt.s32.totalorder %s17, 1
        %s196 = scalar_select %p195, %s17, 1
        %p197 = scmp.lt.s32.totalorder %s194, 3
        %s198 = scalar_select %p197, %s194, 3
        %s199 = smul.addr %s196, 4
        %s200 = sadd.s32 %s198, %s199
        %s201 = smul.addr %s200, 4
        %s202 = scalar_lea.vmem %s1, %s201
        %s203 = sadd.s32 %s18, 1
        %s204 = smul.u32 %s203, 2
      $region32: #{output_encoder_forward.5} parent=23 // pred_fallthru
        _
    $region24: #{output_encoder_forward.5} parent=5 // pred_fallthru
      _
    %p205 = scmp.le.s32.totalorder 1, %s10
    %p206 = scmp.lt.s32.totalorder %s10, 3
    %p207 = pnand %p205, %p206
    %p208 = pneg %p207
    // Predicated region
    $region33: #{output_encoder_forward.5} parent=5 // pred_check
      _
    $region34: #{output_encoder_forward.5} parent=5 // pred_check_branch
      %210 = sbr.rel (%p207) target = $region36
    $region35: #{output_encoder_forward.5} parent=5 // pred_region
      %s211 = ssub.s32 %s10, 1
      %s212 = smul.u32 2, %s20
      %p213 = scmp.lt.s32.totalorder %s19, 1
      %s214 = scalar_select %p213, %s19, 1
      %p215 = scmp.lt.s32.totalorder %s212, 3
      %s216 = scalar_select %p215, %s212, 3
      %s217 = smul.addr %s214, 4
      %s218 = sadd.s32 %s216, %s217
      %s219 = smul.addr %s218, 4
      %s220 = scalar_lea.vmem %s0, %s219
      %p221 = pneg %p50
      %p222 = pneg %p47
      %s223 = sadd.s32 %s20, 1
      %s224 = smul.u32 %s223, 2
      %p225 = scmp.lt.s32.totalorder %s19, 1
      %s226 = scalar_select %p225, %s19, 1
      %p227 = scmp.lt.s32.totalorder %s224, 3
      %s228 = scalar_select %p227, %s224, 3
      %s229 = smul.addr %s226, 4
      %s230 = sadd.s32 %s228, %s229
      %s231 = smul.addr %s230, 4
      %s232 = scalar_lea.vmem %s1, %s231
      %p233 = pneg %p82
      %p234 = pneg %p79
      %p235 = pneg %p103
      %p236 = pneg %p100
      %p237 = pneg %p124
      %p238 = pneg %p121
      %p239 = pneg %p152
      %p240 = pneg %p149
      %p241 = scmp.lt.s32.totalorder %s19, 1
      %s242 = scalar_select %p241, %s19, 1
      %p243 = scmp.lt.s32.totalorder %s20, 0
      %s244 = scalar_select %p243, %s20, 0
      %s245 = sadd.s32 %s244, %s242
      %s246 = smul.addr %s245, 8
      %s247 = scalar_lea.vmem %s4, %s246
      %s248 = smul.u32 2, %s20
      %p249 = scmp.lt.s32.totalorder %s19, 1
      %s250 = scalar_select %p249, %s19, 1
      %p251 = scmp.lt.s32.totalorder %s248, 3
      %s252 = scalar_select %p251, %s248, 3
      %s253 = smul.addr %s250, 4
      %s254 = sadd.s32 %s252, %s253
      %s255 = smul.addr %s254, 4
      %s256 = scalar_lea.vmem %s0, %s255
      %s257 = smul.u32 2, %s20
      %s258 = sadd.s32 %s20, 1
      %s259 = smul.u32 %s258, 2
      %p260 = scmp.lt.s32.totalorder %s19, 1
      %s261 = scalar_select %p260, %s19, 1
      %p262 = scmp.lt.s32.totalorder %s259, 3
      %s263 = scalar_select %p262, %s259, 3
      %s264 = smul.addr %s261, 4
      %s265 = sadd.s32 %s263, %s264
      %s266 = smul.addr %s265, 4
      %s267 = scalar_lea.vmem %s1, %s266
      %s268 = sadd.s32 %s20, 1
      %s269 = smul.u32 %s268, 2
      %p270 = scmp.lt.s32.totalorder %s19, 1
      %s271 = scalar_select %p270, %s19, 1
      %p272 = scmp.lt.s32.totalorder %s20, 0
      %s273 = scalar_select %p272, %s20, 0
      %s274 = sadd.s32 %s273, %s271
      %s275 = smul.addr %s274, 8
      %s276 = scalar_lea.vmem %s4, %s275
      %v278 = vld [vmem:[%s256] sm:$0xf]
      %v279 = vld [vmem:[%s256 + $0x4] sm:$0xf]
      %280 = vst [vmem:[#allocation2] sm:$0xf] %v278
      %281 = vst [vmem:[#allocation2 + $0x4] sm:$0xf] %v279
      %v282 = vld [vmem:[%s267] sm:$0xf]
      %283 = vst [vmem:[#allocation2 + $0x8] sm:$0xf] %v282
      %v284 = vld [vmem:[#allocation2] sm:$0xf]
      %v285 = vld [vmem:[#allocation2 + $0x4] sm:$0xf]
      %v286 = vld [vmem:[%s2] sm:$0xf]
      %v287 = vld [vmem:[%s2 + $0x4] sm:$0xf]
      %v288 = vld [vmem:[%s2 + $0x8] sm:$0xf]
      %v289 = vld [vmem:[%s2 + $0xc] sm:$0xf]
      %v290 = vld [vmem:[%s2 + $0x10] sm:$0xf]
      %v291 = vld [vmem:[%s2 + $0x14] sm:$0xf]
      %v292 = vld [vmem:[%s2 + $0x18] sm:$0xf]
      %v293 = vld [vmem:[%s2 + $0x1c] sm:$0xf]
      %v294 = vld [vmem:[%s2 + $0x20] sm:$0xf]
      %v295 = vld [vmem:[%s2 + $0x24] sm:$0xf]
      %v296 = vld [vmem:[%s2 + $0x28] sm:$0xf]
      %v297 = vld [vmem:[%s2 + $0x2c] sm:$0xf]
      %v298 = vld [vmem:[%s2 + $0x30] sm:$0xf]
      %v299 = vld [vmem:[%s2 + $0x34] sm:$0xf]
      %v300 = vld [vmem:[%s2 + $0x38] sm:$0xf]
      %v301 = vld [vmem:[%s2 + $0x3c] sm:$0xf]
      %v302 = vld [vmem:[#allocation2] sm:$0xf]
      %v303 = vld [vmem:[#allocation2 + $0x4] sm:$0xf]
      %v304 = vld [vmem:[#allocation2 + $0x8] sm:$0x1]
      %s305 = scalar_lea.vmem %s2, 64
      %v306 = vld [vmem:[%s305] sm:$0xf]
      %v307 = vld [vmem:[%s305 + $0x4] sm:$0xf]
      %v308 = vld [vmem:[%s305 + $0x8] sm:$0xf]
      %v309 = vld [vmem:[%s305 + $0xc] sm:$0xf]
      %v310 = vld [vmem:[%s305 + $0x10] sm:$0xf]
      %v311 = vld [vmem:[%s305 + $0x14] sm:$0xf]
      %v312 = vld [vmem:[%s305 + $0x18] sm:$0xf]
      %v313 = vld [vmem:[%s305 + $0x1c] sm:$0xf]
      %v314 = vld [vmem:[%s305 + $0x20] sm:$0xf]
      %v315 = vld [vmem:[%s305 + $0x24] sm:$0xf]
      %v316 = vld [vmem:[%s305 + $0x28] sm:$0xf]
      %v317 = vld [vmem:[%s305 + $0x2c] sm:$0xf]
      %v318 = vld [vmem:[%s305 + $0x30] sm:$0xf]
      %v319 = vld [vmem:[%s305 + $0x34] sm:$0xf]
      %v320 = vld [vmem:[%s305 + $0x38] sm:$0xf]
      %v321 = vld [vmem:[%s305 + $0x3c] sm:$0xf]
      %v325 = vunpack.c.l.b16 %v302
      %v326 = vunpack.c.l.b16 %v303
      %v327 = vunpack.c.l.b16 %v304
      %v328 = vpack.c.b16 %v326, %v325
      %v329 = vpack.c.b16 %v327, %v327
      %vm330 = vsmask.f32 7424
      %v332 = vshrl.u32 %v328, 16
      %v334 = vshll.u32 %v328, 16
      %v336 = vrot.slane %v334, 1
      %v337 = vor.u32 %v332, %v336
      %v339 = vshll.u32 %v329, 16
      %v341 = vrot.slane %v339, 1
      %v342 = vsel %vm330, %v337, %v341
      %v360 = vunpack.c.l.b16 %v306
      %v361 = vunpack.c.l.b16 %v307
      %v362 = vunpack.c.l.b16 %v308
      %v363 = vunpack.c.l.b16 %v309
      %v364 = vunpack.c.l.b16 %v310
      %v365 = vunpack.c.l.b16 %v311
      %v366 = vunpack.c.l.b16 %v312
      %v367 = vunpack.c.l.b16 %v313
      %v368 = vunpack.c.l.b16 %v314
      %v369 = vunpack.c.l.b16 %v315
      %v370 = vunpack.c.l.b16 %v316
      %v371 = vunpack.c.l.b16 %v317
      %v372 = vunpack.c.l.b16 %v318
      %v373 = vunpack.c.l.b16 %v319
      %v374 = vunpack.c.l.b16 %v320
      %v375 = vunpack.c.l.b16 %v321
      %v376 = vpack.c.b16 %v361, %v360
      %v377 = vpack.c.b16 %v363, %v362
      %v378 = vpack.c.b16 %v365, %v364
      %v379 = vpack.c.b16 %v367, %v366
      %v380 = vpack.c.b16 %v369, %v368
      %v381 = vpack.c.b16 %v371, %v370
      %v382 = vpack.c.b16 %v373, %v372
      %v383 = vpack.c.b16 %v375, %v374
      %392 = vmatprep.subr.bf16.mxu0 0
      %393 = vmatpush1.bf16.msra.mxu0 %v383
      %394 = vmatprep.subr.bf16.mxu0 0
      %395 = vmatpush1.bf16.msra.mxu0 %v382
      %396 = vmatprep.subr.bf16.mxu0 0
      %397 = vmatpush1.bf16.msra.mxu0 %v381
      %398 = vmatprep.subr.bf16.mxu0 0
      %399 = vmatpush1.bf16.msra.mxu0 %v380
      %400 = vmatprep.subr.bf16.mxu0 0
      %401 = vmatpush1.bf16.msra.mxu0 %v379
      %402 = vmatprep.subr.bf16.mxu0 0
      %403 = vmatpush1.bf16.msra.mxu0 %v378
      %404 = vmatprep.subr.bf16.mxu0 0
      %405 = vmatpush1.bf16.msra.mxu0 %v377
      %406 = vmatprep.subr.bf16.mxu0 0
      %407 = vmatpush1.bf16.msra.mxu0 %v376
      %408 = vmatprep.subr.bf16.mxu0 0
      %409 = vmatpush2.bf16.msra.mxu0 0
      %410 = vmatprep.subr.bf16.mxu0 0
      %411 = vmatpush2.bf16.msra.mxu0 0
      %412 = vmatprep.subr.bf16.mxu0 0
      %413 = vmatpush2.bf16.msra.mxu0 0
      %414 = vmatprep.subr.bf16.mxu0 0
      %415 = vmatpush2.bf16.msra.mxu0 0
      %416 = vmatprep.subr.bf16.mxu0 0
      %417 = vmatpush2.bf16.msra.mxu0 0
      %418 = vmatprep.subr.bf16.mxu0 0
      %419 = vmatpush2.bf16.msra.mxu0 0
      %420 = vmatprep.subr.bf16.mxu0 0
      %421 = vmatpush2.bf16.msra.mxu0 0
      %422 = vmatprep.subr.bf16.mxu0 0
      %423 = vmatpush2.bf16.msra.mxu0 0
      %424 = vmatprep.mubr.bf16.mxu0 0
      %425 = vmatmul.mubr.bf16.gmra.mxu0 %v342
      %v426 = vpop.f32.mrf.mxu0
      %v427 = vadd.f32 0.0, %v426
      %v428 = vpop.f32.mrf.mxu0
      %v429 = vpop.f32.mrf.mxu0
      %v430 = vadd.f32 0.0, %v429
      %v431 = vpop.f32.mrf.mxu0
      %432 = vdwg.mxu0
      %v435 = vunpack.c.l.b16 %v284
      %v436 = vunpack.c.l.b16 %v285
      %v437 = vpack.c.b16 %v436, %v435
      %v455 = vunpack.c.l.b16 %v286
      %v456 = vunpack.c.l.b16 %v287
      %v457 = vunpack.c.l.b16 %v288
      %v458 = vunpack.c.l.b16 %v289
      %v459 = vunpack.c.l.b16 %v290
      %v460 = vunpack.c.l.b16 %v291
      %v461 = vunpack.c.l.b16 %v292
      %v462 = vunpack.c.l.b16 %v293
      %v463 = vunpack.c.l.b16 %v294
      %v464 = vunpack.c.l.b16 %v295
      %v465 = vunpack.c.l.b16 %v296
      %v466 = vunpack.c.l.b16 %v297
      %v467 = vunpack.c.l.b16 %v298
      %v468 = vunpack.c.l.b16 %v299
      %v469 = vunpack.c.l.b16 %v300
      %v470 = vunpack.c.l.b16 %v301
      %v471 = vpack.c.b16 %v456, %v455
      %v472 = vpack.c.b16 %v458, %v457
      %v473 = vpack.c.b16 %v460, %v459
      %v474 = vpack.c.b16 %v462, %v461
      %v475 = vpack.c.b16 %v464, %v463
      %v476 = vpack.c.b16 %v466, %v465
      %v477 = vpack.c.b16 %v468, %v467
      %v478 = vpack.c.b16 %v470, %v469
      %487 = vmatprep.subr.bf16.mxu0 0
      %488 = vmatpush1.bf16.msra.mxu0 %v478
      %489 = vmatprep.subr.bf16.mxu0 0
      %490 = vmatpush1.bf16.msra.mxu0 %v477
      %491 = vmatprep.subr.bf16.mxu0 0
      %492 = vmatpush1.bf16.msra.mxu0 %v476
      %493 = vmatprep.subr.bf16.mxu0 0
      %494 = vmatpush1.bf16.msra.mxu0 %v475
      %495 = vmatprep.subr.bf16.mxu0 0
      %496 = vmatpush1.bf16.msra.mxu0 %v474
      %497 = vmatprep.subr.bf16.mxu0 0
      %498 = vmatpush1.bf16.msra.mxu0 %v473
      %499 = vmatprep.subr.bf16.mxu0 0
      %500 = vmatpush1.bf16.msra.mxu0 %v472
      %501 = vmatprep.subr.bf16.mxu0 0
      %502 = vmatpush1.bf16.msra.mxu0 %v471
      %503 = vmatprep.subr.bf16.mxu0 0
      %504 = vmatpush2.bf16.msra.mxu0 0
      %505 = vmatprep.subr.bf16.mxu0 0
      %506 = vmatpush2.bf16.msra.mxu0 0
      %507 = vmatprep.subr.bf16.mxu0 0
      %508 = vmatpush2.bf16.msra.mxu0 0
      %509 = vmatprep.subr.bf16.mxu0 0
      %510 = vmatpush2.bf16.msra.mxu0 0
      %511 = vmatprep.subr.bf16.mxu0 0
      %512 = vmatpush2.bf16.msra.mxu0 0
      %513 = vmatprep.subr.bf16.mxu0 0
      %514 = vmatpush2.bf16.msra.mxu0 0
      %515 = vmatprep.subr.bf16.mxu0 0
      %516 = vmatpush2.bf16.msra.mxu0 0
      %517 = vmatprep.subr.bf16.mxu0 0
      %518 = vmatpush2.bf16.msra.mxu0 0
      %519 = vmatprep.mubr.bf16.mxu0 0
      %520 = vmatmul.mubr.bf16.gmra.mxu0 %v437
      %v521 = vpop.f32.mrf.mxu0
      %v522 = vadd.f32 %v427, %v521
      %v523 = vpop.f32.mrf.mxu0
      %v524 = vpop.f32.mrf.mxu0
      %v525 = vadd.f32 %v430, %v524
      %v526 = vpop.f32.mrf.mxu0
      %527 = vdwg.mxu0
      %v528 = vld [vmem:[#allocation2] sm:$0xe]
      %s529 = scalar_lea.vmem %s2, 128
      %v530 = vld [vmem:[%s529] sm:$0xf]
      %v531 = vld [vmem:[%s529 + $0x4] sm:$0xf]
      %v532 = vld [vmem:[%s529 + $0x8] sm:$0xf]
      %v533 = vld [vmem:[%s529 + $0xc] sm:$0xf]
      %v534 = vld [vmem:[%s529 + $0x10] sm:$0xf]
      %v535 = vld [vmem:[%s529 + $0x14] sm:$0xf]
      %v536 = vld [vmem:[%s529 + $0x18] sm:$0xf]
      %v537 = vld [vmem:[%s529 + $0x1c] sm:$0xf]
      %v538 = vld [vmem:[%s529 + $0x20] sm:$0xf]
      %v539 = vld [vmem:[%s529 + $0x24] sm:$0xf]
      %v540 = vld [vmem:[%s529 + $0x28] sm:$0xf]
      %v541 = vld [vmem:[%s529 + $0x2c] sm:$0xf]
      %v542 = vld [vmem:[%s529 + $0x30] sm:$0xf]
      %v543 = vld [vmem:[%s529 + $0x34] sm:$0xf]
      %v544 = vld [vmem:[%s529 + $0x38] sm:$0xf]
      %v545 = vld [vmem:[%s529 + $0x3c] sm:$0xf]
      %v547 = vunpack.c.l.b16 %v528
      %v548 = vpack.c.b16 %v326, %v547
      %vm549 = vcmask 1046528
      %v550 = vrot.slane %v548, 1
      %v551 = vrot.slane %v329, 1
      %v552 = vsel %vm549, %v550, %v551
      %v570 = vunpack.c.l.b16 %v530
      %v571 = vunpack.c.l.b16 %v531
      %v572 = vunpack.c.l.b16 %v532
      %v573 = vunpack.c.l.b16 %v533
      %v574 = vunpack.c.l.b16 %v534
      %v575 = vunpack.c.l.b16 %v535
      %v576 = vunpack.c.l.b16 %v536
      %v577 = vunpack.c.l.b16 %v537
      %v578 = vunpack.c.l.b16 %v538
      %v579 = vunpack.c.l.b16 %v539
      %v580 = vunpack.c.l.b16 %v540
      %v581 = vunpack.c.l.b16 %v541
      %v582 = vunpack.c.l.b16 %v542
      %v583 = vunpack.c.l.b16 %v543
      %v584 = vunpack.c.l.b16 %v544
      %v585 = vunpack.c.l.b16 %v545
      %v586 = vpack.c.b16 %v571, %v570
      %v587 = vpack.c.b16 %v573, %v572
      %v588 = vpack.c.b16 %v575, %v574
      %v589 = vpack.c.b16 %v577, %v576
      %v590 = vpack.c.b16 %v579, %v578
      %v591 = vpack.c.b16 %v581, %v580
      %v592 = vpack.c.b16 %v583, %v582
      %v593 = vpack.c.b16 %v585, %v584
      %602 = vmatprep.subr.bf16.mxu0 0
      %603 = vmatpush1.bf16.msra.mxu0 %v593
      %604 = vmatprep.subr.bf16.mxu0 0
      %605 = vmatpush1.bf16.msra.mxu0 %v592
      %606 = vmatprep.subr.bf16.mxu0 0
      %607 = vmatpush1.bf16.msra.mxu0 %v591
      %608 = vmatprep.subr.bf16.mxu0 0
      %609 = vmatpush1.bf16.msra.mxu0 %v590
      %610 = vmatprep.subr.bf16.mxu0 0
      %611 = vmatpush1.bf16.msra.mxu0 %v589
      %612 = vmatprep.subr.bf16.mxu0 0
      %613 = vmatpush1.bf16.msra.mxu0 %v588
      %614 = vmatprep.subr.bf16.mxu0 0
      %615 = vmatpush1.bf16.msra.mxu0 %v587
      %616 = vmatprep.subr.bf16.mxu0 0
      %617 = vmatpush1.bf16.msra.mxu0 %v586
      %618 = vmatprep.subr.bf16.mxu0 0
      %619 = vmatpush2.bf16.msra.mxu0 0
      %620 = vmatprep.subr.bf16.mxu0 0
      %621 = vmatpush2.bf16.msra.mxu0 0
      %622 = vmatprep.subr.bf16.mxu0 0
      %623 = vmatpush2.bf16.msra.mxu0 0
      %624 = vmatprep.subr.bf16.mxu0 0
      %625 = vmatpush2.bf16.msra.mxu0 0
      %626 = vmatprep.subr.bf16.mxu0 0
      %627 = vmatpush2.bf16.msra.mxu0 0
      %628 = vmatprep.subr.bf16.mxu0 0
      %629 = vmatpush2.bf16.msra.mxu0 0
      %630 = vmatprep.subr.bf16.mxu0 0
      %631 = vmatpush2.bf16.msra.mxu0 0
      %632 = vmatprep.subr.bf16.mxu0 0
      %633 = vmatpush2.bf16.msra.mxu0 0
      %634 = vmatprep.mubr.bf16.mxu0 0
      %635 = vmatmul.mubr.bf16.gmra.mxu0 %v552
      %v636 = vpop.f32.mrf.mxu0
      %v637 = vadd.f32 0.0, %v636
      %v638 = vpop.f32.mrf.mxu0
      %v639 = vpop.f32.mrf.mxu0
      %v640 = vadd.f32 0.0, %v639
      %v641 = vpop.f32.mrf.mxu0
      %642 = vdwg.mxu0
      %v643 = vadd.f32 %v522, %v637
      %v644 = vadd.f32 %v525, %v640
      %v645 = vld [vmem:[#allocation2 + $0x8] sm:$0x3]
      %s646 = scalar_lea.vmem %s2, 192
      %v647 = vld [vmem:[%s646] sm:$0xf]
      %v648 = vld [vmem:[%s646 + $0x4] sm:$0xf]
      %v649 = vld [vmem:[%s646 + $0x8] sm:$0xf]
      %v650 = vld [vmem:[%s646 + $0xc] sm:$0xf]
      %v651 = vld [vmem:[%s646 + $0x10] sm:$0xf]
      %v652 = vld [vmem:[%s646 + $0x14] sm:$0xf]
      %v653 = vld [vmem:[%s646 + $0x18] sm:$0xf]
      %v654 = vld [vmem:[%s646 + $0x1c] sm:$0xf]
      %v655 = vld [vmem:[%s646 + $0x20] sm:$0xf]
      %v656 = vld [vmem:[%s646 + $0x24] sm:$0xf]
      %v657 = vld [vmem:[%s646 + $0x28] sm:$0xf]
      %v658 = vld [vmem:[%s646 + $0x2c] sm:$0xf]
      %v659 = vld [vmem:[%s646 + $0x30] sm:$0xf]
      %v660 = vld [vmem:[%s646 + $0x34] sm:$0xf]
      %v661 = vld [vmem:[%s646 + $0x38] sm:$0xf]
      %v662 = vld [vmem:[%s646 + $0x3c] sm:$0xf]
      %v664 = vunpack.c.l.b16 %v645
      %v665 = vpack.c.b16 %v664, %v664
      %vm666 = vsmask.f32 6400
      %v668 = vshrl.u32 %v548, 16
      %v670 = vrot.slane %v668, 1
      %v671 = vshll.u32 %v548, 16
      %v673 = vrot.slane %v671, 2
      %v674 = vor.u32 %v670, %v673
      %v676 = vshrl.u32 %v665, 16
      %v678 = vrot.slane %v676, 1
      %v679 = vshll.u32 %v665, 16
      %v681 = vrot.slane %v679, 2
      %v682 = vor.u32 %v678, %v681
      %v683 = vsel %vm666, %v674, %v682
      %v701 = vunpack.c.l.b16 %v647
      %v702 = vunpack.c.l.b16 %v648
      %v703 = vunpack.c.l.b16 %v649
      %v704 = vunpack.c.l.b16 %v650
      %v705 = vunpack.c.l.b16 %v651
      %v706 = vunpack.c.l.b16 %v652
      %v707 = vunpack.c.l.b16 %v653
      %v708 = vunpack.c.l.b16 %v654
      %v709 = vunpack.c.l.b16 %v655
      %v710 = vunpack.c.l.b16 %v656
      %v711 = vunpack.c.l.b16 %v657
      %v712 = vunpack.c.l.b16 %v658
      %v713 = vunpack.c.l.b16 %v659
      %v714 = vunpack.c.l.b16 %v660
      %v715 = vunpack.c.l.b16 %v661
      %v716 = vunpack.c.l.b16 %v662
      %v717 = vpack.c.b16 %v702, %v701
      %v718 = vpack.c.b16 %v704, %v703
      %v719 = vpack.c.b16 %v706, %v705
      %v720 = vpack.c.b16 %v708, %v707
      %v721 = vpack.c.b16 %v710, %v709
      %v722 = vpack.c.b16 %v712, %v711
      %v723 = vpack.c.b16 %v714, %v713
      %v724 = vpack.c.b16 %v716, %v715
      %733 = vmatprep.subr.bf16.mxu0 0
      %734 = vmatpush1.bf16.msra.mxu0 %v724
      %735 = vmatprep.subr.bf16.mxu0 0
      %736 = vmatpush1.bf16.msra.mxu0 %v723
      %737 = vmatprep.subr.bf16.mxu0 0
      %738 = vmatpush1.bf16.msra.mxu0 %v722
      %739 = vmatprep.subr.bf16.mxu0 0
      %740 = vmatpush1.bf16.msra.mxu0 %v721
      %741 = vmatprep.subr.bf16.mxu0 0
      %742 = vmatpush1.bf16.msra.mxu0 %v720
      %743 = vmatprep.subr.bf16.mxu0 0
      %744 = vmatpush1.bf16.msra.mxu0 %v719
      %745 = vmatprep.subr.bf16.mxu0 0
      %746 = vmatpush1.bf16.msra.mxu0 %v718
      %747 = vmatprep.subr.bf16.mxu0 0
      %748 = vmatpush1.bf16.msra.mxu0 %v717
      %749 = vmatprep.subr.bf16.mxu0 0
      %750 = vmatpush2.bf16.msra.mxu0 0
      %751 = vmatprep.subr.bf16.mxu0 0
      %752 = vmatpush2.bf16.msra.mxu0 0
      %753 = vmatprep.subr.bf16.mxu0 0
      %754 = vmatpush2.bf16.msra.mxu0 0
      %755 = vmatprep.subr.bf16.mxu0 0
      %756 = vmatpush2.bf16.msra.mxu0 0
      %757 = vmatprep.subr.bf16.mxu0 0
      %758 = vmatpush2.bf16.msra.mxu0 0
      %759 = vmatprep.subr.bf16.mxu0 0
      %760 = vmatpush2.bf16.msra.mxu0 0
      %761 = vmatprep.subr.bf16.mxu0 0
      %762 = vmatpush2.bf16.msra.mxu0 0
      %763 = vmatprep.subr.bf16.mxu0 0
      %764 = vmatpush2.bf16.msra.mxu0 0
      %765 = vmatprep.mubr.bf16.mxu0 0
      %766 = vmatmul.mubr.bf16.gmra.mxu0 %v683
      %v767 = vpop.f32.mrf.mxu0
      %v768 = vadd.f32 0.0, %v767
      %v769 = vpop.f32.mrf.mxu0
      %v770 = vpop.f32.mrf.mxu0
      %v771 = vadd.f32 0.0, %v770
      %v772 = vpop.f32.mrf.mxu0
      %773 = vdwg.mxu0
      %v774 = vadd.f32 %v643, %v768
      %v775 = vadd.f32 %v644, %v771
      %v776 = vld [vmem:[#allocation2] sm:$0xc]
      %s777 = scalar_lea.vmem %s2, 256
      %v778 = vld [vmem:[%s777] sm:$0xf]
      %v779 = vld [vmem:[%s777 + $0x4] sm:$0xf]
      %v780 = vld [vmem:[%s777 + $0x8] sm:$0xf]
      %v781 = vld [vmem:[%s777 + $0xc] sm:$0xf]
      %v782 = vld [vmem:[%s777 + $0x10] sm:$0xf]
      %v783 = vld [vmem:[%s777 + $0x14] sm:$0xf]
      %v784 = vld [vmem:[%s777 + $0x18] sm:$0xf]
      %v785 = vld [vmem:[%s777 + $0x1c] sm:$0xf]
      %v786 = vld [vmem:[%s777 + $0x20] sm:$0xf]
      %v787 = vld [vmem:[%s777 + $0x24] sm:$0xf]
      %v788 = vld [vmem:[%s777 + $0x28] sm:$0xf]
      %v789 = vld [vmem:[%s777 + $0x2c] sm:$0xf]
      %v790 = vld [vmem:[%s777 + $0x30] sm:$0xf]
      %v791 = vld [vmem:[%s777 + $0x34] sm:$0xf]
      %v792 = vld [vmem:[%s777 + $0x38] sm:$0xf]
      %v793 = vld [vmem:[%s777 + $0x3c] sm:$0xf]
      %v795 = vunpack.c.l.b16 %v776
      %v796 = vpack.c.b16 %v326, %v795
      %vm797 = vcmask 1045504
      %v798 = vrot.slane %v796, 2
      %v799 = vrot.slane %v665, 2
      %v800 = vsel %vm797, %v798, %v799
      %v818 = vunpack.c.l.b16 %v778
      %v819 = vunpack.c.l.b16 %v779
      %v820 = vunpack.c.l.b16 %v780
      %v821 = vunpack.c.l.b16 %v781
      %v822 = vunpack.c.l.b16 %v782
      %v823 = vunpack.c.l.b16 %v783
      %v824 = vunpack.c.l.b16 %v784
      %v825 = vunpack.c.l.b16 %v785
      %v826 = vunpack.c.l.b16 %v786
      %v827 = vunpack.c.l.b16 %v787
      %v828 = vunpack.c.l.b16 %v788
      %v829 = vunpack.c.l.b16 %v789
      %v830 = vunpack.c.l.b16 %v790
      %v831 = vunpack.c.l.b16 %v791
      %v832 = vunpack.c.l.b16 %v792
      %v833 = vunpack.c.l.b16 %v793
      %v834 = vpack.c.b16 %v819, %v818
      %v835 = vpack.c.b16 %v821, %v820
      %v836 = vpack.c.b16 %v823, %v822
      %v837 = vpack.c.b16 %v825, %v824
      %v838 = vpack.c.b16 %v827, %v826
      %v839 = vpack.c.b16 %v829, %v828
      %v840 = vpack.c.b16 %v831, %v830
      %v841 = vpack.c.b16 %v833, %v832
      %850 = vmatprep.subr.bf16.mxu0 0
      %851 = vmatpush1.bf16.msra.mxu0 %v841
      %852 = vmatprep.subr.bf16.mxu0 0
      %853 = vmatpush1.bf16.msra.mxu0 %v840
      %854 = vmatprep.subr.bf16.mxu0 0
      %855 = vmatpush1.bf16.msra.mxu0 %v839
      %856 = vmatprep.subr.bf16.mxu0 0
      %857 = vmatpush1.bf16.msra.mxu0 %v838
      %858 = vmatprep.subr.bf16.mxu0 0
      %859 = vmatpush1.bf16.msra.mxu0 %v837
      %860 = vmatprep.subr.bf16.mxu0 0
      %861 = vmatpush1.bf16.msra.mxu0 %v836
      %862 = vmatprep.subr.bf16.mxu0 0
      %863 = vmatpush1.bf16.msra.mxu0 %v835
      %864 = vmatprep.subr.bf16.mxu0 0
      %865 = vmatpush1.bf16.msra.mxu0 %v834
      %866 = vmatprep.subr.bf16.mxu0 0
      %867 = vmatpush2.bf16.msra.mxu0 0
      %868 = vmatprep.subr.bf16.mxu0 0
      %869 = vmatpush2.bf16.msra.mxu0 0
      %870 = vmatprep.subr.bf16.mxu0 0
      %871 = vmatpush2.bf16.msra.mxu0 0
      %872 = vmatprep.subr.bf16.mxu0 0
      %873 = vmatpush2.bf16.msra.mxu0 0
      %874 = vmatprep.subr.bf16.mxu0 0
      %875 = vmatpush2.bf16.msra.mxu0 0
      %876 = vmatprep.subr.bf16.mxu0 0
      %877 = vmatpush2.bf16.msra.mxu0 0
      %878 = vmatprep.subr.bf16.mxu0 0
      %879 = vmatpush2.bf16.msra.mxu0 0
      %880 = vmatprep.subr.bf16.mxu0 0
      %881 = vmatpush2.bf16.msra.mxu0 0
      %882 = vmatprep.mubr.bf16.mxu0 0
      %883 = vmatmul.mubr.bf16.gmra.mxu0 %v800
      %v884 = vpop.f32.mrf.mxu0
      %v885 = vadd.f32 0.0, %v884
      %v886 = vpop.f32.mrf.mxu0
      %v887 = vpop.f32.mrf.mxu0
      %v888 = vadd.f32 0.0, %v887
      %v889 = vpop.f32.mrf.mxu0
      %890 = vdwg.mxu0
      %v891 = vadd.f32 %v774, %v885
      %v892 = vadd.f32 %v775, %v888
      %v893 = vld [vmem:[#allocation2 + $0x8] sm:$0x7]
      %s894 = scalar_lea.vmem %s2, 320
      %v895 = vld [vmem:[%s894] sm:$0xf]
      %v896 = vld [vmem:[%s894 + $0x4] sm:$0xf]
      %v897 = vld [vmem:[%s894 + $0x8] sm:$0xf]
      %v898 = vld [vmem:[%s894 + $0xc] sm:$0xf]
      %v899 = vld [vmem:[%s894 + $0x10] sm:$0xf]
      %v900 = vld [vmem:[%s894 + $0x14] sm:$0xf]
      %v901 = vld [vmem:[%s894 + $0x18] sm:$0xf]
      %v902 = vld [vmem:[%s894 + $0x1c] sm:$0xf]
      %v903 = vld [vmem:[%s894 + $0x20] sm:$0xf]
      %v904 = vld [vmem:[%s894 + $0x24] sm:$0xf]
      %v905 = vld [vmem:[%s894 + $0x28] sm:$0xf]
      %v906 = vld [vmem:[%s894 + $0x2c] sm:$0xf]
      %v907 = vld [vmem:[%s894 + $0x30] sm:$0xf]
      %v908 = vld [vmem:[%s894 + $0x34] sm:$0xf]
      %v909 = vld [vmem:[%s894 + $0x38] sm:$0xf]
      %v910 = vld [vmem:[%s894 + $0x3c] sm:$0xf]
      %v912 = vunpack.c.l.b16 %v893
      %v913 = vpack.c.b16 %v912, %v912
      %vm914 = vsmask.f32 5376
      %v916 = vshrl.u32 %v796, 16
      %v918 = vrot.slane %v916, 2
      %v919 = vshll.u32 %v796, 16
      %v921 = vrot.slane %v919, 3
      %v922 = vor.u32 %v918, %v921
      %v924 = vshrl.u32 %v913, 16
      %v926 = vrot.slane %v924, 2
      %v927 = vshll.u32 %v913, 16
      %v929 = vrot.slane %v927, 3
      %v930 = vor.u32 %v926, %v929
      %v931 = vsel %vm914, %v922, %v930
      %v949 = vunpack.c.l.b16 %v895
      %v950 = vunpack.c.l.b16 %v896
      %v951 = vunpack.c.l.b16 %v897
      %v952 = vunpack.c.l.b16 %v898
      %v953 = vunpack.c.l.b16 %v899
      %v954 = vunpack.c.l.b16 %v900
      %v955 = vunpack.c.l.b16 %v901
      %v956 = vunpack.c.l.b16 %v902
      %v957 = vunpack.c.l.b16 %v903
      %v958 = vunpack.c.l.b16 %v904
      %v959 = vunpack.c.l.b16 %v905
      %v960 = vunpack.c.l.b16 %v906
      %v961 = vunpack.c.l.b16 %v907
      %v962 = vunpack.c.l.b16 %v908
      %v963 = vunpack.c.l.b16 %v909
      %v964 = vunpack.c.l.b16 %v910
      %v965 = vpack.c.b16 %v950, %v949
      %v966 = vpack.c.b16 %v952, %v951
      %v967 = vpack.c.b16 %v954, %v953
      %v968 = vpack.c.b16 %v956, %v955
      %v969 = vpack.c.b16 %v958, %v957
      %v970 = vpack.c.b16 %v960, %v959
      %v971 = vpack.c.b16 %v962, %v961
      %v972 = vpack.c.b16 %v964, %v963
      %981 = vmatprep.subr.bf16.mxu0 0
      %982 = vmatpush1.bf16.msra.mxu0 %v972
      %983 = vmatprep.subr.bf16.mxu0 0
      %984 = vmatpush1.bf16.msra.mxu0 %v971
      %985 = vmatprep.subr.bf16.mxu0 0
      %986 = vmatpush1.bf16.msra.mxu0 %v970
      %987 = vmatprep.subr.bf16.mxu0 0
      %988 = vmatpush1.bf16.msra.mxu0 %v969
      %989 = vmatprep.subr.bf16.mxu0 0
      %990 = vmatpush1.bf16.msra.mxu0 %v968
      %991 = vmatprep.subr.bf16.mxu0 0
      %992 = vmatpush1.bf16.msra.mxu0 %v967
      %993 = vmatprep.subr.bf16.mxu0 0
      %994 = vmatpush1.bf16.msra.mxu0 %v966
      %995 = vmatprep.subr.bf16.mxu0 0
      %996 = vmatpush1.bf16.msra.mxu0 %v965
      %997 = vmatprep.subr.bf16.mxu0 0
      %998 = vmatpush2.bf16.msra.mxu0 0
      %999 = vmatprep.subr.bf16.mxu0 0
      %1000 = vmatpush2.bf16.msra.mxu0 0
      %1001 = vmatprep.subr.bf16.mxu0 0
      %1002 = vmatpush2.bf16.msra.mxu0 0
      %1003 = vmatprep.subr.bf16.mxu0 0
      %1004 = vmatpush2.bf16.msra.mxu0 0
      %1005 = vmatprep.subr.bf16.mxu0 0
      %1006 = vmatpush2.bf16.msra.mxu0 0
      %1007 = vmatprep.subr.bf16.mxu0 0
      %1008 = vmatpush2.bf16.msra.mxu0 0
      %1009 = vmatprep.subr.bf16.mxu0 0
      %1010 = vmatpush2.bf16.msra.mxu0 0
      %1011 = vmatprep.subr.bf16.mxu0 0
      %1012 = vmatpush2.bf16.msra.mxu0 0
      %1013 = vmatprep.mubr.bf16.mxu0 0
      %1014 = vmatmul.mubr.bf16.gmra.mxu0 %v931
      %v1015 = vpop.f32.mrf.mxu0
      %v1016 = vadd.f32 0.0, %v1015
      %v1017 = vpop.f32.mrf.mxu0
      %v1018 = vpop.f32.mrf.mxu0
      %v1019 = vadd.f32 0.0, %v1018
      %v1020 = vpop.f32.mrf.mxu0
      %1021 = vdwg.mxu0
      %v1022 = vadd.f32 %v891, %v1016
      %v1023 = vadd.f32 %v892, %v1019
      %v1024 = vld [vmem:[#allocation2] sm:$0x8]
      %s1025 = scalar_lea.vmem %s2, 384
      %v1026 = vld [vmem:[%s1025] sm:$0xf]
      %v1027 = vld [vmem:[%s1025 + $0x4] sm:$0xf]
      %v1028 = vld [vmem:[%s1025 + $0x8] sm:$0xf]
      %v1029 = vld [vmem:[%s1025 + $0xc] sm:$0xf]
      %v1030 = vld [vmem:[%s1025 + $0x10] sm:$0xf]
      %v1031 = vld [vmem:[%s1025 + $0x14] sm:$0xf]
      %v1032 = vld [vmem:[%s1025 + $0x18] sm:$0xf]
      %v1033 = vld [vmem:[%s1025 + $0x1c] sm:$0xf]
      %v1034 = vld [vmem:[%s1025 + $0x20] sm:$0xf]
      %v1035 = vld [vmem:[%s1025 + $0x24] sm:$0xf]
      %v1036 = vld [vmem:[%s1025 + $0x28] sm:$0xf]
      %v1037 = vld [vmem:[%s1025 + $0x2c] sm:$0xf]
      %v1038 = vld [vmem:[%s1025 + $0x30] sm:$0xf]
      %v1039 = vld [vmem:[%s1025 + $0x34] sm:$0xf]
      %v1040 = vld [vmem:[%s1025 + $0x38] sm:$0xf]
      %v1041 = vld [vmem:[%s1025 + $0x3c] sm:$0xf]
      %v1043 = vunpack.c.l.b16 %v1024
      %v1044 = vpack.c.b16 %v326, %v1043
      %vm1045 = vcmask 1044480
      %v1046 = vrot.slane %v1044, 3
      %v1047 = vrot.slane %v913, 3
      %v1048 = vsel %vm1045, %v1046, %v1047
      %v1066 = vunpack.c.l.b16 %v1026
      %v1067 = vunpack.c.l.b16 %v1027
      %v1068 = vunpack.c.l.b16 %v1028
      %v1069 = vunpack.c.l.b16 %v1029
      %v1070 = vunpack.c.l.b16 %v1030
      %v1071 = vunpack.c.l.b16 %v1031
      %v1072 = vunpack.c.l.b16 %v1032
      %v1073 = vunpack.c.l.b16 %v1033
      %v1074 = vunpack.c.l.b16 %v1034
      %v1075 = vunpack.c.l.b16 %v1035
      %v1076 = vunpack.c.l.b16 %v1036
      %v1077 = vunpack.c.l.b16 %v1037
      %v1078 = vunpack.c.l.b16 %v1038
      %v1079 = vunpack.c.l.b16 %v1039
      %v1080 = vunpack.c.l.b16 %v1040
      %v1081 = vunpack.c.l.b16 %v1041
      %v1082 = vpack.c.b16 %v1067, %v1066
      %v1083 = vpack.c.b16 %v1069, %v1068
      %v1084 = vpack.c.b16 %v1071, %v1070
      %v1085 = vpack.c.b16 %v1073, %v1072
      %v1086 = vpack.c.b16 %v1075, %v1074
      %v1087 = vpack.c.b16 %v1077, %v1076
      %v1088 = vpack.c.b16 %v1079, %v1078
      %v1089 = vpack.c.b16 %v1081, %v1080
      %1098 = vmatprep.subr.bf16.mxu0 0
      %1099 = vmatpush1.bf16.msra.mxu0 %v1089
      %1100 = vmatprep.subr.bf16.mxu0 0
      %1101 = vmatpush1.bf16.msra.mxu0 %v1088
      %1102 = vmatprep.subr.bf16.mxu0 0
      %1103 = vmatpush1.bf16.msra.mxu0 %v1087
      %1104 = vmatprep.subr.bf16.mxu0 0
      %1105 = vmatpush1.bf16.msra.mxu0 %v1086
      %1106 = vmatprep.subr.bf16.mxu0 0
      %1107 = vmatpush1.bf16.msra.mxu0 %v1085
      %1108 = vmatprep.subr.bf16.mxu0 0
      %1109 = vmatpush1.bf16.msra.mxu0 %v1084
      %1110 = vmatprep.subr.bf16.mxu0 0
      %1111 = vmatpush1.bf16.msra.mxu0 %v1083
      %1112 = vmatprep.subr.bf16.mxu0 0
      %1113 = vmatpush1.bf16.msra.mxu0 %v1082
      %1114 = vmatprep.subr.bf16.mxu0 0
      %1115 = vmatpush2.bf16.msra.mxu0 0
      %1116 = vmatprep.subr.bf16.mxu0 0
      %1117 = vmatpush2.bf16.msra.mxu0 0
      %1118 = vmatprep.subr.bf16.mxu0 0
      %1119 = vmatpush2.bf16.msra.mxu0 0
      %1120 = vmatprep.subr.bf16.mxu0 0
      %1121 = vmatpush2.bf16.msra.mxu0 0
      %1122 = vmatprep.subr.bf16.mxu0 0
      %1123 = vmatpush2.bf16.msra.mxu0 0
      %1124 = vmatprep.subr.bf16.mxu0 0
      %1125 = vmatpush2.bf16.msra.mxu0 0
      %1126 = vmatprep.subr.bf16.mxu0 0
      %1127 = vmatpush2.bf16.msra.mxu0 0
      %1128 = vmatprep.subr.bf16.mxu0 0
      %1129 = vmatpush2.bf16.msra.mxu0 0
      %1130 = vmatprep.mubr.bf16.mxu0 0
      %1131 = vmatmul.mubr.bf16.gmra.mxu0 %v1048
      %v1132 = vpop.f32.mrf.mxu0
      %v1133 = vadd.f32 0.0, %v1132
      %v1134 = vpop.f32.mrf.mxu0
      %v1135 = vpop.f32.mrf.mxu0
      %v1136 = vadd.f32 0.0, %v1135
      %v1137 = vpop.f32.mrf.mxu0
      %1138 = vdwg.mxu0
      %v1139 = vadd.f32 %v1022, %v1133
      %v1140 = vadd.f32 %v1023, %v1136
      %v1141 = vld [vmem:[#allocation2 + $0x8] sm:$0xf]
      %s1142 = scalar_lea.vmem %s2, 448
      %v1143 = vld [vmem:[%s1142] sm:$0xf]
      %v1144 = vld [vmem:[%s1142 + $0x4] sm:$0xf]
      %v1145 = vld [vmem:[%s1142 + $0x8] sm:$0xf]
      %v1146 = vld [vmem:[%s1142 + $0xc] sm:$0xf]
      %v1147 = vld [vmem:[%s1142 + $0x10] sm:$0xf]
      %v1148 = vld [vmem:[%s1142 + $0x14] sm:$0xf]
      %v1149 = vld [vmem:[%s1142 + $0x18] sm:$0xf]
      %v1150 = vld [vmem:[%s1142 + $0x1c] sm:$0xf]
      %v1151 = vld [vmem:[%s1142 + $0x20] sm:$0xf]
      %v1152 = vld [vmem:[%s1142 + $0x24] sm:$0xf]
      %v1153 = vld [vmem:[%s1142 + $0x28] sm:$0xf]
      %v1154 = vld [vmem:[%s1142 + $0x2c] sm:$0xf]
      %v1155 = vld [vmem:[%s1142 + $0x30] sm:$0xf]
      %v1156 = vld [vmem:[%s1142 + $0x34] sm:$0xf]
      %v1157 = vld [vmem:[%s1142 + $0x38] sm:$0xf]
      %v1158 = vld [vmem:[%s1142 + $0x3c] sm:$0xf]
      %v1160 = vunpack.c.l.b16 %v1141
      %v1161 = vpack.c.b16 %v1160, %v1160
      %vm1162 = vsmask.f32 4352
      %v1164 = vshrl.u32 %v1044, 16
      %v1166 = vrot.slane %v1164, 3
      %v1167 = vshll.u32 %v1044, 16
      %v1169 = vrot.slane %v1167, 4
      %v1170 = vor.u32 %v1166, %v1169
      %v1172 = vshrl.u32 %v1161, 16
      %v1174 = vrot.slane %v1172, 3
      %v1175 = vshll.u32 %v1161, 16
      %v1177 = vrot.slane %v1175, 4
      %v1178 = vor.u32 %v1174, %v1177
      %v1179 = vsel %vm1162, %v1170, %v1178
      %v1197 = vunpack.c.l.b16 %v1143
      %v1198 = vunpack.c.l.b16 %v1144
      %v1199 = vunpack.c.l.b16 %v1145
      %v1200 = vunpack.c.l.b16 %v1146
      %v1201 = vunpack.c.l.b16 %v1147
      %v1202 = vunpack.c.l.b16 %v1148
      %v1203 = vunpack.c.l.b16 %v1149
      %v1204 = vunpack.c.l.b16 %v1150
      %v1205 = vunpack.c.l.b16 %v1151
      %v1206 = vunpack.c.l.b16 %v1152
      %v1207 = vunpack.c.l.b16 %v1153
      %v1208 = vunpack.c.l.b16 %v1154
      %v1209 = vunpack.c.l.b16 %v1155
      %v1210 = vunpack.c.l.b16 %v1156
      %v1211 = vunpack.c.l.b16 %v1157
      %v1212 = vunpack.c.l.b16 %v1158
      %v1213 = vpack.c.b16 %v1198, %v1197
      %v1214 = vpack.c.b16 %v1200, %v1199
      %v1215 = vpack.c.b16 %v1202, %v1201
      %v1216 = vpack.c.b16 %v1204, %v1203
      %v1217 = vpack.c.b16 %v1206, %v1205
      %v1218 = vpack.c.b16 %v1208, %v1207
      %v1219 = vpack.c.b16 %v1210, %v1209
      %v1220 = vpack.c.b16 %v1212, %v1211
      %1229 = vmatprep.subr.bf16.mxu0 0
      %1230 = vmatpush1.bf16.msra.mxu0 %v1220
      %1231 = vmatprep.subr.bf16.mxu0 0
      %1232 = vmatpush1.bf16.msra.mxu0 %v1219
      %1233 = vmatprep.subr.bf16.mxu0 0
      %1234 = vmatpush1.bf16.msra.mxu0 %v1218
      %1235 = vmatprep.subr.bf16.mxu0 0
      %1236 = vmatpush1.bf16.msra.mxu0 %v1217
      %1237 = vmatprep.subr.bf16.mxu0 0
      %1238 = vmatpush1.bf16.msra.mxu0 %v1216
      %1239 = vmatprep.subr.bf16.mxu0 0
      %1240 = vmatpush1.bf16.msra.mxu0 %v1215
      %1241 = vmatprep.subr.bf16.mxu0 0
      %1242 = vmatpush1.bf16.msra.mxu0 %v1214
      %1243 = vmatprep.subr.bf16.mxu0 0
      %1244 = vmatpush1.bf16.msra.mxu0 %v1213
      %1245 = vmatprep.subr.bf16.mxu0 0
      %1246 = vmatpush2.bf16.msra.mxu0 0
      %1247 = vmatprep.subr.bf16.mxu0 0
      %1248 = vmatpush2.bf16.msra.mxu0 0
      %1249 = vmatprep.subr.bf16.mxu0 0
      %1250 = vmatpush2.bf16.msra.mxu0 0
      %1251 = vmatprep.subr.bf16.mxu0 0
      %1252 = vmatpush2.bf16.msra.mxu0 0
      %1253 = vmatprep.subr.bf16.mxu0 0
      %1254 = vmatpush2.bf16.msra.mxu0 0
      %1255 = vmatprep.subr.bf16.mxu0 0
      %1256 = vmatpush2.bf16.msra.mxu0 0
      %1257 = vmatprep.subr.bf16.mxu0 0
      %1258 = vmatpush2.bf16.msra.mxu0 0
      %1259 = vmatprep.subr.bf16.mxu0 0
      %1260 = vmatpush2.bf16.msra.mxu0 0
      %1261 = vmatprep.mubr.bf16.mxu0 0
      %1262 = vmatmul.mubr.bf16.gmra.mxu0 %v1179
      %v1263 = vpop.f32.mrf.mxu0
      %v1264 = vadd.f32 0.0, %v1263
      %v1265 = vpop.f32.mrf.mxu0
      %v1266 = vpop.f32.mrf.mxu0
      %v1267 = vadd.f32 0.0, %v1266
      %v1268 = vpop.f32.mrf.mxu0
      %1269 = vdwg.mxu0
      %v1270 = vadd.f32 %v1139, %v1264
      %v1271 = vadd.f32 %v1140, %v1267
      %v1272 = vld [vmem:[%s3] sm:$0x1]
      %v1274 = vlaneseq
      %v1275 = vshrl.u32 %v1274, 7
      %v1276 = vsub.s32 0, %v1275
      %v1277 = vrot.slane %v1272, %v1276
      %v1279 = vadd.f32 %v1270, %v1277
      %v1280 = vadd.f32 %v1271, %v1277
      %v1281 = vmax.f32 %v1279, 0.0
      %v1282 = vmax.f32 %v1280, 0.0
      %v1283 = vlaneseq
      %v1284 = vshrl.u32 %v1283, 7
      %v1285 = vadd.s32 %v1284, 8
      %s1286 = smul.u32 %s20, 16
      %v1287 = vstv %s1286
      %v1288 = vadd.s32 %v1284, %v1287
      %v1289 = vadd.s32 %v1285, %v1287
      %vm1290 = vcmp.ge.s32.totalorder %v1288, 1
      %vm1291 = vcmp.ge.s32.totalorder %v1289, 1
      %vm1292 = vcmp.le.s32.totalorder %v1288, 8
      %vm1293 = vcmp.le.s32.totalorder %v1289, 8
      %vm1294 = vmand %vm1290, %vm1292
      %vm1295 = vmand %vm1291, %vm1293
      %v1296 = vsel %vm1294, 1, 0
      %v1297 = vsel %vm1295, 1, 0
      %vm1298 = vcmp.eq.s32.totalorder %v1296, 1
      %vm1299 = vcmp.eq.s32.totalorder %v1297, 1
      %v1300 = vsel %vm1298, %v1281, 0.0
      %v1301 = vsel %vm1299, %v1282, 0.0
      %1302 = vst [vmem:[#allocation3] sm:$0xff] %v1300
      %1303 = vst [vmem:[#allocation3 + $0x8] sm:$0xff] %v1301
      %v1304 = vld [vmem:[#allocation3] ss:$2 sm:$0xff]
      %s1305 = scalar_lea.vmem [#allocation3], 1
      %v1306 = vld [vmem:[%s1305] ss:$2 sm:$0xff]
      %v1307 = vmax.f32 %v1304, %v1306
      %1308 = vst [vmem:[%s276] sm:$0xff] %v1307
      %p1309 = scmp.lt.s32.totalorder %s19, 1
      %s1310 = scalar_select %p1309, %s19, 1
      %p1311 = scmp.lt.s32.totalorder %s20, 0
      %s1312 = scalar_select %p1311, %s20, 0
      %s1313 = sadd.s32 %s1312, %s1310
      %s1314 = smul.addr %s1313, 8
      %s1315 = scalar_lea.vmem %s4, %s1314
      // Predicated region
      $region37: #{output_encoder_forward.5} parent=35 // pred_check
        %p1316 = pneg %p149
      $region38: #{output_encoder_forward.5} parent=35 // pred_check_branch
        %1318 = sbr.rel (%p1316) target = $region40
      $region39: #{output_encoder_forward.5} parent=35 // pred_region
        _
      $region40: #{output_encoder_forward.5} parent=35 // pred_fallthru
        _
    $region36: #{output_encoder_forward.5} parent=5 // pred_fallthru
      _
    %p1319 = scmp.le.s32.totalorder 2, %s10
    // Predicated region
    $region41: #{output_encoder_forward.5} parent=5 // pred_check
      %p1320 = pneg %p1319
    $region42: #{output_encoder_forward.5} parent=5 // pred_check_branch
      %1322 = sbr.rel (%p1320) target = $region44
    $region43: #{output_encoder_forward.5} parent=5 // pred_region
      %s1323 = ssub.s32 %s10, 2
      // Predicated region
      $region45: #{output_encoder_forward.5} parent=43 // pred_check
        %p1324 = pneg %p155
      $region46: #{output_encoder_forward.5} parent=43 // pred_check_branch
        %1326 = sbr.rel (%p1324) target = $region48
      $region47: #{output_encoder_forward.5} parent=43 // pred_region
        %p1327 = scmp.lt.s32.totalorder %s21, 1
        %s1328 = scalar_select %p1327, %s21, 1
        %p1329 = scmp.lt.s32.totalorder %s22, 0
        %s1330 = scalar_select %p1329, %s22, 0
        %s1331 = sadd.s32 %s1330, %s1328
        %s1332 = smul.addr %s1331, 8
        %s1333 = scalar_lea.vmem %s4, %s1332
      $region48: #{output_encoder_forward.5} parent=43 // pred_fallthru
        _
    $region44: #{output_encoder_forward.5} parent=5 // pred_fallthru
      _
  $region6: #{output_encoder_forward.5} parent=0 // loop_footer
    %s14 = sadd.s32 1, %s10
  $region7: #{output_encoder_forward.5} parent=0 // loop_footer_branch
    %9 = sbr.rel target = $region3
  $region8: #{output_encoder_forward.5} parent=0 // loop_exit
    _

</llo_original>
